<compile_context>
chip_gen: v7x
topology: tpu7x:2x2x1
jax: 0.10.0
libtpu: 0.0.40
codegen_flags: <defaults>
</compile_context>

<pallas_src>
import functools

import jax
import jax.numpy as jnp
import numpy as np
from jax.experimental import pallas as pl
from jax.experimental.pallas import tpu as pltpu

E = 128        # embedding dim (fixed by the module: self.embedding_dim = 128)
H = 128        # GRU hidden dim of encoder / decoders
V = 256        # vocab_size
B = 2          # batch
T = 8          # sequence length
Bp = 8         # batch padded to a full sublane tile
TB = T * Bp    # rows of the flattened, padded, time-major sequence


def _gru_gates(gx, gh, h):
    """GRU gate math in f32.  gx/gh: (Bp, 3H), h: (Bp, H)."""
    r = jax.nn.sigmoid(gx[:, :H] + gh[:, :H])
    z = jax.nn.sigmoid(gx[:, H:2 * H] + gh[:, H:2 * H])
    n = jnp.tanh(gx[:, 2 * H:] + r * gh[:, 2 * H:])
    return (1.0 - z) * n + z * h


# ----------------------------------------------------------------------------
# Fused kernel: encoder GRU + both decoder GRUs (interleaved) + vocab projections.
# ----------------------------------------------------------------------------
def fused_kernel(mask_ref, xc_ref, xp_ref, xn_ref,
                 ewx_ref, ewh_ref, eb_ref,
                 pwx_ref, pwh_ref, pb_ref,
                 nwx_ref, nwh_ref, nb_ref,
                 pwv_ref, pbv_ref, nwv_ref, nbv_ref,
                 outp_ref, outn_ref,
                 hp_sc, hn_sc):
    # ------------- encoder: GRU over time, length-masked last hidden state -----------
    # One batched input projection for all T steps (M = TB = 64).
    gxc = jnp.dot(xc_ref[...], ewx_ref[...],
                  preferred_element_type=jnp.float32) + eb_ref[...]      # (TB, 3H) f32
    ewh = ewh_ref[...]
    h = jnp.zeros((Bp, H), jnp.float32)
    for t in range(T):                                                   # fully unrolled
        gh = jnp.dot(h.astype(jnp.bfloat16), ewh,
                     preferred_element_type=jnp.float32)
        h_new = _gru_gates(gxc[t * Bp:(t + 1) * Bp, :], gh, h)
        keep = mask_ref[t * Bp:(t + 1) * Bp, :]                          # (Bp, 1) 0/1 f32
        h = keep * h_new + (1.0 - keep) * h                              # freeze past len
    h_last = h

    # ------------- two decoders conditioned on h_last, interleaved per step ----------
    gxp = jnp.dot(xp_ref[...], pwx_ref[...],
                  preferred_element_type=jnp.float32) + pb_ref[...]      # (TB, 3H) f32
    gxn = jnp.dot(xn_ref[...], nwx_ref[...],
                  preferred_element_type=jnp.float32) + nb_ref[...]      # (TB, 3H) f32
    pwh = pwh_ref[...]
    nwh = nwh_ref[...]
    hp = h_last
    hn = h_last
    for t in range(T):                                                   # fully unrolled
        ghp = jnp.dot(hp.astype(jnp.bfloat16), pwh,
                      preferred_element_type=jnp.float32)
        ghn = jnp.dot(hn.astype(jnp.bfloat16), nwh,
                      preferred_element_type=jnp.float32)
        hp = _gru_gates(gxp[t * Bp:(t + 1) * Bp, :], ghp, hp)
        hn = _gru_gates(gxn[t * Bp:(t + 1) * Bp, :], ghn, hn)
        hp_sc[t * Bp:(t + 1) * Bp, :] = hp                               # bound live range
        hn_sc[t * Bp:(t + 1) * Bp, :] = hn

    # ------------- vocab projections over all T*Bp rows, written once ----------------
    outp_ref[...] = jnp.dot(hp_sc[...].astype(jnp.bfloat16), pwv_ref[...],
                            preferred_element_type=jnp.float32) + pbv_ref[...]
    outn_ref[...] = jnp.dot(hn_sc[...].astype(jnp.bfloat16), nwv_ref[...],
                            preferred_element_type=jnp.float32) + nbv_ref[...]


# ----------------------------------------------------------------------------
# Full UniSKIP_variant.forward
# ----------------------------------------------------------------------------
def uniskip_forward(params, input_curr, input_lengths, input_prev, input_next):
    emb = params["embedding"]                                            # (V, E) f32

    def embed_tm(idx_bt):
        # [B, T] token ids -> (T*Bp, E) bf16, time-major (row = t*Bp + b), zero-padded,
        # with F.tanh already fused into the gather by XLA (f32 tanh, bf16 output).
        idx_tm = jnp.pad(jnp.transpose(idx_bt).astype(jnp.int32),
                         ((0, 0), (0, Bp - idx_bt.shape[0])))
        x = jnp.take(emb, idx_tm.reshape(-1), axis=0)                    # (TB, E) f32
        return jnp.tanh(x).astype(jnp.bfloat16)

    xc = embed_tm(input_curr)
    xp = embed_tm(input_prev)
    xn = embed_tm(input_next)

    # 0/1 keep-mask, one row per (t, b) of the padded time-major layout (pads -> 0).
    lens_p = jnp.pad(input_lengths.astype(jnp.int32)[None, :],
                     ((0, 0), (0, Bp - input_lengths.shape[0])))         # (1, Bp)
    mask = (jnp.arange(T, dtype=jnp.int32)[:, None] < lens_p)            # (T, Bp)
    mask = mask.astype(jnp.float32).reshape(TB, 1)

    bf = lambda w: w.astype(jnp.bfloat16)
    vmem = pl.BlockSpec(memory_space=pltpu.MemorySpace.VMEM)

    outp, outn = pl.pallas_call(
        fused_kernel,
        out_shape=(jax.ShapeDtypeStruct((TB, V), jnp.float32),
                   jax.ShapeDtypeStruct((TB, V), jnp.float32)),
        in_specs=[vmem] * 17,
        out_specs=(vmem, vmem),
        scratch_shapes=[pltpu.VMEM((TB, H), jnp.float32),
                        pltpu.VMEM((TB, H), jnp.float32)],
    )(mask, xc, xp, xn,
      bf(params["enc_wx"]), bf(params["enc_wh"]), params["enc_b"],
      bf(params["decp_wx"]), bf(params["decp_wh"]), params["decp_b"],
      bf(params["decn_wx"]), bf(params["decn_wh"]), params["decn_b"],
      bf(params["decp_wv"]), params["decp_bv"],
      bf(params["decn_wv"]), params["decn_bv"])

    def to_btv(x_tm):   # (T*Bp, V) time-major -> [B, T, V], pad rows dropped
        return jnp.transpose(x_tm.reshape(T, Bp, V)[:, :B, :], (1, 0, 2))

    return to_btv(outp), to_btv(outn)


# ----------------------------------------------------------------------------
# Pure-JAX reference (identical math / precision choices) for a correctness check
# ----------------------------------------------------------------------------
def _gru_ref(x_tbe, h0, wx, wh, b, lengths=None):
    wx_b, wh_b = wx.astype(jnp.bfloat16), wh.astype(jnp.bfloat16)

    def step(h, inp):
        x, t = inp                                                       # x: (B, E) bf16
        gx = jnp.dot(x, wx_b, preferred_element_type=jnp.float32) + b
        gh = jnp.dot(h.astype(jnp.bfloat16), wh_b, preferred_element_type=jnp.float32)
        r = jax.nn.sigmoid(gx[:, :H] + gh[:, :H])
        z = jax.nn.sigmoid(gx[:, H:2 * H] + gh[:, H:2 * H])
        n = jnp.tanh(gx[:, 2 * H:] + r * gh[:, 2 * H:])
        h_new = (1.0 - z) * n + z * h
        if lengths is not None:
            h_new = jnp.where(t < lengths, h_new, h)
        return h_new, h_new

    ts = jnp.arange(x_tbe.shape[0], dtype=jnp.int32)
    return jax.lax.scan(step, h0, (x_tbe, ts))


def uniskip_forward_ref(params, input_curr, input_lengths, input_prev, input_next):
    emb = params["embedding"]

    def embed(idx_bt):   # [B, T] -> [T, B, E] bf16, f32 tanh applied
        x = jnp.take(emb, idx_bt, axis=0)                                # (B, T, E) f32
        return jnp.transpose(jnp.tanh(x), (1, 0, 2)).astype(jnp.bfloat16)

    xc, xp, xn = embed(input_curr), embed(input_prev), embed(input_next)
    lens = input_lengths.astype(jnp.int32).reshape(-1, 1)
    h0 = jnp.zeros((input_curr.shape[0], H), jnp.float32)

    h_last, _ = _gru_ref(xc, h0, params["enc_wx"], params["enc_wh"],
                         params["enc_b"], lengths=lens)

    def decode(x, wx, wh, b, wv, bv):
        _, hs = _gru_ref(x, h_last, wx, wh, b)                           # (T, B, H) f32
        flat = hs.reshape(T * B, H).astype(jnp.bfloat16)
        logits = jnp.dot(flat, wv.astype(jnp.bfloat16),
                         preferred_element_type=jnp.float32).reshape(T, B, V) + bv
        return jnp.transpose(logits, (1, 0, 2))                          # [B, T, V]

    lp = decode(xp, params["decp_wx"], params["decp_wh"], params["decp_b"],
                params["decp_wv"], params["decp_bv"])
    ln = decode(xn, params["decn_wx"], params["decn_wh"], params["decn_b"],
                params["decn_wv"], params["decn_bv"])
    return lp, ln


# ----------------------------------------------------------------------------
# Deterministic parameter init + example run
# ----------------------------------------------------------------------------
def init_params(key):
    ks = jax.random.split(key, 16)

    def nrm(k, shape, scale):
        return jax.random.normal(k, shape, jnp.float32) * scale

    return {
        "embedding": nrm(ks[0], (V, E), 0.5),
        "enc_wx": nrm(ks[1], (E, 3 * H), 0.05),
        "enc_wh": nrm(ks[2], (H, 3 * H), 0.05),
        "enc_b":  nrm(ks[3], (1, 3 * H), 0.05),
        "decp_wx": nrm(ks[4], (E, 3 * H), 0.05),
        "decp_wh": nrm(ks[5], (H, 3 * H), 0.05),
        "decp_b":  nrm(ks[6], (1, 3 * H), 0.05),
        "decp_wv": nrm(ks[7], (H, V), 0.05),
        "decp_bv": nrm(ks[8], (1, V), 0.05),
        "decn_wx": nrm(ks[9], (E, 3 * H), 0.05),
        "decn_wh": nrm(ks[10], (H, 3 * H), 0.05),
        "decn_b":  nrm(ks[11], (1, 3 * H), 0.05),
        "decn_wv": nrm(ks[12], (H, V), 0.05),
        "decn_bv": nrm(ks[13], (1, V), 0.05),
    }


if __name__ == "__main__":
    key = jax.random.PRNGKey(0)
    pkey, k1, k2, k3 = jax.random.split(key, 4)
    params = init_params(pkey)

    input_curr = jax.random.randint(k1, (B, T), 0, V, dtype=jnp.int32)
    input_prev = jax.random.randint(k2, (B, T), 0, V, dtype=jnp.int32)
    input_next = jax.random.randint(k3, (B, T), 0, V, dtype=jnp.int32)
    input_lengths = jnp.array([T, T - 3], dtype=jnp.int32)

    fwd = jax.jit(functools.partial(uniskip_forward, params))
    logits_prev, logits_next = fwd(input_curr, input_lengths, input_prev, input_next)
    jax.block_until_ready((logits_prev, logits_next))

    ref_prev, ref_next = uniskip_forward_ref(
        params, input_curr, input_lengths, input_prev, input_next)
    np.testing.assert_allclose(np.asarray(logits_prev), np.asarray(ref_prev),
                               rtol=2e-3, atol=2e-3)
    np.testing.assert_allclose(np.asarray(logits_next), np.asarray(ref_next),
                               rtol=2e-3, atol=2e-3)

    print("KERNEL_OK")
</pallas_src>

<mosaic_0001>
module attributes {stable_mosaic.version = 11 : i64} {
  func.func @fused_kernel(%arg0: memref<64x1xf32, #tpu.memory_space<vmem>>, %arg1: memref<64x128xbf16, #tpu.memory_space<vmem>>, %arg2: memref<64x128xbf16, #tpu.memory_space<vmem>>, %arg3: memref<64x128xbf16, #tpu.memory_space<vmem>>, %arg4: memref<128x384xbf16, #tpu.memory_space<vmem>>, %arg5: memref<128x384xbf16, #tpu.memory_space<vmem>>, %arg6: memref<1x384xf32, #tpu.memory_space<vmem>>, %arg7: memref<128x384xbf16, #tpu.memory_space<vmem>>, %arg8: memref<128x384xbf16, #tpu.memory_space<vmem>>, %arg9: memref<1x384xf32, #tpu.memory_space<vmem>>, %arg10: memref<128x384xbf16, #tpu.memory_space<vmem>>, %arg11: memref<128x384xbf16, #tpu.memory_space<vmem>>, %arg12: memref<1x384xf32, #tpu.memory_space<vmem>>, %arg13: memref<128x256xbf16, #tpu.memory_space<vmem>>, %arg14: memref<1x256xf32, #tpu.memory_space<vmem>>, %arg15: memref<128x256xbf16, #tpu.memory_space<vmem>>, %arg16: memref<1x256xf32, #tpu.memory_space<vmem>>, %arg17: memref<64x256xf32, #tpu.memory_space<vmem>>, %arg18: memref<64x256xf32, #tpu.memory_space<vmem>>, %arg19: memref<64x128xf32, #tpu.memory_space<vmem>>, %arg20: memref<64x128xf32, #tpu.memory_space<vmem>>) attributes {dimension_semantics = [], scalar_prefetch = 0 : i64, scratch_operands = 2 : i64, tpu.core_type = #tpu.core_type<tc>} {
    %c0 = arith.constant 0 : index
    %c0_0 = arith.constant 0 : index
    %0 = vector.load %arg1[%c0, %c0_0] : memref<64x128xbf16, #tpu.memory_space<vmem>>, vector<64x128xbf16>
    %c0_1 = arith.constant 0 : index
    %c0_2 = arith.constant 0 : index
    %1 = vector.load %arg4[%c0_1, %c0_2] : memref<128x384xbf16, #tpu.memory_space<vmem>>, vector<128x384xbf16>
    %cst = arith.constant dense<0.000000e+00> : vector<64x384xf32>
    %2 = tpu.matmul %0, %1, %cst {dimension_numbers = #tpu.dot_dimension_numbers<[1], [0], [0], [1], [0, 0, 1, 1], [], []>} : vector<64x128xbf16>, vector<128x384xbf16>, vector<64x384xf32> -> vector<64x384xf32>
    %c0_3 = arith.constant 0 : index
    %c0_4 = arith.constant 0 : index
    %3 = vector.load %arg6[%c0_3, %c0_4] : memref<1x384xf32, #tpu.memory_space<vmem>>, vector<1x384xf32>
    %4 = vector.broadcast %3 : vector<1x384xf32> to vector<64x384xf32>
    %5 = arith.addf %2, %4 : vector<64x384xf32>
    %c0_5 = arith.constant 0 : index
    %c0_6 = arith.constant 0 : index
    %6 = vector.load %arg5[%c0_5, %c0_6] : memref<128x384xbf16, #tpu.memory_space<vmem>>, vector<128x384xbf16>
    %cst_7 = arith.constant 0.000000e+00 : f32
    %7 = vector.broadcast %cst_7 : f32 to vector<8x128xf32>
    %8 = arith.truncf %7 : vector<8x128xf32> to vector<8x128xbf16>
    %cst_8 = arith.constant dense<0.000000e+00> : vector<8x384xf32>
    %9 = tpu.matmul %8, %6, %cst_8 {dimension_numbers = #tpu.dot_dimension_numbers<[1], [0], [0], [1], [0, 0, 1, 1], [], []>} : vector<8x128xbf16>, vector<128x384xbf16>, vector<8x384xf32> -> vector<8x384xf32>
    %10 = vector.extract_strided_slice %5 {offsets = [0, 0], sizes = [8, 384], strides = [1, 1]} : vector<64x384xf32> to vector<8x384xf32>
    %11 = vector.extract_strided_slice %10 {offsets = [0, 0], sizes = [8, 128], strides = [1, 1]} : vector<8x384xf32> to vector<8x128xf32>
    %12 = vector.extract_strided_slice %9 {offsets = [0, 0], sizes = [8, 128], strides = [1, 1]} : vector<8x384xf32> to vector<8x128xf32>
    %13 = arith.addf %11, %12 : vector<8x128xf32>
    %14 = arith.negf %13 : vector<8x128xf32>
    %15 = math.exp %14 : vector<8x128xf32>
    %cst_9 = arith.constant 1.000000e+00 : f32
    %16 = vector.broadcast %cst_9 : f32 to vector<8x128xf32>
    %17 = arith.addf %16, %15 : vector<8x128xf32>
    %18 = arith.divf %16, %17 : vector<8x128xf32>
    %19 = vector.extract_strided_slice %10 {offsets = [0, 128], sizes = [8, 128], strides = [1, 1]} : vector<8x384xf32> to vector<8x128xf32>
    %20 = vector.extract_strided_slice %9 {offsets = [0, 128], sizes = [8, 128], strides = [1, 1]} : vector<8x384xf32> to vector<8x128xf32>
    %21 = arith.addf %19, %20 : vector<8x128xf32>
    %22 = arith.negf %21 : vector<8x128xf32>
    %23 = math.exp %22 : vector<8x128xf32>
    %cst_10 = arith.constant 1.000000e+00 : f32
    %24 = vector.broadcast %cst_10 : f32 to vector<8x128xf32>
    %25 = arith.addf %24, %23 : vector<8x128xf32>
    %26 = arith.divf %24, %25 : vector<8x128xf32>
    %27 = vector.extract_strided_slice %10 {offsets = [0, 256], sizes = [8, 128], strides = [1, 1]} : vector<8x384xf32> to vector<8x128xf32>
    %28 = vector.extract_strided_slice %9 {offsets = [0, 256], sizes = [8, 128], strides = [1, 1]} : vector<8x384xf32> to vector<8x128xf32>
    %29 = arith.mulf %18, %28 : vector<8x128xf32>
    %30 = arith.addf %27, %29 : vector<8x128xf32>
    %31 = math.tanh %30 : vector<8x128xf32>
    %cst_11 = arith.constant 1.000000e+00 : f32
    %32 = vector.broadcast %cst_11 : f32 to vector<8x128xf32>
    %33 = arith.subf %32, %26 : vector<8x128xf32>
    %34 = arith.mulf %33, %31 : vector<8x128xf32>
    %35 = arith.mulf %26, %7 : vector<8x128xf32>
    %36 = arith.addf %34, %35 : vector<8x128xf32>
    %c0_12 = arith.constant 0 : index
    %c0_13 = arith.constant 0 : index
    %37 = vector.load %arg0[%c0_12, %c0_13] : memref<64x1xf32, #tpu.memory_space<vmem>>, vector<8x1xf32>
    %38 = vector.broadcast %37 : vector<8x1xf32> to vector<8x128xf32>
    %39 = arith.mulf %38, %36 : vector<8x128xf32>
    %cst_14 = arith.constant 1.000000e+00 : f32
    %40 = vector.broadcast %cst_14 : f32 to vector<8x1xf32>
    %41 = arith.subf %40, %37 : vector<8x1xf32>
    %42 = vector.broadcast %41 : vector<8x1xf32> to vector<8x128xf32>
    %43 = arith.mulf %42, %7 : vector<8x128xf32>
    %44 = arith.addf %39, %43 : vector<8x128xf32>
    %45 = arith.truncf %44 : vector<8x128xf32> to vector<8x128xbf16>
    %cst_15 = arith.constant dense<0.000000e+00> : vector<8x384xf32>
    %46 = tpu.matmul %45, %6, %cst_15 {dimension_numbers = #tpu.dot_dimension_numbers<[1], [0], [0], [1], [0, 0, 1, 1], [], []>} : vector<8x128xbf16>, vector<128x384xbf16>, vector<8x384xf32> -> vector<8x384xf32>
    %47 = vector.extract_strided_slice %5 {offsets = [8, 0], sizes = [8, 384], strides = [1, 1]} : vector<64x384xf32> to vector<8x384xf32>
    %48 = vector.extract_strided_slice %47 {offsets = [0, 0], sizes = [8, 128], strides = [1, 1]} : vector<8x384xf32> to vector<8x128xf32>
    %49 = vector.extract_strided_slice %46 {offsets = [0, 0], sizes = [8, 128], strides = [1, 1]} : vector<8x384xf32> to vector<8x128xf32>
    %50 = arith.addf %48, %49 : vector<8x128xf32>
    %51 = arith.negf %50 : vector<8x128xf32>
    %52 = math.exp %51 : vector<8x128xf32>
    %cst_16 = arith.constant 1.000000e+00 : f32
    %53 = vector.broadcast %cst_16 : f32 to vector<8x128xf32>
    %54 = arith.addf %53, %52 : vector<8x128xf32>
    %55 = arith.divf %53, %54 : vector<8x128xf32>
    %56 = vector.extract_strided_slice %47 {offsets = [0, 128], sizes = [8, 128], strides = [1, 1]} : vector<8x384xf32> to vector<8x128xf32>
    %57 = vector.extract_strided_slice %46 {offsets = [0, 128], sizes = [8, 128], strides = [1, 1]} : vector<8x384xf32> to vector<8x128xf32>
    %58 = arith.addf %56, %57 : vector<8x128xf32>
    %59 = arith.negf %58 : vector<8x128xf32>
    %60 = math.exp %59 : vector<8x128xf32>
    %cst_17 = arith.constant 1.000000e+00 : f32
    %61 = vector.broadcast %cst_17 : f32 to vector<8x128xf32>
    %62 = arith.addf %61, %60 : vector<8x128xf32>
    %63 = arith.divf %61, %62 : vector<8x128xf32>
    %64 = vector.extract_strided_slice %47 {offsets = [0, 256], sizes = [8, 128], strides = [1, 1]} : vector<8x384xf32> to vector<8x128xf32>
    %65 = vector.extract_strided_slice %46 {offsets = [0, 256], sizes = [8, 128], strides = [1, 1]} : vector<8x384xf32> to vector<8x128xf32>
    %66 = arith.mulf %55, %65 : vector<8x128xf32>
    %67 = arith.addf %64, %66 : vector<8x128xf32>
    %68 = math.tanh %67 : vector<8x128xf32>
    %cst_18 = arith.constant 1.000000e+00 : f32
    %69 = vector.broadcast %cst_18 : f32 to vector<8x128xf32>
    %70 = arith.subf %69, %63 : vector<8x128xf32>
    %71 = arith.mulf %70, %68 : vector<8x128xf32>
    %72 = arith.mulf %63, %44 : vector<8x128xf32>
    %73 = arith.addf %71, %72 : vector<8x128xf32>
    %c8 = arith.constant 8 : index
    %c0_19 = arith.constant 0 : index
    %74 = vector.load %arg0[%c8, %c0_19] : memref<64x1xf32, #tpu.memory_space<vmem>>, vector<8x1xf32>
    %75 = vector.broadcast %74 : vector<8x1xf32> to vector<8x128xf32>
    %76 = arith.mulf %75, %73 : vector<8x128xf32>
    %cst_20 = arith.constant 1.000000e+00 : f32
    %77 = vector.broadcast %cst_20 : f32 to vector<8x1xf32>
    %78 = arith.subf %77, %74 : vector<8x1xf32>
    %79 = vector.broadcast %78 : vector<8x1xf32> to vector<8x128xf32>
    %80 = arith.mulf %79, %44 : vector<8x128xf32>
    %81 = arith.addf %76, %80 : vector<8x128xf32>
    %82 = arith.truncf %81 : vector<8x128xf32> to vector<8x128xbf16>
    %cst_21 = arith.constant dense<0.000000e+00> : vector<8x384xf32>
    %83 = tpu.matmul %82, %6, %cst_21 {dimension_numbers = #tpu.dot_dimension_numbers<[1], [0], [0], [1], [0, 0, 1, 1], [], []>} : vector<8x128xbf16>, vector<128x384xbf16>, vector<8x384xf32> -> vector<8x384xf32>
    %84 = vector.extract_strided_slice %5 {offsets = [16, 0], sizes = [8, 384], strides = [1, 1]} : vector<64x384xf32> to vector<8x384xf32>
    %85 = vector.extract_strided_slice %84 {offsets = [0, 0], sizes = [8, 128], strides = [1, 1]} : vector<8x384xf32> to vector<8x128xf32>
    %86 = vector.extract_strided_slice %83 {offsets = [0, 0], sizes = [8, 128], strides = [1, 1]} : vector<8x384xf32> to vector<8x128xf32>
    %87 = arith.addf %85, %86 : vector<8x128xf32>
    %88 = arith.negf %87 : vector<8x128xf32>
    %89 = math.exp %88 : vector<8x128xf32>
    %cst_22 = arith.constant 1.000000e+00 : f32
    %90 = vector.broadcast %cst_22 : f32 to vector<8x128xf32>
    %91 = arith.addf %90, %89 : vector<8x128xf32>
    %92 = arith.divf %90, %91 : vector<8x128xf32>
    %93 = vector.extract_strided_slice %84 {offsets = [0, 128], sizes = [8, 128], strides = [1, 1]} : vector<8x384xf32> to vector<8x128xf32>
    %94 = vector.extract_strided_slice %83 {offsets = [0, 128], sizes = [8, 128], strides = [1, 1]} : vector<8x384xf32> to vector<8x128xf32>
    %95 = arith.addf %93, %94 : vector<8x128xf32>
    %96 = arith.negf %95 : vector<8x128xf32>
    %97 = math.exp %96 : vector<8x128xf32>
    %cst_23 = arith.constant 1.000000e+00 : f32
    %98 = vector.broadcast %cst_23 : f32 to vector<8x128xf32>
    %99 = arith.addf %98, %97 : vector<8x128xf32>
    %100 = arith.divf %98, %99 : vector<8x128xf32>
    %101 = vector.extract_strided_slice %84 {offsets = [0, 256], sizes = [8, 128], strides = [1, 1]} : vector<8x384xf32> to vector<8x128xf32>
    %102 = vector.extract_strided_slice %83 {offsets = [0, 256], sizes = [8, 128], strides = [1, 1]} : vector<8x384xf32> to vector<8x128xf32>
    %103 = arith.mulf %92, %102 : vector<8x128xf32>
    %104 = arith.addf %101, %103 : vector<8x128xf32>
    %105 = math.tanh %104 : vector<8x128xf32>
    %cst_24 = arith.constant 1.000000e+00 : f32
    %106 = vector.broadcast %cst_24 : f32 to vector<8x128xf32>
    %107 = arith.subf %106, %100 : vector<8x128xf32>
    %108 = arith.mulf %107, %105 : vector<8x128xf32>
    %109 = arith.mulf %100, %81 : vector<8x128xf32>
    %110 = arith.addf %108, %109 : vector<8x128xf32>
    %c16 = arith.constant 16 : index
    %c0_25 = arith.constant 0 : index
    %111 = vector.load %arg0[%c16, %c0_25] : memref<64x1xf32, #tpu.memory_space<vmem>>, vector<8x1xf32>
    %112 = vector.broadcast %111 : vector<8x1xf32> to vector<8x128xf32>
    %113 = arith.mulf %112, %110 : vector<8x128xf32>
    %cst_26 = arith.constant 1.000000e+00 : f32
    %114 = vector.broadcast %cst_26 : f32 to vector<8x1xf32>
    %115 = arith.subf %114, %111 : vector<8x1xf32>
    %116 = vector.broadcast %115 : vector<8x1xf32> to vector<8x128xf32>
    %117 = arith.mulf %116, %81 : vector<8x128xf32>
    %118 = arith.addf %113, %117 : vector<8x128xf32>
    %119 = arith.truncf %118 : vector<8x128xf32> to vector<8x128xbf16>
    %cst_27 = arith.constant dense<0.000000e+00> : vector<8x384xf32>
    %120 = tpu.matmul %119, %6, %cst_27 {dimension_numbers = #tpu.dot_dimension_numbers<[1], [0], [0], [1], [0, 0, 1, 1], [], []>} : vector<8x128xbf16>, vector<128x384xbf16>, vector<8x384xf32> -> vector<8x384xf32>
    %121 = vector.extract_strided_slice %5 {offsets = [24, 0], sizes = [8, 384], strides = [1, 1]} : vector<64x384xf32> to vector<8x384xf32>
    %122 = vector.extract_strided_slice %121 {offsets = [0, 0], sizes = [8, 128], strides = [1, 1]} : vector<8x384xf32> to vector<8x128xf32>
    %123 = vector.extract_strided_slice %120 {offsets = [0, 0], sizes = [8, 128], strides = [1, 1]} : vector<8x384xf32> to vector<8x128xf32>
    %124 = arith.addf %122, %123 : vector<8x128xf32>
    %125 = arith.negf %124 : vector<8x128xf32>
    %126 = math.exp %125 : vector<8x128xf32>
    %cst_28 = arith.constant 1.000000e+00 : f32
    %127 = vector.broadcast %cst_28 : f32 to vector<8x128xf32>
    %128 = arith.addf %127, %126 : vector<8x128xf32>
    %129 = arith.divf %127, %128 : vector<8x128xf32>
    %130 = vector.extract_strided_slice %121 {offsets = [0, 128], sizes = [8, 128], strides = [1, 1]} : vector<8x384xf32> to vector<8x128xf32>
    %131 = vector.extract_strided_slice %120 {offsets = [0, 128], sizes = [8, 128], strides = [1, 1]} : vector<8x384xf32> to vector<8x128xf32>
    %132 = arith.addf %130, %131 : vector<8x128xf32>
    %133 = arith.negf %132 : vector<8x128xf32>
    %134 = math.exp %133 : vector<8x128xf32>
    %cst_29 = arith.constant 1.000000e+00 : f32
    %135 = vector.broadcast %cst_29 : f32 to vector<8x128xf32>
    %136 = arith.addf %135, %134 : vector<8x128xf32>
    %137 = arith.divf %135, %136 : vector<8x128xf32>
    %138 = vector.extract_strided_slice %121 {offsets = [0, 256], sizes = [8, 128], strides = [1, 1]} : vector<8x384xf32> to vector<8x128xf32>
    %139 = vector.extract_strided_slice %120 {offsets = [0, 256], sizes = [8, 128], strides = [1, 1]} : vector<8x384xf32> to vector<8x128xf32>
    %140 = arith.mulf %129, %139 : vector<8x128xf32>
    %141 = arith.addf %138, %140 : vector<8x128xf32>
    %142 = math.tanh %141 : vector<8x128xf32>
    %cst_30 = arith.constant 1.000000e+00 : f32
    %143 = vector.broadcast %cst_30 : f32 to vector<8x128xf32>
    %144 = arith.subf %143, %137 : vector<8x128xf32>
    %145 = arith.mulf %144, %142 : vector<8x128xf32>
    %146 = arith.mulf %137, %118 : vector<8x128xf32>
    %147 = arith.addf %145, %146 : vector<8x128xf32>
    %c24 = arith.constant 24 : index
    %c0_31 = arith.constant 0 : index
    %148 = vector.load %arg0[%c24, %c0_31] : memref<64x1xf32, #tpu.memory_space<vmem>>, vector<8x1xf32>
    %149 = vector.broadcast %148 : vector<8x1xf32> to vector<8x128xf32>
    %150 = arith.mulf %149, %147 : vector<8x128xf32>
    %cst_32 = arith.constant 1.000000e+00 : f32
    %151 = vector.broadcast %cst_32 : f32 to vector<8x1xf32>
    %152 = arith.subf %151, %148 : vector<8x1xf32>
    %153 = vector.broadcast %152 : vector<8x1xf32> to vector<8x128xf32>
    %154 = arith.mulf %153, %118 : vector<8x128xf32>
    %155 = arith.addf %150, %154 : vector<8x128xf32>
    %156 = arith.truncf %155 : vector<8x128xf32> to vector<8x128xbf16>
    %cst_33 = arith.constant dense<0.000000e+00> : vector<8x384xf32>
    %157 = tpu.matmul %156, %6, %cst_33 {dimension_numbers = #tpu.dot_dimension_numbers<[1], [0], [0], [1], [0, 0, 1, 1], [], []>} : vector<8x128xbf16>, vector<128x384xbf16>, vector<8x384xf32> -> vector<8x384xf32>
    %158 = vector.extract_strided_slice %5 {offsets = [32, 0], sizes = [8, 384], strides = [1, 1]} : vector<64x384xf32> to vector<8x384xf32>
    %159 = vector.extract_strided_slice %158 {offsets = [0, 0], sizes = [8, 128], strides = [1, 1]} : vector<8x384xf32> to vector<8x128xf32>
    %160 = vector.extract_strided_slice %157 {offsets = [0, 0], sizes = [8, 128], strides = [1, 1]} : vector<8x384xf32> to vector<8x128xf32>
    %161 = arith.addf %159, %160 : vector<8x128xf32>
    %162 = arith.negf %161 : vector<8x128xf32>
    %163 = math.exp %162 : vector<8x128xf32>
    %cst_34 = arith.constant 1.000000e+00 : f32
    %164 = vector.broadcast %cst_34 : f32 to vector<8x128xf32>
    %165 = arith.addf %164, %163 : vector<8x128xf32>
    %166 = arith.divf %164, %165 : vector<8x128xf32>
    %167 = vector.extract_strided_slice %158 {offsets = [0, 128], sizes = [8, 128], strides = [1, 1]} : vector<8x384xf32> to vector<8x128xf32>
    %168 = vector.extract_strided_slice %157 {offsets = [0, 128], sizes = [8, 128], strides = [1, 1]} : vector<8x384xf32> to vector<8x128xf32>
    %169 = arith.addf %167, %168 : vector<8x128xf32>
    %170 = arith.negf %169 : vector<8x128xf32>
    %171 = math.exp %170 : vector<8x128xf32>
    %cst_35 = arith.constant 1.000000e+00 : f32
    %172 = vector.broadcast %cst_35 : f32 to vector<8x128xf32>
    %173 = arith.addf %172, %171 : vector<8x128xf32>
    %174 = arith.divf %172, %173 : vector<8x128xf32>
    %175 = vector.extract_strided_slice %158 {offsets = [0, 256], sizes = [8, 128], strides = [1, 1]} : vector<8x384xf32> to vector<8x128xf32>
    %176 = vector.extract_strided_slice %157 {offsets = [0, 256], sizes = [8, 128], strides = [1, 1]} : vector<8x384xf32> to vector<8x128xf32>
    %177 = arith.mulf %166, %176 : vector<8x128xf32>
    %178 = arith.addf %175, %177 : vector<8x128xf32>
    %179 = math.tanh %178 : vector<8x128xf32>
    %cst_36 = arith.constant 1.000000e+00 : f32
    %180 = vector.broadcast %cst_36 : f32 to vector<8x128xf32>
    %181 = arith.subf %180, %174 : vector<8x128xf32>
    %182 = arith.mulf %181, %179 : vector<8x128xf32>
    %183 = arith.mulf %174, %155 : vector<8x128xf32>
    %184 = arith.addf %182, %183 : vector<8x128xf32>
    %c32 = arith.constant 32 : index
    %c0_37 = arith.constant 0 : index
    %185 = vector.load %arg0[%c32, %c0_37] : memref<64x1xf32, #tpu.memory_space<vmem>>, vector<8x1xf32>
    %186 = vector.broadcast %185 : vector<8x1xf32> to vector<8x128xf32>
    %187 = arith.mulf %186, %184 : vector<8x128xf32>
    %cst_38 = arith.constant 1.000000e+00 : f32
    %188 = vector.broadcast %cst_38 : f32 to vector<8x1xf32>
    %189 = arith.subf %188, %185 : vector<8x1xf32>
    %190 = vector.broadcast %189 : vector<8x1xf32> to vector<8x128xf32>
    %191 = arith.mulf %190, %155 : vector<8x128xf32>
    %192 = arith.addf %187, %191 : vector<8x128xf32>
    %193 = arith.truncf %192 : vector<8x128xf32> to vector<8x128xbf16>
    %cst_39 = arith.constant dense<0.000000e+00> : vector<8x384xf32>
    %194 = tpu.matmul %193, %6, %cst_39 {dimension_numbers = #tpu.dot_dimension_numbers<[1], [0], [0], [1], [0, 0, 1, 1], [], []>} : vector<8x128xbf16>, vector<128x384xbf16>, vector<8x384xf32> -> vector<8x384xf32>
    %195 = vector.extract_strided_slice %5 {offsets = [40, 0], sizes = [8, 384], strides = [1, 1]} : vector<64x384xf32> to vector<8x384xf32>
    %196 = vector.extract_strided_slice %195 {offsets = [0, 0], sizes = [8, 128], strides = [1, 1]} : vector<8x384xf32> to vector<8x128xf32>
    %197 = vector.extract_strided_slice %194 {offsets = [0, 0], sizes = [8, 128], strides = [1, 1]} : vector<8x384xf32> to vector<8x128xf32>
    %198 = arith.addf %196, %197 : vector<8x128xf32>
    %199 = arith.negf %198 : vector<8x128xf32>
    %200 = math.exp %199 : vector<8x128xf32>
    %cst_40 = arith.constant 1.000000e+00 : f32
    %201 = vector.broadcast %cst_40 : f32 to vector<8x128xf32>
    %202 = arith.addf %201, %200 : vector<8x128xf32>
    %203 = arith.divf %201, %202 : vector<8x128xf32>
    %204 = vector.extract_strided_slice %195 {offsets = [0, 128], sizes = [8, 128], strides = [1, 1]} : vector<8x384xf32> to vector<8x128xf32>
    %205 = vector.extract_strided_slice %194 {offsets = [0, 128], sizes = [8, 128], strides = [1, 1]} : vector<8x384xf32> to vector<8x128xf32>
    %206 = arith.addf %204, %205 : vector<8x128xf32>
    %207 = arith.negf %206 : vector<8x128xf32>
    %208 = math.exp %207 : vector<8x128xf32>
    %cst_41 = arith.constant 1.000000e+00 : f32
    %209 = vector.broadcast %cst_41 : f32 to vector<8x128xf32>
    %210 = arith.addf %209, %208 : vector<8x128xf32>
    %211 = arith.divf %209, %210 : vector<8x128xf32>
    %212 = vector.extract_strided_slice %195 {offsets = [0, 256], sizes = [8, 128], strides = [1, 1]} : vector<8x384xf32> to vector<8x128xf32>
    %213 = vector.extract_strided_slice %194 {offsets = [0, 256], sizes = [8, 128], strides = [1, 1]} : vector<8x384xf32> to vector<8x128xf32>
    %214 = arith.mulf %203, %213 : vector<8x128xf32>
    %215 = arith.addf %212, %214 : vector<8x128xf32>
    %216 = math.tanh %215 : vector<8x128xf32>
    %cst_42 = arith.constant 1.000000e+00 : f32
    %217 = vector.broadcast %cst_42 : f32 to vector<8x128xf32>
    %218 = arith.subf %217, %211 : vector<8x128xf32>
    %219 = arith.mulf %218, %216 : vector<8x128xf32>
    %220 = arith.mulf %211, %192 : vector<8x128xf32>
    %221 = arith.addf %219, %220 : vector<8x128xf32>
    %c40 = arith.constant 40 : index
    %c0_43 = arith.constant 0 : index
    %222 = vector.load %arg0[%c40, %c0_43] : memref<64x1xf32, #tpu.memory_space<vmem>>, vector<8x1xf32>
    %223 = vector.broadcast %222 : vector<8x1xf32> to vector<8x128xf32>
    %224 = arith.mulf %223, %221 : vector<8x128xf32>
    %cst_44 = arith.constant 1.000000e+00 : f32
    %225 = vector.broadcast %cst_44 : f32 to vector<8x1xf32>
    %226 = arith.subf %225, %222 : vector<8x1xf32>
    %227 = vector.broadcast %226 : vector<8x1xf32> to vector<8x128xf32>
    %228 = arith.mulf %227, %192 : vector<8x128xf32>
    %229 = arith.addf %224, %228 : vector<8x128xf32>
    %230 = arith.truncf %229 : vector<8x128xf32> to vector<8x128xbf16>
    %cst_45 = arith.constant dense<0.000000e+00> : vector<8x384xf32>
    %231 = tpu.matmul %230, %6, %cst_45 {dimension_numbers = #tpu.dot_dimension_numbers<[1], [0], [0], [1], [0, 0, 1, 1], [], []>} : vector<8x128xbf16>, vector<128x384xbf16>, vector<8x384xf32> -> vector<8x384xf32>
    %232 = vector.extract_strided_slice %5 {offsets = [48, 0], sizes = [8, 384], strides = [1, 1]} : vector<64x384xf32> to vector<8x384xf32>
    %233 = vector.extract_strided_slice %232 {offsets = [0, 0], sizes = [8, 128], strides = [1, 1]} : vector<8x384xf32> to vector<8x128xf32>
    %234 = vector.extract_strided_slice %231 {offsets = [0, 0], sizes = [8, 128], strides = [1, 1]} : vector<8x384xf32> to vector<8x128xf32>
    %235 = arith.addf %233, %234 : vector<8x128xf32>
    %236 = arith.negf %235 : vector<8x128xf32>
    %237 = math.exp %236 : vector<8x128xf32>
    %cst_46 = arith.constant 1.000000e+00 : f32
    %238 = vector.broadcast %cst_46 : f32 to vector<8x128xf32>
    %239 = arith.addf %238, %237 : vector<8x128xf32>
    %240 = arith.divf %238, %239 : vector<8x128xf32>
    %241 = vector.extract_strided_slice %232 {offsets = [0, 128], sizes = [8, 128], strides = [1, 1]} : vector<8x384xf32> to vector<8x128xf32>
    %242 = vector.extract_strided_slice %231 {offsets = [0, 128], sizes = [8, 128], strides = [1, 1]} : vector<8x384xf32> to vector<8x128xf32>
    %243 = arith.addf %241, %242 : vector<8x128xf32>
    %244 = arith.negf %243 : vector<8x128xf32>
    %245 = math.exp %244 : vector<8x128xf32>
    %cst_47 = arith.constant 1.000000e+00 : f32
    %246 = vector.broadcast %cst_47 : f32 to vector<8x128xf32>
    %247 = arith.addf %246, %245 : vector<8x128xf32>
    %248 = arith.divf %246, %247 : vector<8x128xf32>
    %249 = vector.extract_strided_slice %232 {offsets = [0, 256], sizes = [8, 128], strides = [1, 1]} : vector<8x384xf32> to vector<8x128xf32>
    %250 = vector.extract_strided_slice %231 {offsets = [0, 256], sizes = [8, 128], strides = [1, 1]} : vector<8x384xf32> to vector<8x128xf32>
    %251 = arith.mulf %240, %250 : vector<8x128xf32>
    %252 = arith.addf %249, %251 : vector<8x128xf32>
    %253 = math.tanh %252 : vector<8x128xf32>
    %cst_48 = arith.constant 1.000000e+00 : f32
    %254 = vector.broadcast %cst_48 : f32 to vector<8x128xf32>
    %255 = arith.subf %254, %248 : vector<8x128xf32>
    %256 = arith.mulf %255, %253 : vector<8x128xf32>
    %257 = arith.mulf %248, %229 : vector<8x128xf32>
    %258 = arith.addf %256, %257 : vector<8x128xf32>
    %c48 = arith.constant 48 : index
    %c0_49 = arith.constant 0 : index
    %259 = vector.load %arg0[%c48, %c0_49] : memref<64x1xf32, #tpu.memory_space<vmem>>, vector<8x1xf32>
    %260 = vector.broadcast %259 : vector<8x1xf32> to vector<8x128xf32>
    %261 = arith.mulf %260, %258 : vector<8x128xf32>
    %cst_50 = arith.constant 1.000000e+00 : f32
    %262 = vector.broadcast %cst_50 : f32 to vector<8x1xf32>
    %263 = arith.subf %262, %259 : vector<8x1xf32>
    %264 = vector.broadcast %263 : vector<8x1xf32> to vector<8x128xf32>
    %265 = arith.mulf %264, %229 : vector<8x128xf32>
    %266 = arith.addf %261, %265 : vector<8x128xf32>
    %267 = arith.truncf %266 : vector<8x128xf32> to vector<8x128xbf16>
    %cst_51 = arith.constant dense<0.000000e+00> : vector<8x384xf32>
    %268 = tpu.matmul %267, %6, %cst_51 {dimension_numbers = #tpu.dot_dimension_numbers<[1], [0], [0], [1], [0, 0, 1, 1], [], []>} : vector<8x128xbf16>, vector<128x384xbf16>, vector<8x384xf32> -> vector<8x384xf32>
    %269 = vector.extract_strided_slice %5 {offsets = [56, 0], sizes = [8, 384], strides = [1, 1]} : vector<64x384xf32> to vector<8x384xf32>
    %270 = vector.extract_strided_slice %269 {offsets = [0, 0], sizes = [8, 128], strides = [1, 1]} : vector<8x384xf32> to vector<8x128xf32>
    %271 = vector.extract_strided_slice %268 {offsets = [0, 0], sizes = [8, 128], strides = [1, 1]} : vector<8x384xf32> to vector<8x128xf32>
    %272 = arith.addf %270, %271 : vector<8x128xf32>
    %273 = arith.negf %272 : vector<8x128xf32>
    %274 = math.exp %273 : vector<8x128xf32>
    %cst_52 = arith.constant 1.000000e+00 : f32
    %275 = vector.broadcast %cst_52 : f32 to vector<8x128xf32>
    %276 = arith.addf %275, %274 : vector<8x128xf32>
    %277 = arith.divf %275, %276 : vector<8x128xf32>
    %278 = vector.extract_strided_slice %269 {offsets = [0, 128], sizes = [8, 128], strides = [1, 1]} : vector<8x384xf32> to vector<8x128xf32>
    %279 = vector.extract_strided_slice %268 {offsets = [0, 128], sizes = [8, 128], strides = [1, 1]} : vector<8x384xf32> to vector<8x128xf32>
    %280 = arith.addf %278, %279 : vector<8x128xf32>
    %281 = arith.negf %280 : vector<8x128xf32>
    %282 = math.exp %281 : vector<8x128xf32>
    %cst_53 = arith.constant 1.000000e+00 : f32
    %283 = vector.broadcast %cst_53 : f32 to vector<8x128xf32>
    %284 = arith.addf %283, %282 : vector<8x128xf32>
    %285 = arith.divf %283, %284 : vector<8x128xf32>
    %286 = vector.extract_strided_slice %269 {offsets = [0, 256], sizes = [8, 128], strides = [1, 1]} : vector<8x384xf32> to vector<8x128xf32>
    %287 = vector.extract_strided_slice %268 {offsets = [0, 256], sizes = [8, 128], strides = [1, 1]} : vector<8x384xf32> to vector<8x128xf32>
    %288 = arith.mulf %277, %287 : vector<8x128xf32>
    %289 = arith.addf %286, %288 : vector<8x128xf32>
    %290 = math.tanh %289 : vector<8x128xf32>
    %cst_54 = arith.constant 1.000000e+00 : f32
    %291 = vector.broadcast %cst_54 : f32 to vector<8x128xf32>
    %292 = arith.subf %291, %285 : vector<8x128xf32>
    %293 = arith.mulf %292, %290 : vector<8x128xf32>
    %294 = arith.mulf %285, %266 : vector<8x128xf32>
    %295 = arith.addf %293, %294 : vector<8x128xf32>
    %c56 = arith.constant 56 : index
    %c0_55 = arith.constant 0 : index
    %296 = vector.load %arg0[%c56, %c0_55] : memref<64x1xf32, #tpu.memory_space<vmem>>, vector<8x1xf32>
    %297 = vector.broadcast %296 : vector<8x1xf32> to vector<8x128xf32>
    %298 = arith.mulf %297, %295 : vector<8x128xf32>
    %cst_56 = arith.constant 1.000000e+00 : f32
    %299 = vector.broadcast %cst_56 : f32 to vector<8x1xf32>
    %300 = arith.subf %299, %296 : vector<8x1xf32>
    %301 = vector.broadcast %300 : vector<8x1xf32> to vector<8x128xf32>
    %302 = arith.mulf %301, %266 : vector<8x128xf32>
    %303 = arith.addf %298, %302 : vector<8x128xf32>
    %c0_57 = arith.constant 0 : index
    %c0_58 = arith.constant 0 : index
    %304 = vector.load %arg2[%c0_57, %c0_58] : memref<64x128xbf16, #tpu.memory_space<vmem>>, vector<64x128xbf16>
    %c0_59 = arith.constant 0 : index
    %c0_60 = arith.constant 0 : index
    %305 = vector.load %arg7[%c0_59, %c0_60] : memref<128x384xbf16, #tpu.memory_space<vmem>>, vector<128x384xbf16>
    %cst_61 = arith.constant dense<0.000000e+00> : vector<64x384xf32>
    %306 = tpu.matmul %304, %305, %cst_61 {dimension_numbers = #tpu.dot_dimension_numbers<[1], [0], [0], [1], [0, 0, 1, 1], [], []>} : vector<64x128xbf16>, vector<128x384xbf16>, vector<64x384xf32> -> vector<64x384xf32>
    %c0_62 = arith.constant 0 : index
    %c0_63 = arith.constant 0 : index
    %307 = vector.load %arg9[%c0_62, %c0_63] : memref<1x384xf32, #tpu.memory_space<vmem>>, vector<1x384xf32>
    %308 = vector.broadcast %307 : vector<1x384xf32> to vector<64x384xf32>
    %309 = arith.addf %306, %308 : vector<64x384xf32>
    %c0_64 = arith.constant 0 : index
    %c0_65 = arith.constant 0 : index
    %310 = vector.load %arg3[%c0_64, %c0_65] : memref<64x128xbf16, #tpu.memory_space<vmem>>, vector<64x128xbf16>
    %c0_66 = arith.constant 0 : index
    %c0_67 = arith.constant 0 : index
    %311 = vector.load %arg10[%c0_66, %c0_67] : memref<128x384xbf16, #tpu.memory_space<vmem>>, vector<128x384xbf16>
    %cst_68 = arith.constant dense<0.000000e+00> : vector<64x384xf32>
    %312 = tpu.matmul %310, %311, %cst_68 {dimension_numbers = #tpu.dot_dimension_numbers<[1], [0], [0], [1], [0, 0, 1, 1], [], []>} : vector<64x128xbf16>, vector<128x384xbf16>, vector<64x384xf32> -> vector<64x384xf32>
    %c0_69 = arith.constant 0 : index
    %c0_70 = arith.constant 0 : index
    %313 = vector.load %arg12[%c0_69, %c0_70] : memref<1x384xf32, #tpu.memory_space<vmem>>, vector<1x384xf32>
    %314 = vector.broadcast %313 : vector<1x384xf32> to vector<64x384xf32>
    %315 = arith.addf %312, %314 : vector<64x384xf32>
    %c0_71 = arith.constant 0 : index
    %c0_72 = arith.constant 0 : index
    %316 = vector.load %arg8[%c0_71, %c0_72] : memref<128x384xbf16, #tpu.memory_space<vmem>>, vector<128x384xbf16>
    %c0_73 = arith.constant 0 : index
    %c0_74 = arith.constant 0 : index
    %317 = vector.load %arg11[%c0_73, %c0_74] : memref<128x384xbf16, #tpu.memory_space<vmem>>, vector<128x384xbf16>
    %318 = arith.truncf %303 : vector<8x128xf32> to vector<8x128xbf16>
    %cst_75 = arith.constant dense<0.000000e+00> : vector<8x384xf32>
    %319 = tpu.matmul %318, %316, %cst_75 {dimension_numbers = #tpu.dot_dimension_numbers<[1], [0], [0], [1], [0, 0, 1, 1], [], []>} : vector<8x128xbf16>, vector<128x384xbf16>, vector<8x384xf32> -> vector<8x384xf32>
    %320 = arith.truncf %303 : vector<8x128xf32> to vector<8x128xbf16>
    %cst_76 = arith.constant dense<0.000000e+00> : vector<8x384xf32>
    %321 = tpu.matmul %320, %317, %cst_76 {dimension_numbers = #tpu.dot_dimension_numbers<[1], [0], [0], [1], [0, 0, 1, 1], [], []>} : vector<8x128xbf16>, vector<128x384xbf16>, vector<8x384xf32> -> vector<8x384xf32>
    %322 = vector.extract_strided_slice %309 {offsets = [0, 0], sizes = [8, 384], strides = [1, 1]} : vector<64x384xf32> to vector<8x384xf32>
    %323 = vector.extract_strided_slice %322 {offsets = [0, 0], sizes = [8, 128], strides = [1, 1]} : vector<8x384xf32> to vector<8x128xf32>
    %324 = vector.extract_strided_slice %319 {offsets = [0, 0], sizes = [8, 128], strides = [1, 1]} : vector<8x384xf32> to vector<8x128xf32>
    %325 = arith.addf %323, %324 : vector<8x128xf32>
    %326 = arith.negf %325 : vector<8x128xf32>
    %327 = math.exp %326 : vector<8x128xf32>
    %cst_77 = arith.constant 1.000000e+00 : f32
    %328 = vector.broadcast %cst_77 : f32 to vector<8x128xf32>
    %329 = arith.addf %328, %327 : vector<8x128xf32>
    %330 = arith.divf %328, %329 : vector<8x128xf32>
    %331 = vector.extract_strided_slice %322 {offsets = [0, 128], sizes = [8, 128], strides = [1, 1]} : vector<8x384xf32> to vector<8x128xf32>
    %332 = vector.extract_strided_slice %319 {offsets = [0, 128], sizes = [8, 128], strides = [1, 1]} : vector<8x384xf32> to vector<8x128xf32>
    %333 = arith.addf %331, %332 : vector<8x128xf32>
    %334 = arith.negf %333 : vector<8x128xf32>
    %335 = math.exp %334 : vector<8x128xf32>
    %cst_78 = arith.constant 1.000000e+00 : f32
    %336 = vector.broadcast %cst_78 : f32 to vector<8x128xf32>
    %337 = arith.addf %336, %335 : vector<8x128xf32>
    %338 = arith.divf %336, %337 : vector<8x128xf32>
    %339 = vector.extract_strided_slice %322 {offsets = [0, 256], sizes = [8, 128], strides = [1, 1]} : vector<8x384xf32> to vector<8x128xf32>
    %340 = vector.extract_strided_slice %319 {offsets = [0, 256], sizes = [8, 128], strides = [1, 1]} : vector<8x384xf32> to vector<8x128xf32>
    %341 = arith.mulf %330, %340 : vector<8x128xf32>
    %342 = arith.addf %339, %341 : vector<8x128xf32>
    %343 = math.tanh %342 : vector<8x128xf32>
    %cst_79 = arith.constant 1.000000e+00 : f32
    %344 = vector.broadcast %cst_79 : f32 to vector<8x128xf32>
    %345 = arith.subf %344, %338 : vector<8x128xf32>
    %346 = arith.mulf %345, %343 : vector<8x128xf32>
    %347 = arith.mulf %338, %303 : vector<8x128xf32>
    %348 = arith.addf %346, %347 : vector<8x128xf32>
    %349 = vector.extract_strided_slice %315 {offsets = [0, 0], sizes = [8, 384], strides = [1, 1]} : vector<64x384xf32> to vector<8x384xf32>
    %350 = vector.extract_strided_slice %349 {offsets = [0, 0], sizes = [8, 128], strides = [1, 1]} : vector<8x384xf32> to vector<8x128xf32>
    %351 = vector.extract_strided_slice %321 {offsets = [0, 0], sizes = [8, 128], strides = [1, 1]} : vector<8x384xf32> to vector<8x128xf32>
    %352 = arith.addf %350, %351 : vector<8x128xf32>
    %353 = arith.negf %352 : vector<8x128xf32>
    %354 = math.exp %353 : vector<8x128xf32>
    %cst_80 = arith.constant 1.000000e+00 : f32
    %355 = vector.broadcast %cst_80 : f32 to vector<8x128xf32>
    %356 = arith.addf %355, %354 : vector<8x128xf32>
    %357 = arith.divf %355, %356 : vector<8x128xf32>
    %358 = vector.extract_strided_slice %349 {offsets = [0, 128], sizes = [8, 128], strides = [1, 1]} : vector<8x384xf32> to vector<8x128xf32>
    %359 = vector.extract_strided_slice %321 {offsets = [0, 128], sizes = [8, 128], strides = [1, 1]} : vector<8x384xf32> to vector<8x128xf32>
    %360 = arith.addf %358, %359 : vector<8x128xf32>
    %361 = arith.negf %360 : vector<8x128xf32>
    %362 = math.exp %361 : vector<8x128xf32>
    %cst_81 = arith.constant 1.000000e+00 : f32
    %363 = vector.broadcast %cst_81 : f32 to vector<8x128xf32>
    %364 = arith.addf %363, %362 : vector<8x128xf32>
    %365 = arith.divf %363, %364 : vector<8x128xf32>
    %366 = vector.extract_strided_slice %349 {offsets = [0, 256], sizes = [8, 128], strides = [1, 1]} : vector<8x384xf32> to vector<8x128xf32>
    %367 = vector.extract_strided_slice %321 {offsets = [0, 256], sizes = [8, 128], strides = [1, 1]} : vector<8x384xf32> to vector<8x128xf32>
    %368 = arith.mulf %357, %367 : vector<8x128xf32>
    %369 = arith.addf %366, %368 : vector<8x128xf32>
    %370 = math.tanh %369 : vector<8x128xf32>
    %cst_82 = arith.constant 1.000000e+00 : f32
    %371 = vector.broadcast %cst_82 : f32 to vector<8x128xf32>
    %372 = arith.subf %371, %365 : vector<8x128xf32>
    %373 = arith.mulf %372, %370 : vector<8x128xf32>
    %374 = arith.mulf %365, %303 : vector<8x128xf32>
    %375 = arith.addf %373, %374 : vector<8x128xf32>
    %c0_83 = arith.constant 0 : index
    %c0_84 = arith.constant 0 : index
    %376 = vector.load %arg19[%c0_83, %c0_84] : memref<64x128xf32, #tpu.memory_space<vmem>>, vector<8x128xf32>
    tpu.vector_store %arg19[%c0_83, %c0_84], %348 {strides = array<i32>} : memref<64x128xf32, #tpu.memory_space<vmem>>, vector<8x128xf32>,
    %c0_85 = arith.constant 0 : index
    %c0_86 = arith.constant 0 : index
    %377 = vector.load %arg20[%c0_85, %c0_86] : memref<64x128xf32, #tpu.memory_space<vmem>>, vector<8x128xf32>
    tpu.vector_store %arg20[%c0_85, %c0_86], %375 {strides = array<i32>} : memref<64x128xf32, #tpu.memory_space<vmem>>, vector<8x128xf32>,
    %378 = arith.truncf %348 : vector<8x128xf32> to vector<8x128xbf16>
    %cst_87 = arith.constant dense<0.000000e+00> : vector<8x384xf32>
    %379 = tpu.matmul %378, %316, %cst_87 {dimension_numbers = #tpu.dot_dimension_numbers<[1], [0], [0], [1], [0, 0, 1, 1], [], []>} : vector<8x128xbf16>, vector<128x384xbf16>, vector<8x384xf32> -> vector<8x384xf32>
    %380 = arith.truncf %375 : vector<8x128xf32> to vector<8x128xbf16>
    %cst_88 = arith.constant dense<0.000000e+00> : vector<8x384xf32>
    %381 = tpu.matmul %380, %317, %cst_88 {dimension_numbers = #tpu.dot_dimension_numbers<[1], [0], [0], [1], [0, 0, 1, 1], [], []>} : vector<8x128xbf16>, vector<128x384xbf16>, vector<8x384xf32> -> vector<8x384xf32>
    %382 = vector.extract_strided_slice %309 {offsets = [8, 0], sizes = [8, 384], strides = [1, 1]} : vector<64x384xf32> to vector<8x384xf32>
    %383 = vector.extract_strided_slice %382 {offsets = [0, 0], sizes = [8, 128], strides = [1, 1]} : vector<8x384xf32> to vector<8x128xf32>
    %384 = vector.extract_strided_slice %379 {offsets = [0, 0], sizes = [8, 128], strides = [1, 1]} : vector<8x384xf32> to vector<8x128xf32>
    %385 = arith.addf %383, %384 : vector<8x128xf32>
    %386 = arith.negf %385 : vector<8x128xf32>
    %387 = math.exp %386 : vector<8x128xf32>
    %cst_89 = arith.constant 1.000000e+00 : f32
    %388 = vector.broadcast %cst_89 : f32 to vector<8x128xf32>
    %389 = arith.addf %388, %387 : vector<8x128xf32>
    %390 = arith.divf %388, %389 : vector<8x128xf32>
    %391 = vector.extract_strided_slice %382 {offsets = [0, 128], sizes = [8, 128], strides = [1, 1]} : vector<8x384xf32> to vector<8x128xf32>
    %392 = vector.extract_strided_slice %379 {offsets = [0, 128], sizes = [8, 128], strides = [1, 1]} : vector<8x384xf32> to vector<8x128xf32>
    %393 = arith.addf %391, %392 : vector<8x128xf32>
    %394 = arith.negf %393 : vector<8x128xf32>
    %395 = math.exp %394 : vector<8x128xf32>
    %cst_90 = arith.constant 1.000000e+00 : f32
    %396 = vector.broadcast %cst_90 : f32 to vector<8x128xf32>
    %397 = arith.addf %396, %395 : vector<8x128xf32>
    %398 = arith.divf %396, %397 : vector<8x128xf32>
    %399 = vector.extract_strided_slice %382 {offsets = [0, 256], sizes = [8, 128], strides = [1, 1]} : vector<8x384xf32> to vector<8x128xf32>
    %400 = vector.extract_strided_slice %379 {offsets = [0, 256], sizes = [8, 128], strides = [1, 1]} : vector<8x384xf32> to vector<8x128xf32>
    %401 = arith.mulf %390, %400 : vector<8x128xf32>
    %402 = arith.addf %399, %401 : vector<8x128xf32>
    %403 = math.tanh %402 : vector<8x128xf32>
    %cst_91 = arith.constant 1.000000e+00 : f32
    %404 = vector.broadcast %cst_91 : f32 to vector<8x128xf32>
    %405 = arith.subf %404, %398 : vector<8x128xf32>
    %406 = arith.mulf %405, %403 : vector<8x128xf32>
    %407 = arith.mulf %398, %348 : vector<8x128xf32>
    %408 = arith.addf %406, %407 : vector<8x128xf32>
    %409 = vector.extract_strided_slice %315 {offsets = [8, 0], sizes = [8, 384], strides = [1, 1]} : vector<64x384xf32> to vector<8x384xf32>
    %410 = vector.extract_strided_slice %409 {offsets = [0, 0], sizes = [8, 128], strides = [1, 1]} : vector<8x384xf32> to vector<8x128xf32>
    %411 = vector.extract_strided_slice %381 {offsets = [0, 0], sizes = [8, 128], strides = [1, 1]} : vector<8x384xf32> to vector<8x128xf32>
    %412 = arith.addf %410, %411 : vector<8x128xf32>
    %413 = arith.negf %412 : vector<8x128xf32>
    %414 = math.exp %413 : vector<8x128xf32>
    %cst_92 = arith.constant 1.000000e+00 : f32
    %415 = vector.broadcast %cst_92 : f32 to vector<8x128xf32>
    %416 = arith.addf %415, %414 : vector<8x128xf32>
    %417 = arith.divf %415, %416 : vector<8x128xf32>
    %418 = vector.extract_strided_slice %409 {offsets = [0, 128], sizes = [8, 128], strides = [1, 1]} : vector<8x384xf32> to vector<8x128xf32>
    %419 = vector.extract_strided_slice %381 {offsets = [0, 128], sizes = [8, 128], strides = [1, 1]} : vector<8x384xf32> to vector<8x128xf32>
    %420 = arith.addf %418, %419 : vector<8x128xf32>
    %421 = arith.negf %420 : vector<8x128xf32>
    %422 = math.exp %421 : vector<8x128xf32>
    %cst_93 = arith.constant 1.000000e+00 : f32
    %423 = vector.broadcast %cst_93 : f32 to vector<8x128xf32>
    %424 = arith.addf %423, %422 : vector<8x128xf32>
    %425 = arith.divf %423, %424 : vector<8x128xf32>
    %426 = vector.extract_strided_slice %409 {offsets = [0, 256], sizes = [8, 128], strides = [1, 1]} : vector<8x384xf32> to vector<8x128xf32>
    %427 = vector.extract_strided_slice %381 {offsets = [0, 256], sizes = [8, 128], strides = [1, 1]} : vector<8x384xf32> to vector<8x128xf32>
    %428 = arith.mulf %417, %427 : vector<8x128xf32>
    %429 = arith.addf %426, %428 : vector<8x128xf32>
    %430 = math.tanh %429 : vector<8x128xf32>
    %cst_94 = arith.constant 1.000000e+00 : f32
    %431 = vector.broadcast %cst_94 : f32 to vector<8x128xf32>
    %432 = arith.subf %431, %425 : vector<8x128xf32>
    %433 = arith.mulf %432, %430 : vector<8x128xf32>
    %434 = arith.mulf %425, %375 : vector<8x128xf32>
    %435 = arith.addf %433, %434 : vector<8x128xf32>
    %c8_95 = arith.constant 8 : index
    %c0_96 = arith.constant 0 : index
    %436 = vector.load %arg19[%c8_95, %c0_96] : memref<64x128xf32, #tpu.memory_space<vmem>>, vector<8x128xf32>
    tpu.vector_store %arg19[%c8_95, %c0_96], %408 {strides = array<i32>} : memref<64x128xf32, #tpu.memory_space<vmem>>, vector<8x128xf32>,
    %c8_97 = arith.constant 8 : index
    %c0_98 = arith.constant 0 : index
    %437 = vector.load %arg20[%c8_97, %c0_98] : memref<64x128xf32, #tpu.memory_space<vmem>>, vector<8x128xf32>
    tpu.vector_store %arg20[%c8_97, %c0_98], %435 {strides = array<i32>} : memref<64x128xf32, #tpu.memory_space<vmem>>, vector<8x128xf32>,
    %438 = arith.truncf %408 : vector<8x128xf32> to vector<8x128xbf16>
    %cst_99 = arith.constant dense<0.000000e+00> : vector<8x384xf32>
    %439 = tpu.matmul %438, %316, %cst_99 {dimension_numbers = #tpu.dot_dimension_numbers<[1], [0], [0], [1], [0, 0, 1, 1], [], []>} : vector<8x128xbf16>, vector<128x384xbf16>, vector<8x384xf32> -> vector<8x384xf32>
    %440 = arith.truncf %435 : vector<8x128xf32> to vector<8x128xbf16>
    %cst_100 = arith.constant dense<0.000000e+00> : vector<8x384xf32>
    %441 = tpu.matmul %440, %317, %cst_100 {dimension_numbers = #tpu.dot_dimension_numbers<[1], [0], [0], [1], [0, 0, 1, 1], [], []>} : vector<8x128xbf16>, vector<128x384xbf16>, vector<8x384xf32> -> vector<8x384xf32>
    %442 = vector.extract_strided_slice %309 {offsets = [16, 0], sizes = [8, 384], strides = [1, 1]} : vector<64x384xf32> to vector<8x384xf32>
    %443 = vector.extract_strided_slice %442 {offsets = [0, 0], sizes = [8, 128], strides = [1, 1]} : vector<8x384xf32> to vector<8x128xf32>
    %444 = vector.extract_strided_slice %439 {offsets = [0, 0], sizes = [8, 128], strides = [1, 1]} : vector<8x384xf32> to vector<8x128xf32>
    %445 = arith.addf %443, %444 : vector<8x128xf32>
    %446 = arith.negf %445 : vector<8x128xf32>
    %447 = math.exp %446 : vector<8x128xf32>
    %cst_101 = arith.constant 1.000000e+00 : f32
    %448 = vector.broadcast %cst_101 : f32 to vector<8x128xf32>
    %449 = arith.addf %448, %447 : vector<8x128xf32>
    %450 = arith.divf %448, %449 : vector<8x128xf32>
    %451 = vector.extract_strided_slice %442 {offsets = [0, 128], sizes = [8, 128], strides = [1, 1]} : vector<8x384xf32> to vector<8x128xf32>
    %452 = vector.extract_strided_slice %439 {offsets = [0, 128], sizes = [8, 128], strides = [1, 1]} : vector<8x384xf32> to vector<8x128xf32>
    %453 = arith.addf %451, %452 : vector<8x128xf32>
    %454 = arith.negf %453 : vector<8x128xf32>
    %455 = math.exp %454 : vector<8x128xf32>
    %cst_102 = arith.constant 1.000000e+00 : f32
    %456 = vector.broadcast %cst_102 : f32 to vector<8x128xf32>
    %457 = arith.addf %456, %455 : vector<8x128xf32>
    %458 = arith.divf %456, %457 : vector<8x128xf32>
    %459 = vector.extract_strided_slice %442 {offsets = [0, 256], sizes = [8, 128], strides = [1, 1]} : vector<8x384xf32> to vector<8x128xf32>
    %460 = vector.extract_strided_slice %439 {offsets = [0, 256], sizes = [8, 128], strides = [1, 1]} : vector<8x384xf32> to vector<8x128xf32>
    %461 = arith.mulf %450, %460 : vector<8x128xf32>
    %462 = arith.addf %459, %461 : vector<8x128xf32>
    %463 = math.tanh %462 : vector<8x128xf32>
    %cst_103 = arith.constant 1.000000e+00 : f32
    %464 = vector.broadcast %cst_103 : f32 to vector<8x128xf32>
    %465 = arith.subf %464, %458 : vector<8x128xf32>
    %466 = arith.mulf %465, %463 : vector<8x128xf32>
    %467 = arith.mulf %458, %408 : vector<8x128xf32>
    %468 = arith.addf %466, %467 : vector<8x128xf32>
    %469 = vector.extract_strided_slice %315 {offsets = [16, 0], sizes = [8, 384], strides = [1, 1]} : vector<64x384xf32> to vector<8x384xf32>
    %470 = vector.extract_strided_slice %469 {offsets = [0, 0], sizes = [8, 128], strides = [1, 1]} : vector<8x384xf32> to vector<8x128xf32>
    %471 = vector.extract_strided_slice %441 {offsets = [0, 0], sizes = [8, 128], strides = [1, 1]} : vector<8x384xf32> to vector<8x128xf32>
    %472 = arith.addf %470, %471 : vector<8x128xf32>
    %473 = arith.negf %472 : vector<8x128xf32>
    %474 = math.exp %473 : vector<8x128xf32>
    %cst_104 = arith.constant 1.000000e+00 : f32
    %475 = vector.broadcast %cst_104 : f32 to vector<8x128xf32>
    %476 = arith.addf %475, %474 : vector<8x128xf32>
    %477 = arith.divf %475, %476 : vector<8x128xf32>
    %478 = vector.extract_strided_slice %469 {offsets = [0, 128], sizes = [8, 128], strides = [1, 1]} : vector<8x384xf32> to vector<8x128xf32>
    %479 = vector.extract_strided_slice %441 {offsets = [0, 128], sizes = [8, 128], strides = [1, 1]} : vector<8x384xf32> to vector<8x128xf32>
    %480 = arith.addf %478, %479 : vector<8x128xf32>
    %481 = arith.negf %480 : vector<8x128xf32>
    %482 = math.exp %481 : vector<8x128xf32>
    %cst_105 = arith.constant 1.000000e+00 : f32
    %483 = vector.broadcast %cst_105 : f32 to vector<8x128xf32>
    %484 = arith.addf %483, %482 : vector<8x128xf32>
    %485 = arith.divf %483, %484 : vector<8x128xf32>
    %486 = vector.extract_strided_slice %469 {offsets = [0, 256], sizes = [8, 128], strides = [1, 1]} : vector<8x384xf32> to vector<8x128xf32>
    %487 = vector.extract_strided_slice %441 {offsets = [0, 256], sizes = [8, 128], strides = [1, 1]} : vector<8x384xf32> to vector<8x128xf32>
    %488 = arith.mulf %477, %487 : vector<8x128xf32>
    %489 = arith.addf %486, %488 : vector<8x128xf32>
    %490 = math.tanh %489 : vector<8x128xf32>
    %cst_106 = arith.constant 1.000000e+00 : f32
    %491 = vector.broadcast %cst_106 : f32 to vector<8x128xf32>
    %492 = arith.subf %491, %485 : vector<8x128xf32>
    %493 = arith.mulf %492, %490 : vector<8x128xf32>
    %494 = arith.mulf %485, %435 : vector<8x128xf32>
    %495 = arith.addf %493, %494 : vector<8x128xf32>
    %c16_107 = arith.constant 16 : index
    %c0_108 = arith.constant 0 : index
    %496 = vector.load %arg19[%c16_107, %c0_108] : memref<64x128xf32, #tpu.memory_space<vmem>>, vector<8x128xf32>
    tpu.vector_store %arg19[%c16_107, %c0_108], %468 {strides = array<i32>} : memref<64x128xf32, #tpu.memory_space<vmem>>, vector<8x128xf32>,
    %c16_109 = arith.constant 16 : index
    %c0_110 = arith.constant 0 : index
    %497 = vector.load %arg20[%c16_109, %c0_110] : memref<64x128xf32, #tpu.memory_space<vmem>>, vector<8x128xf32>
    tpu.vector_store %arg20[%c16_109, %c0_110], %495 {strides = array<i32>} : memref<64x128xf32, #tpu.memory_space<vmem>>, vector<8x128xf32>,
    %498 = arith.truncf %468 : vector<8x128xf32> to vector<8x128xbf16>
    %cst_111 = arith.constant dense<0.000000e+00> : vector<8x384xf32>
    %499 = tpu.matmul %498, %316, %cst_111 {dimension_numbers = #tpu.dot_dimension_numbers<[1], [0], [0], [1], [0, 0, 1, 1], [], []>} : vector<8x128xbf16>, vector<128x384xbf16>, vector<8x384xf32> -> vector<8x384xf32>
    %500 = arith.truncf %495 : vector<8x128xf32> to vector<8x128xbf16>
    %cst_112 = arith.constant dense<0.000000e+00> : vector<8x384xf32>
    %501 = tpu.matmul %500, %317, %cst_112 {dimension_numbers = #tpu.dot_dimension_numbers<[1], [0], [0], [1], [0, 0, 1, 1], [], []>} : vector<8x128xbf16>, vector<128x384xbf16>, vector<8x384xf32> -> vector<8x384xf32>
    %502 = vector.extract_strided_slice %309 {offsets = [24, 0], sizes = [8, 384], strides = [1, 1]} : vector<64x384xf32> to vector<8x384xf32>
    %503 = vector.extract_strided_slice %502 {offsets = [0, 0], sizes = [8, 128], strides = [1, 1]} : vector<8x384xf32> to vector<8x128xf32>
    %504 = vector.extract_strided_slice %499 {offsets = [0, 0], sizes = [8, 128], strides = [1, 1]} : vector<8x384xf32> to vector<8x128xf32>
    %505 = arith.addf %503, %504 : vector<8x128xf32>
    %506 = arith.negf %505 : vector<8x128xf32>
    %507 = math.exp %506 : vector<8x128xf32>
    %cst_113 = arith.constant 1.000000e+00 : f32
    %508 = vector.broadcast %cst_113 : f32 to vector<8x128xf32>
    %509 = arith.addf %508, %507 : vector<8x128xf32>
    %510 = arith.divf %508, %509 : vector<8x128xf32>
    %511 = vector.extract_strided_slice %502 {offsets = [0, 128], sizes = [8, 128], strides = [1, 1]} : vector<8x384xf32> to vector<8x128xf32>
    %512 = vector.extract_strided_slice %499 {offsets = [0, 128], sizes = [8, 128], strides = [1, 1]} : vector<8x384xf32> to vector<8x128xf32>
    %513 = arith.addf %511, %512 : vector<8x128xf32>
    %514 = arith.negf %513 : vector<8x128xf32>
    %515 = math.exp %514 : vector<8x128xf32>
    %cst_114 = arith.constant 1.000000e+00 : f32
    %516 = vector.broadcast %cst_114 : f32 to vector<8x128xf32>
    %517 = arith.addf %516, %515 : vector<8x128xf32>
    %518 = arith.divf %516, %517 : vector<8x128xf32>
    %519 = vector.extract_strided_slice %502 {offsets = [0, 256], sizes = [8, 128], strides = [1, 1]} : vector<8x384xf32> to vector<8x128xf32>
    %520 = vector.extract_strided_slice %499 {offsets = [0, 256], sizes = [8, 128], strides = [1, 1]} : vector<8x384xf32> to vector<8x128xf32>
    %521 = arith.mulf %510, %520 : vector<8x128xf32>
    %522 = arith.addf %519, %521 : vector<8x128xf32>
    %523 = math.tanh %522 : vector<8x128xf32>
    %cst_115 = arith.constant 1.000000e+00 : f32
    %524 = vector.broadcast %cst_115 : f32 to vector<8x128xf32>
    %525 = arith.subf %524, %518 : vector<8x128xf32>
    %526 = arith.mulf %525, %523 : vector<8x128xf32>
    %527 = arith.mulf %518, %468 : vector<8x128xf32>
    %528 = arith.addf %526, %527 : vector<8x128xf32>
    %529 = vector.extract_strided_slice %315 {offsets = [24, 0], sizes = [8, 384], strides = [1, 1]} : vector<64x384xf32> to vector<8x384xf32>
    %530 = vector.extract_strided_slice %529 {offsets = [0, 0], sizes = [8, 128], strides = [1, 1]} : vector<8x384xf32> to vector<8x128xf32>
    %531 = vector.extract_strided_slice %501 {offsets = [0, 0], sizes = [8, 128], strides = [1, 1]} : vector<8x384xf32> to vector<8x128xf32>
    %532 = arith.addf %530, %531 : vector<8x128xf32>
    %533 = arith.negf %532 : vector<8x128xf32>
    %534 = math.exp %533 : vector<8x128xf32>
    %cst_116 = arith.constant 1.000000e+00 : f32
    %535 = vector.broadcast %cst_116 : f32 to vector<8x128xf32>
    %536 = arith.addf %535, %534 : vector<8x128xf32>
    %537 = arith.divf %535, %536 : vector<8x128xf32>
    %538 = vector.extract_strided_slice %529 {offsets = [0, 128], sizes = [8, 128], strides = [1, 1]} : vector<8x384xf32> to vector<8x128xf32>
    %539 = vector.extract_strided_slice %501 {offsets = [0, 128], sizes = [8, 128], strides = [1, 1]} : vector<8x384xf32> to vector<8x128xf32>
    %540 = arith.addf %538, %539 : vector<8x128xf32>
    %541 = arith.negf %540 : vector<8x128xf32>
    %542 = math.exp %541 : vector<8x128xf32>
    %cst_117 = arith.constant 1.000000e+00 : f32
    %543 = vector.broadcast %cst_117 : f32 to vector<8x128xf32>
    %544 = arith.addf %543, %542 : vector<8x128xf32>
    %545 = arith.divf %543, %544 : vector<8x128xf32>
    %546 = vector.extract_strided_slice %529 {offsets = [0, 256], sizes = [8, 128], strides = [1, 1]} : vector<8x384xf32> to vector<8x128xf32>
    %547 = vector.extract_strided_slice %501 {offsets = [0, 256], sizes = [8, 128], strides = [1, 1]} : vector<8x384xf32> to vector<8x128xf32>
    %548 = arith.mulf %537, %547 : vector<8x128xf32>
    %549 = arith.addf %546, %548 : vector<8x128xf32>
    %550 = math.tanh %549 : vector<8x128xf32>
    %cst_118 = arith.constant 1.000000e+00 : f32
    %551 = vector.broadcast %cst_118 : f32 to vector<8x128xf32>
    %552 = arith.subf %551, %545 : vector<8x128xf32>
    %553 = arith.mulf %552, %550 : vector<8x128xf32>
    %554 = arith.mulf %545, %495 : vector<8x128xf32>
    %555 = arith.addf %553, %554 : vector<8x128xf32>
    %c24_119 = arith.constant 24 : index
    %c0_120 = arith.constant 0 : index
    %556 = vector.load %arg19[%c24_119, %c0_120] : memref<64x128xf32, #tpu.memory_space<vmem>>, vector<8x128xf32>
    tpu.vector_store %arg19[%c24_119, %c0_120], %528 {strides = array<i32>} : memref<64x128xf32, #tpu.memory_space<vmem>>, vector<8x128xf32>,
    %c24_121 = arith.constant 24 : index
    %c0_122 = arith.constant 0 : index
    %557 = vector.load %arg20[%c24_121, %c0_122] : memref<64x128xf32, #tpu.memory_space<vmem>>, vector<8x128xf32>
    tpu.vector_store %arg20[%c24_121, %c0_122], %555 {strides = array<i32>} : memref<64x128xf32, #tpu.memory_space<vmem>>, vector<8x128xf32>,
    %558 = arith.truncf %528 : vector<8x128xf32> to vector<8x128xbf16>
    %cst_123 = arith.constant dense<0.000000e+00> : vector<8x384xf32>
    %559 = tpu.matmul %558, %316, %cst_123 {dimension_numbers = #tpu.dot_dimension_numbers<[1], [0], [0], [1], [0, 0, 1, 1], [], []>} : vector<8x128xbf16>, vector<128x384xbf16>, vector<8x384xf32> -> vector<8x384xf32>
    %560 = arith.truncf %555 : vector<8x128xf32> to vector<8x128xbf16>
    %cst_124 = arith.constant dense<0.000000e+00> : vector<8x384xf32>
    %561 = tpu.matmul %560, %317, %cst_124 {dimension_numbers = #tpu.dot_dimension_numbers<[1], [0], [0], [1], [0, 0, 1, 1], [], []>} : vector<8x128xbf16>, vector<128x384xbf16>, vector<8x384xf32> -> vector<8x384xf32>
    %562 = vector.extract_strided_slice %309 {offsets = [32, 0], sizes = [8, 384], strides = [1, 1]} : vector<64x384xf32> to vector<8x384xf32>
    %563 = vector.extract_strided_slice %562 {offsets = [0, 0], sizes = [8, 128], strides = [1, 1]} : vector<8x384xf32> to vector<8x128xf32>
    %564 = vector.extract_strided_slice %559 {offsets = [0, 0], sizes = [8, 128], strides = [1, 1]} : vector<8x384xf32> to vector<8x128xf32>
    %565 = arith.addf %563, %564 : vector<8x128xf32>
    %566 = arith.negf %565 : vector<8x128xf32>
    %567 = math.exp %566 : vector<8x128xf32>
    %cst_125 = arith.constant 1.000000e+00 : f32
    %568 = vector.broadcast %cst_125 : f32 to vector<8x128xf32>
    %569 = arith.addf %568, %567 : vector<8x128xf32>
    %570 = arith.divf %568, %569 : vector<8x128xf32>
    %571 = vector.extract_strided_slice %562 {offsets = [0, 128], sizes = [8, 128], strides = [1, 1]} : vector<8x384xf32> to vector<8x128xf32>
    %572 = vector.extract_strided_slice %559 {offsets = [0, 128], sizes = [8, 128], strides = [1, 1]} : vector<8x384xf32> to vector<8x128xf32>
    %573 = arith.addf %571, %572 : vector<8x128xf32>
    %574 = arith.negf %573 : vector<8x128xf32>
    %575 = math.exp %574 : vector<8x128xf32>
    %cst_126 = arith.constant 1.000000e+00 : f32
    %576 = vector.broadcast %cst_126 : f32 to vector<8x128xf32>
    %577 = arith.addf %576, %575 : vector<8x128xf32>
    %578 = arith.divf %576, %577 : vector<8x128xf32>
    %579 = vector.extract_strided_slice %562 {offsets = [0, 256], sizes = [8, 128], strides = [1, 1]} : vector<8x384xf32> to vector<8x128xf32>
    %580 = vector.extract_strided_slice %559 {offsets = [0, 256], sizes = [8, 128], strides = [1, 1]} : vector<8x384xf32> to vector<8x128xf32>
    %581 = arith.mulf %570, %580 : vector<8x128xf32>
    %582 = arith.addf %579, %581 : vector<8x128xf32>
    %583 = math.tanh %582 : vector<8x128xf32>
    %cst_127 = arith.constant 1.000000e+00 : f32
    %584 = vector.broadcast %cst_127 : f32 to vector<8x128xf32>
    %585 = arith.subf %584, %578 : vector<8x128xf32>
    %586 = arith.mulf %585, %583 : vector<8x128xf32>
    %587 = arith.mulf %578, %528 : vector<8x128xf32>
    %588 = arith.addf %586, %587 : vector<8x128xf32>
    %589 = vector.extract_strided_slice %315 {offsets = [32, 0], sizes = [8, 384], strides = [1, 1]} : vector<64x384xf32> to vector<8x384xf32>
    %590 = vector.extract_strided_slice %589 {offsets = [0, 0], sizes = [8, 128], strides = [1, 1]} : vector<8x384xf32> to vector<8x128xf32>
    %591 = vector.extract_strided_slice %561 {offsets = [0, 0], sizes = [8, 128], strides = [1, 1]} : vector<8x384xf32> to vector<8x128xf32>
    %592 = arith.addf %590, %591 : vector<8x128xf32>
    %593 = arith.negf %592 : vector<8x128xf32>
    %594 = math.exp %593 : vector<8x128xf32>
    %cst_128 = arith.constant 1.000000e+00 : f32
    %595 = vector.broadcast %cst_128 : f32 to vector<8x128xf32>
    %596 = arith.addf %595, %594 : vector<8x128xf32>
    %597 = arith.divf %595, %596 : vector<8x128xf32>
    %598 = vector.extract_strided_slice %589 {offsets = [0, 128], sizes = [8, 128], strides = [1, 1]} : vector<8x384xf32> to vector<8x128xf32>
    %599 = vector.extract_strided_slice %561 {offsets = [0, 128], sizes = [8, 128], strides = [1, 1]} : vector<8x384xf32> to vector<8x128xf32>
    %600 = arith.addf %598, %599 : vector<8x128xf32>
    %601 = arith.negf %600 : vector<8x128xf32>
    %602 = math.exp %601 : vector<8x128xf32>
    %cst_129 = arith.constant 1.000000e+00 : f32
    %603 = vector.broadcast %cst_129 : f32 to vector<8x128xf32>
    %604 = arith.addf %603, %602 : vector<8x128xf32>
    %605 = arith.divf %603, %604 : vector<8x128xf32>
    %606 = vector.extract_strided_slice %589 {offsets = [0, 256], sizes = [8, 128], strides = [1, 1]} : vector<8x384xf32> to vector<8x128xf32>
    %607 = vector.extract_strided_slice %561 {offsets = [0, 256], sizes = [8, 128], strides = [1, 1]} : vector<8x384xf32> to vector<8x128xf32>
    %608 = arith.mulf %597, %607 : vector<8x128xf32>
    %609 = arith.addf %606, %608 : vector<8x128xf32>
    %610 = math.tanh %609 : vector<8x128xf32>
    %cst_130 = arith.constant 1.000000e+00 : f32
    %611 = vector.broadcast %cst_130 : f32 to vector<8x128xf32>
    %612 = arith.subf %611, %605 : vector<8x128xf32>
    %613 = arith.mulf %612, %610 : vector<8x128xf32>
    %614 = arith.mulf %605, %555 : vector<8x128xf32>
    %615 = arith.addf %613, %614 : vector<8x128xf32>
    %c32_131 = arith.constant 32 : index
    %c0_132 = arith.constant 0 : index
    %616 = vector.load %arg19[%c32_131, %c0_132] : memref<64x128xf32, #tpu.memory_space<vmem>>, vector<8x128xf32>
    tpu.vector_store %arg19[%c32_131, %c0_132], %588 {strides = array<i32>} : memref<64x128xf32, #tpu.memory_space<vmem>>, vector<8x128xf32>,
    %c32_133 = arith.constant 32 : index
    %c0_134 = arith.constant 0 : index
    %617 = vector.load %arg20[%c32_133, %c0_134] : memref<64x128xf32, #tpu.memory_space<vmem>>, vector<8x128xf32>
    tpu.vector_store %arg20[%c32_133, %c0_134], %615 {strides = array<i32>} : memref<64x128xf32, #tpu.memory_space<vmem>>, vector<8x128xf32>,
    %618 = arith.truncf %588 : vector<8x128xf32> to vector<8x128xbf16>
    %cst_135 = arith.constant dense<0.000000e+00> : vector<8x384xf32>
    %619 = tpu.matmul %618, %316, %cst_135 {dimension_numbers = #tpu.dot_dimension_numbers<[1], [0], [0], [1], [0, 0, 1, 1], [], []>} : vector<8x128xbf16>, vector<128x384xbf16>, vector<8x384xf32> -> vector<8x384xf32>
    %620 = arith.truncf %615 : vector<8x128xf32> to vector<8x128xbf16>
    %cst_136 = arith.constant dense<0.000000e+00> : vector<8x384xf32>
    %621 = tpu.matmul %620, %317, %cst_136 {dimension_numbers = #tpu.dot_dimension_numbers<[1], [0], [0], [1], [0, 0, 1, 1], [], []>} : vector<8x128xbf16>, vector<128x384xbf16>, vector<8x384xf32> -> vector<8x384xf32>
    %622 = vector.extract_strided_slice %309 {offsets = [40, 0], sizes = [8, 384], strides = [1, 1]} : vector<64x384xf32> to vector<8x384xf32>
    %623 = vector.extract_strided_slice %622 {offsets = [0, 0], sizes = [8, 128], strides = [1, 1]} : vector<8x384xf32> to vector<8x128xf32>
    %624 = vector.extract_strided_slice %619 {offsets = [0, 0], sizes = [8, 128], strides = [1, 1]} : vector<8x384xf32> to vector<8x128xf32>
    %625 = arith.addf %623, %624 : vector<8x128xf32>
    %626 = arith.negf %625 : vector<8x128xf32>
    %627 = math.exp %626 : vector<8x128xf32>
    %cst_137 = arith.constant 1.000000e+00 : f32
    %628 = vector.broadcast %cst_137 : f32 to vector<8x128xf32>
    %629 = arith.addf %628, %627 : vector<8x128xf32>
    %630 = arith.divf %628, %629 : vector<8x128xf32>
    %631 = vector.extract_strided_slice %622 {offsets = [0, 128], sizes = [8, 128], strides = [1, 1]} : vector<8x384xf32> to vector<8x128xf32>
    %632 = vector.extract_strided_slice %619 {offsets = [0, 128], sizes = [8, 128], strides = [1, 1]} : vector<8x384xf32> to vector<8x128xf32>
    %633 = arith.addf %631, %632 : vector<8x128xf32>
    %634 = arith.negf %633 : vector<8x128xf32>
    %635 = math.exp %634 : vector<8x128xf32>
    %cst_138 = arith.constant 1.000000e+00 : f32
    %636 = vector.broadcast %cst_138 : f32 to vector<8x128xf32>
    %637 = arith.addf %636, %635 : vector<8x128xf32>
    %638 = arith.divf %636, %637 : vector<8x128xf32>
    %639 = vector.extract_strided_slice %622 {offsets = [0, 256], sizes = [8, 128], strides = [1, 1]} : vector<8x384xf32> to vector<8x128xf32>
    %640 = vector.extract_strided_slice %619 {offsets = [0, 256], sizes = [8, 128], strides = [1, 1]} : vector<8x384xf32> to vector<8x128xf32>
    %641 = arith.mulf %630, %640 : vector<8x128xf32>
    %642 = arith.addf %639, %641 : vector<8x128xf32>
    %643 = math.tanh %642 : vector<8x128xf32>
    %cst_139 = arith.constant 1.000000e+00 : f32
    %644 = vector.broadcast %cst_139 : f32 to vector<8x128xf32>
    %645 = arith.subf %644, %638 : vector<8x128xf32>
    %646 = arith.mulf %645, %643 : vector<8x128xf32>
    %647 = arith.mulf %638, %588 : vector<8x128xf32>
    %648 = arith.addf %646, %647 : vector<8x128xf32>
    %649 = vector.extract_strided_slice %315 {offsets = [40, 0], sizes = [8, 384], strides = [1, 1]} : vector<64x384xf32> to vector<8x384xf32>
    %650 = vector.extract_strided_slice %649 {offsets = [0, 0], sizes = [8, 128], strides = [1, 1]} : vector<8x384xf32> to vector<8x128xf32>
    %651 = vector.extract_strided_slice %621 {offsets = [0, 0], sizes = [8, 128], strides = [1, 1]} : vector<8x384xf32> to vector<8x128xf32>
    %652 = arith.addf %650, %651 : vector<8x128xf32>
    %653 = arith.negf %652 : vector<8x128xf32>
    %654 = math.exp %653 : vector<8x128xf32>
    %cst_140 = arith.constant 1.000000e+00 : f32
    %655 = vector.broadcast %cst_140 : f32 to vector<8x128xf32>
    %656 = arith.addf %655, %654 : vector<8x128xf32>
    %657 = arith.divf %655, %656 : vector<8x128xf32>
    %658 = vector.extract_strided_slice %649 {offsets = [0, 128], sizes = [8, 128], strides = [1, 1]} : vector<8x384xf32> to vector<8x128xf32>
    %659 = vector.extract_strided_slice %621 {offsets = [0, 128], sizes = [8, 128], strides = [1, 1]} : vector<8x384xf32> to vector<8x128xf32>
    %660 = arith.addf %658, %659 : vector<8x128xf32>
    %661 = arith.negf %660 : vector<8x128xf32>
    %662 = math.exp %661 : vector<8x128xf32>
    %cst_141 = arith.constant 1.000000e+00 : f32
    %663 = vector.broadcast %cst_141 : f32 to vector<8x128xf32>
    %664 = arith.addf %663, %662 : vector<8x128xf32>
    %665 = arith.divf %663, %664 : vector<8x128xf32>
    %666 = vector.extract_strided_slice %649 {offsets = [0, 256], sizes = [8, 128], strides = [1, 1]} : vector<8x384xf32> to vector<8x128xf32>
    %667 = vector.extract_strided_slice %621 {offsets = [0, 256], sizes = [8, 128], strides = [1, 1]} : vector<8x384xf32> to vector<8x128xf32>
    %668 = arith.mulf %657, %667 : vector<8x128xf32>
    %669 = arith.addf %666, %668 : vector<8x128xf32>
    %670 = math.tanh %669 : vector<8x128xf32>
    %cst_142 = arith.constant 1.000000e+00 : f32
    %671 = vector.broadcast %cst_142 : f32 to vector<8x128xf32>
    %672 = arith.subf %671, %665 : vector<8x128xf32>
    %673 = arith.mulf %672, %670 : vector<8x128xf32>
    %674 = arith.mulf %665, %615 : vector<8x128xf32>
    %675 = arith.addf %673, %674 : vector<8x128xf32>
    %c40_143 = arith.constant 40 : index
    %c0_144 = arith.constant 0 : index
    %676 = vector.load %arg19[%c40_143, %c0_144] : memref<64x128xf32, #tpu.memory_space<vmem>>, vector<8x128xf32>
    tpu.vector_store %arg19[%c40_143, %c0_144], %648 {strides = array<i32>} : memref<64x128xf32, #tpu.memory_space<vmem>>, vector<8x128xf32>,
    %c40_145 = arith.constant 40 : index
    %c0_146 = arith.constant 0 : index
    %677 = vector.load %arg20[%c40_145, %c0_146] : memref<64x128xf32, #tpu.memory_space<vmem>>, vector<8x128xf32>
    tpu.vector_store %arg20[%c40_145, %c0_146], %675 {strides = array<i32>} : memref<64x128xf32, #tpu.memory_space<vmem>>, vector<8x128xf32>,
    %678 = arith.truncf %648 : vector<8x128xf32> to vector<8x128xbf16>
    %cst_147 = arith.constant dense<0.000000e+00> : vector<8x384xf32>
    %679 = tpu.matmul %678, %316, %cst_147 {dimension_numbers = #tpu.dot_dimension_numbers<[1], [0], [0], [1], [0, 0, 1, 1], [], []>} : vector<8x128xbf16>, vector<128x384xbf16>, vector<8x384xf32> -> vector<8x384xf32>
    %680 = arith.truncf %675 : vector<8x128xf32> to vector<8x128xbf16>
    %cst_148 = arith.constant dense<0.000000e+00> : vector<8x384xf32>
    %681 = tpu.matmul %680, %317, %cst_148 {dimension_numbers = #tpu.dot_dimension_numbers<[1], [0], [0], [1], [0, 0, 1, 1], [], []>} : vector<8x128xbf16>, vector<128x384xbf16>, vector<8x384xf32> -> vector<8x384xf32>
    %682 = vector.extract_strided_slice %309 {offsets = [48, 0], sizes = [8, 384], strides = [1, 1]} : vector<64x384xf32> to vector<8x384xf32>
    %683 = vector.extract_strided_slice %682 {offsets = [0, 0], sizes = [8, 128], strides = [1, 1]} : vector<8x384xf32> to vector<8x128xf32>
    %684 = vector.extract_strided_slice %679 {offsets = [0, 0], sizes = [8, 128], strides = [1, 1]} : vector<8x384xf32> to vector<8x128xf32>
    %685 = arith.addf %683, %684 : vector<8x128xf32>
    %686 = arith.negf %685 : vector<8x128xf32>
    %687 = math.exp %686 : vector<8x128xf32>
    %cst_149 = arith.constant 1.000000e+00 : f32
    %688 = vector.broadcast %cst_149 : f32 to vector<8x128xf32>
    %689 = arith.addf %688, %687 : vector<8x128xf32>
    %690 = arith.divf %688, %689 : vector<8x128xf32>
    %691 = vector.extract_strided_slice %682 {offsets = [0, 128], sizes = [8, 128], strides = [1, 1]} : vector<8x384xf32> to vector<8x128xf32>
    %692 = vector.extract_strided_slice %679 {offsets = [0, 128], sizes = [8, 128], strides = [1, 1]} : vector<8x384xf32> to vector<8x128xf32>
    %693 = arith.addf %691, %692 : vector<8x128xf32>
    %694 = arith.negf %693 : vector<8x128xf32>
    %695 = math.exp %694 : vector<8x128xf32>
    %cst_150 = arith.constant 1.000000e+00 : f32
    %696 = vector.broadcast %cst_150 : f32 to vector<8x128xf32>
    %697 = arith.addf %696, %695 : vector<8x128xf32>
    %698 = arith.divf %696, %697 : vector<8x128xf32>
    %699 = vector.extract_strided_slice %682 {offsets = [0, 256], sizes = [8, 128], strides = [1, 1]} : vector<8x384xf32> to vector<8x128xf32>
    %700 = vector.extract_strided_slice %679 {offsets = [0, 256], sizes = [8, 128], strides = [1, 1]} : vector<8x384xf32> to vector<8x128xf32>
    %701 = arith.mulf %690, %700 : vector<8x128xf32>
    %702 = arith.addf %699, %701 : vector<8x128xf32>
    %703 = math.tanh %702 : vector<8x128xf32>
    %cst_151 = arith.constant 1.000000e+00 : f32
    %704 = vector.broadcast %cst_151 : f32 to vector<8x128xf32>
    %705 = arith.subf %704, %698 : vector<8x128xf32>
    %706 = arith.mulf %705, %703 : vector<8x128xf32>
    %707 = arith.mulf %698, %648 : vector<8x128xf32>
    %708 = arith.addf %706, %707 : vector<8x128xf32>
    %709 = vector.extract_strided_slice %315 {offsets = [48, 0], sizes = [8, 384], strides = [1, 1]} : vector<64x384xf32> to vector<8x384xf32>
    %710 = vector.extract_strided_slice %709 {offsets = [0, 0], sizes = [8, 128], strides = [1, 1]} : vector<8x384xf32> to vector<8x128xf32>
    %711 = vector.extract_strided_slice %681 {offsets = [0, 0], sizes = [8, 128], strides = [1, 1]} : vector<8x384xf32> to vector<8x128xf32>
    %712 = arith.addf %710, %711 : vector<8x128xf32>
    %713 = arith.negf %712 : vector<8x128xf32>
    %714 = math.exp %713 : vector<8x128xf32>
    %cst_152 = arith.constant 1.000000e+00 : f32
    %715 = vector.broadcast %cst_152 : f32 to vector<8x128xf32>
    %716 = arith.addf %715, %714 : vector<8x128xf32>
    %717 = arith.divf %715, %716 : vector<8x128xf32>
    %718 = vector.extract_strided_slice %709 {offsets = [0, 128], sizes = [8, 128], strides = [1, 1]} : vector<8x384xf32> to vector<8x128xf32>
    %719 = vector.extract_strided_slice %681 {offsets = [0, 128], sizes = [8, 128], strides = [1, 1]} : vector<8x384xf32> to vector<8x128xf32>
    %720 = arith.addf %718, %719 : vector<8x128xf32>
    %721 = arith.negf %720 : vector<8x128xf32>
    %722 = math.exp %721 : vector<8x128xf32>
    %cst_153 = arith.constant 1.000000e+00 : f32
    %723 = vector.broadcast %cst_153 : f32 to vector<8x128xf32>
    %724 = arith.addf %723, %722 : vector<8x128xf32>
    %725 = arith.divf %723, %724 : vector<8x128xf32>
    %726 = vector.extract_strided_slice %709 {offsets = [0, 256], sizes = [8, 128], strides = [1, 1]} : vector<8x384xf32> to vector<8x128xf32>
    %727 = vector.extract_strided_slice %681 {offsets = [0, 256], sizes = [8, 128], strides = [1, 1]} : vector<8x384xf32> to vector<8x128xf32>
    %728 = arith.mulf %717, %727 : vector<8x128xf32>
    %729 = arith.addf %726, %728 : vector<8x128xf32>
    %730 = math.tanh %729 : vector<8x128xf32>
    %cst_154 = arith.constant 1.000000e+00 : f32
    %731 = vector.broadcast %cst_154 : f32 to vector<8x128xf32>
    %732 = arith.subf %731, %725 : vector<8x128xf32>
    %733 = arith.mulf %732, %730 : vector<8x128xf32>
    %734 = arith.mulf %725, %675 : vector<8x128xf32>
    %735 = arith.addf %733, %734 : vector<8x128xf32>
    %c48_155 = arith.constant 48 : index
    %c0_156 = arith.constant 0 : index
    %736 = vector.load %arg19[%c48_155, %c0_156] : memref<64x128xf32, #tpu.memory_space<vmem>>, vector<8x128xf32>
    tpu.vector_store %arg19[%c48_155, %c0_156], %708 {strides = array<i32>} : memref<64x128xf32, #tpu.memory_space<vmem>>, vector<8x128xf32>,
    %c48_157 = arith.constant 48 : index
    %c0_158 = arith.constant 0 : index
    %737 = vector.load %arg20[%c48_157, %c0_158] : memref<64x128xf32, #tpu.memory_space<vmem>>, vector<8x128xf32>
    tpu.vector_store %arg20[%c48_157, %c0_158], %735 {strides = array<i32>} : memref<64x128xf32, #tpu.memory_space<vmem>>, vector<8x128xf32>,
    %738 = arith.truncf %708 : vector<8x128xf32> to vector<8x128xbf16>
    %cst_159 = arith.constant dense<0.000000e+00> : vector<8x384xf32>
    %739 = tpu.matmul %738, %316, %cst_159 {dimension_numbers = #tpu.dot_dimension_numbers<[1], [0], [0], [1], [0, 0, 1, 1], [], []>} : vector<8x128xbf16>, vector<128x384xbf16>, vector<8x384xf32> -> vector<8x384xf32>
    %740 = arith.truncf %735 : vector<8x128xf32> to vector<8x128xbf16>
    %cst_160 = arith.constant dense<0.000000e+00> : vector<8x384xf32>
    %741 = tpu.matmul %740, %317, %cst_160 {dimension_numbers = #tpu.dot_dimension_numbers<[1], [0], [0], [1], [0, 0, 1, 1], [], []>} : vector<8x128xbf16>, vector<128x384xbf16>, vector<8x384xf32> -> vector<8x384xf32>
    %742 = vector.extract_strided_slice %309 {offsets = [56, 0], sizes = [8, 384], strides = [1, 1]} : vector<64x384xf32> to vector<8x384xf32>
    %743 = vector.extract_strided_slice %742 {offsets = [0, 0], sizes = [8, 128], strides = [1, 1]} : vector<8x384xf32> to vector<8x128xf32>
    %744 = vector.extract_strided_slice %739 {offsets = [0, 0], sizes = [8, 128], strides = [1, 1]} : vector<8x384xf32> to vector<8x128xf32>
    %745 = arith.addf %743, %744 : vector<8x128xf32>
    %746 = arith.negf %745 : vector<8x128xf32>
    %747 = math.exp %746 : vector<8x128xf32>
    %cst_161 = arith.constant 1.000000e+00 : f32
    %748 = vector.broadcast %cst_161 : f32 to vector<8x128xf32>
    %749 = arith.addf %748, %747 : vector<8x128xf32>
    %750 = arith.divf %748, %749 : vector<8x128xf32>
    %751 = vector.extract_strided_slice %742 {offsets = [0, 128], sizes = [8, 128], strides = [1, 1]} : vector<8x384xf32> to vector<8x128xf32>
    %752 = vector.extract_strided_slice %739 {offsets = [0, 128], sizes = [8, 128], strides = [1, 1]} : vector<8x384xf32> to vector<8x128xf32>
    %753 = arith.addf %751, %752 : vector<8x128xf32>
    %754 = arith.negf %753 : vector<8x128xf32>
    %755 = math.exp %754 : vector<8x128xf32>
    %cst_162 = arith.constant 1.000000e+00 : f32
    %756 = vector.broadcast %cst_162 : f32 to vector<8x128xf32>
    %757 = arith.addf %756, %755 : vector<8x128xf32>
    %758 = arith.divf %756, %757 : vector<8x128xf32>
    %759 = vector.extract_strided_slice %742 {offsets = [0, 256], sizes = [8, 128], strides = [1, 1]} : vector<8x384xf32> to vector<8x128xf32>
    %760 = vector.extract_strided_slice %739 {offsets = [0, 256], sizes = [8, 128], strides = [1, 1]} : vector<8x384xf32> to vector<8x128xf32>
    %761 = arith.mulf %750, %760 : vector<8x128xf32>
    %762 = arith.addf %759, %761 : vector<8x128xf32>
    %763 = math.tanh %762 : vector<8x128xf32>
    %cst_163 = arith.constant 1.000000e+00 : f32
    %764 = vector.broadcast %cst_163 : f32 to vector<8x128xf32>
    %765 = arith.subf %764, %758 : vector<8x128xf32>
    %766 = arith.mulf %765, %763 : vector<8x128xf32>
    %767 = arith.mulf %758, %708 : vector<8x128xf32>
    %768 = arith.addf %766, %767 : vector<8x128xf32>
    %769 = vector.extract_strided_slice %315 {offsets = [56, 0], sizes = [8, 384], strides = [1, 1]} : vector<64x384xf32> to vector<8x384xf32>
    %770 = vector.extract_strided_slice %769 {offsets = [0, 0], sizes = [8, 128], strides = [1, 1]} : vector<8x384xf32> to vector<8x128xf32>
    %771 = vector.extract_strided_slice %741 {offsets = [0, 0], sizes = [8, 128], strides = [1, 1]} : vector<8x384xf32> to vector<8x128xf32>
    %772 = arith.addf %770, %771 : vector<8x128xf32>
    %773 = arith.negf %772 : vector<8x128xf32>
    %774 = math.exp %773 : vector<8x128xf32>
    %cst_164 = arith.constant 1.000000e+00 : f32
    %775 = vector.broadcast %cst_164 : f32 to vector<8x128xf32>
    %776 = arith.addf %775, %774 : vector<8x128xf32>
    %777 = arith.divf %775, %776 : vector<8x128xf32>
    %778 = vector.extract_strided_slice %769 {offsets = [0, 128], sizes = [8, 128], strides = [1, 1]} : vector<8x384xf32> to vector<8x128xf32>
    %779 = vector.extract_strided_slice %741 {offsets = [0, 128], sizes = [8, 128], strides = [1, 1]} : vector<8x384xf32> to vector<8x128xf32>
    %780 = arith.addf %778, %779 : vector<8x128xf32>
    %781 = arith.negf %780 : vector<8x128xf32>
    %782 = math.exp %781 : vector<8x128xf32>
    %cst_165 = arith.constant 1.000000e+00 : f32
    %783 = vector.broadcast %cst_165 : f32 to vector<8x128xf32>
    %784 = arith.addf %783, %782 : vector<8x128xf32>
    %785 = arith.divf %783, %784 : vector<8x128xf32>
    %786 = vector.extract_strided_slice %769 {offsets = [0, 256], sizes = [8, 128], strides = [1, 1]} : vector<8x384xf32> to vector<8x128xf32>
    %787 = vector.extract_strided_slice %741 {offsets = [0, 256], sizes = [8, 128], strides = [1, 1]} : vector<8x384xf32> to vector<8x128xf32>
    %788 = arith.mulf %777, %787 : vector<8x128xf32>
    %789 = arith.addf %786, %788 : vector<8x128xf32>
    %790 = math.tanh %789 : vector<8x128xf32>
    %cst_166 = arith.constant 1.000000e+00 : f32
    %791 = vector.broadcast %cst_166 : f32 to vector<8x128xf32>
    %792 = arith.subf %791, %785 : vector<8x128xf32>
    %793 = arith.mulf %792, %790 : vector<8x128xf32>
    %794 = arith.mulf %785, %735 : vector<8x128xf32>
    %795 = arith.addf %793, %794 : vector<8x128xf32>
    %c56_167 = arith.constant 56 : index
    %c0_168 = arith.constant 0 : index
    %796 = vector.load %arg19[%c56_167, %c0_168] : memref<64x128xf32, #tpu.memory_space<vmem>>, vector<8x128xf32>
    tpu.vector_store %arg19[%c56_167, %c0_168], %768 {strides = array<i32>} : memref<64x128xf32, #tpu.memory_space<vmem>>, vector<8x128xf32>,
    %c56_169 = arith.constant 56 : index
    %c0_170 = arith.constant 0 : index
    %797 = vector.load %arg20[%c56_169, %c0_170] : memref<64x128xf32, #tpu.memory_space<vmem>>, vector<8x128xf32>
    tpu.vector_store %arg20[%c56_169, %c0_170], %795 {strides = array<i32>} : memref<64x128xf32, #tpu.memory_space<vmem>>, vector<8x128xf32>,
    %c0_171 = arith.constant 0 : index
    %c0_172 = arith.constant 0 : index
    %798 = vector.load %arg19[%c0_171, %c0_172] : memref<64x128xf32, #tpu.memory_space<vmem>>, vector<64x128xf32>
    %799 = arith.truncf %798 : vector<64x128xf32> to vector<64x128xbf16>
    %c0_173 = arith.constant 0 : index
    %c0_174 = arith.constant 0 : index
    %800 = vector.load %arg13[%c0_173, %c0_174] : memref<128x256xbf16, #tpu.memory_space<vmem>>, vector<128x256xbf16>
    %cst_175 = arith.constant dense<0.000000e+00> : vector<64x256xf32>
    %801 = tpu.matmul %799, %800, %cst_175 {dimension_numbers = #tpu.dot_dimension_numbers<[1], [0], [0], [1], [0, 0, 1, 1], [], []>} : vector<64x128xbf16>, vector<128x256xbf16>, vector<64x256xf32> -> vector<64x256xf32>
    %c0_176 = arith.constant 0 : index
    %c0_177 = arith.constant 0 : index
    %802 = vector.load %arg14[%c0_176, %c0_177] : memref<1x256xf32, #tpu.memory_space<vmem>>, vector<1x256xf32>
    %803 = vector.broadcast %802 : vector<1x256xf32> to vector<64x256xf32>
    %804 = arith.addf %801, %803 : vector<64x256xf32>
    %c0_178 = arith.constant 0 : index
    %c0_179 = arith.constant 0 : index
    %805 = vector.load %arg17[%c0_178, %c0_179] : memref<64x256xf32, #tpu.memory_space<vmem>>, vector<64x256xf32>
    tpu.vector_store %arg17[%c0_178, %c0_179], %804 {strides = array<i32>} : memref<64x256xf32, #tpu.memory_space<vmem>>, vector<64x256xf32>,
    %c0_180 = arith.constant 0 : index
    %c0_181 = arith.constant 0 : index
    %806 = vector.load %arg20[%c0_180, %c0_181] : memref<64x128xf32, #tpu.memory_space<vmem>>, vector<64x128xf32>
    %807 = arith.truncf %806 : vector<64x128xf32> to vector<64x128xbf16>
    %c0_182 = arith.constant 0 : index
    %c0_183 = arith.constant 0 : index
    %808 = vector.load %arg15[%c0_182, %c0_183] : memref<128x256xbf16, #tpu.memory_space<vmem>>, vector<128x256xbf16>
    %cst_184 = arith.constant dense<0.000000e+00> : vector<64x256xf32>
    %809 = tpu.matmul %807, %808, %cst_184 {dimension_numbers = #tpu.dot_dimension_numbers<[1], [0], [0], [1], [0, 0, 1, 1], [], []>} : vector<64x128xbf16>, vector<128x256xbf16>, vector<64x256xf32> -> vector<64x256xf32>
    %c0_185 = arith.constant 0 : index
    %c0_186 = arith.constant 0 : index
    %810 = vector.load %arg16[%c0_185, %c0_186] : memref<1x256xf32, #tpu.memory_space<vmem>>, vector<1x256xf32>
    %811 = vector.broadcast %810 : vector<1x256xf32> to vector<64x256xf32>
    %812 = arith.addf %809, %811 : vector<64x256xf32>
    %c0_187 = arith.constant 0 : index
    %c0_188 = arith.constant 0 : index
    %813 = vector.load %arg18[%c0_187, %c0_188] : memref<64x256xf32, #tpu.memory_space<vmem>>, vector<64x256xf32>
    tpu.vector_store %arg18[%c0_187, %c0_188], %812 {strides = array<i32>} : memref<64x256xf32, #tpu.memory_space<vmem>>, vector<64x256xf32>,
    return
  }
}

</mosaic_0001>

<llo_original>
// kernel: uniskip_forward.1
$region0: #{uniskip_forward.1}
  #allocation0 [shape = 'u32[]', space=smem, size = 0x4, offset = 0x4, fixed_abs, tag = 'smem constant byte address 0x4 - core index']
  #allocation1 [shape = 'u32[144,128]{1,0:T(1,128)}', space=vmem, size = 0x12000, scoped, tag = 'internal scratch']
  #allocation2 [shape = 'f32[64,128]{1,0:T(8,128)}', space=vmem, size = 0x8000, scoped, tag = 'scratch operand']
  #allocation3 [shape = 'f32[64,128]{1,0:T(8,128)}', space=vmem, size = 0x8000, scoped, tag = 'scratch operand']
  %s0 = inlined_call_operand.vmem [shape: f32[64,1], index: 0, kind: input, shape index: {}]
  %s1 = inlined_call_operand.vmem [shape: bf16[64,128], index: 1, kind: input, shape index: {}]
  %s2 = inlined_call_operand.vmem [shape: bf16[64,128], index: 2, kind: input, shape index: {}]
  %s3 = inlined_call_operand.vmem [shape: bf16[64,128], index: 3, kind: input, shape index: {}]
  %s4 = inlined_call_operand.vmem [shape: bf16[128,384], index: 4, kind: input, shape index: {}]
  %s5 = inlined_call_operand.vmem [shape: bf16[128,384], index: 5, kind: input, shape index: {}]
  %s6 = inlined_call_operand.vmem [shape: f32[1,384], index: 6, kind: input, shape index: {}]
  %s7 = inlined_call_operand.vmem [shape: bf16[128,384], index: 7, kind: input, shape index: {}]
  %s8 = inlined_call_operand.vmem [shape: bf16[128,384], index: 8, kind: input, shape index: {}]
  %s9 = inlined_call_operand.vmem [shape: f32[1,384], index: 9, kind: input, shape index: {}]
  %s10 = inlined_call_operand.vmem [shape: bf16[128,384], index: 10, kind: input, shape index: {}]
  %s11 = inlined_call_operand.vmem [shape: bf16[128,384], index: 11, kind: input, shape index: {}]
  %s12 = inlined_call_operand.vmem [shape: f32[1,384], index: 12, kind: input, shape index: {}]
  %s13 = inlined_call_operand.vmem [shape: bf16[128,256], index: 13, kind: input, shape index: {}]
  %s14 = inlined_call_operand.vmem [shape: f32[1,256], index: 14, kind: input, shape index: {}]
  %s15 = inlined_call_operand.vmem [shape: bf16[128,256], index: 15, kind: input, shape index: {}]
  %s16 = inlined_call_operand.vmem [shape: f32[1,256], index: 16, kind: input, shape index: {}]
  %s17 = inlined_call_operand.vmem [shape: f32[64,256], index: 17, kind: output, shape index: {0}]
  %s18 = inlined_call_operand.vmem [shape: f32[64,256], index: 18, kind: output, shape index: {1}]
  %19 = xla_tuple %s17, %s18
  %s20 = sld [smem:[#allocation0]]
  $region86: #{uniskip_forward.1} parent=0
    _
  %s22 = ssub.s32 1, %s20
  %s23 = scalar_select 0, %s22, %s20
  // Predicated region
  $region2: #{uniskip_forward.1} parent=0 // pred_check
    _
  $region3: #{uniskip_forward.1} parent=0 // pred_check_branch
    %25 = sbr.rel (0) target = $region5
  $region4: #{uniskip_forward.1} parent=0 // pred_region
    _
  $region5: #{uniskip_forward.1} parent=0 // pred_fallthru
    _
  // Predicated region
  $region6: #{uniskip_forward.1} parent=0 // pred_check
    _
  $region7: #{uniskip_forward.1} parent=0 // pred_check_branch
    %27 = sbr.rel (0) target = $region9
  $region8: #{uniskip_forward.1} parent=0 // pred_region
    _
  $region9: #{uniskip_forward.1} parent=0 // pred_fallthru
    _
  // Predicated region
  $region10: #{uniskip_forward.1} parent=0 // pred_check
    _
  $region11: #{uniskip_forward.1} parent=0 // pred_check_branch
    %29 = sbr.rel (0) target = $region13
  $region12: #{uniskip_forward.1} parent=0 // pred_region
    _
  $region13: #{uniskip_forward.1} parent=0 // pred_fallthru
    _
  // Predicated region
  $region14: #{uniskip_forward.1} parent=0 // pred_check
    _
  $region15: #{uniskip_forward.1} parent=0 // pred_check_branch
    %31 = sbr.rel (0) target = $region17
  $region16: #{uniskip_forward.1} parent=0 // pred_region
    _
  $region17: #{uniskip_forward.1} parent=0 // pred_fallthru
    _
  // Predicated region
  $region18: #{uniskip_forward.1} parent=0 // pred_check
    _
  $region19: #{uniskip_forward.1} parent=0 // pred_check_branch
    %33 = sbr.rel (0) target = $region21
  $region20: #{uniskip_forward.1} parent=0 // pred_region
    _
  $region21: #{uniskip_forward.1} parent=0 // pred_fallthru
    _
  // Predicated region
  $region22: #{uniskip_forward.1} parent=0 // pred_check
    _
  $region23: #{uniskip_forward.1} parent=0 // pred_check_branch
    %35 = sbr.rel (0) target = $region25
  $region24: #{uniskip_forward.1} parent=0 // pred_region
    _
  $region25: #{uniskip_forward.1} parent=0 // pred_fallthru
    _
  // Predicated region
  $region26: #{uniskip_forward.1} parent=0 // pred_check
    _
  $region27: #{uniskip_forward.1} parent=0 // pred_check_branch
    %37 = sbr.rel (0) target = $region29
  $region28: #{uniskip_forward.1} parent=0 // pred_region
    _
  $region29: #{uniskip_forward.1} parent=0 // pred_fallthru
    _
  // Predicated region
  $region30: #{uniskip_forward.1} parent=0 // pred_check
    _
  $region31: #{uniskip_forward.1} parent=0 // pred_check_branch
    %39 = sbr.rel (0) target = $region33
  $region32: #{uniskip_forward.1} parent=0 // pred_region
    _
  $region33: #{uniskip_forward.1} parent=0 // pred_fallthru
    _
  // Predicated region
  $region34: #{uniskip_forward.1} parent=0 // pred_check
    _
  $region35: #{uniskip_forward.1} parent=0 // pred_check_branch
    %41 = sbr.rel (0) target = $region37
  $region36: #{uniskip_forward.1} parent=0 // pred_region
    _
  $region37: #{uniskip_forward.1} parent=0 // pred_fallthru
    _
  // Predicated region
  $region38: #{uniskip_forward.1} parent=0 // pred_check
    _
  $region39: #{uniskip_forward.1} parent=0 // pred_check_branch
    %43 = sbr.rel (0) target = $region41
  $region40: #{uniskip_forward.1} parent=0 // pred_region
    _
  $region41: #{uniskip_forward.1} parent=0 // pred_fallthru
    _
  // Predicated region
  $region42: #{uniskip_forward.1} parent=0 // pred_check
    _
  $region43: #{uniskip_forward.1} parent=0 // pred_check_branch
    %45 = sbr.rel (0) target = $region45
  $region44: #{uniskip_forward.1} parent=0 // pred_region
    _
  $region45: #{uniskip_forward.1} parent=0 // pred_fallthru
    _
  // Predicated region
  $region46: #{uniskip_forward.1} parent=0 // pred_check
    _
  $region47: #{uniskip_forward.1} parent=0 // pred_check_branch
    %47 = sbr.rel (0) target = $region49
  $region48: #{uniskip_forward.1} parent=0 // pred_region
    _
  $region49: #{uniskip_forward.1} parent=0 // pred_fallthru
    _
  // Predicated region
  $region50: #{uniskip_forward.1} parent=0 // pred_check
    _
  $region51: #{uniskip_forward.1} parent=0 // pred_check_branch
    %49 = sbr.rel (0) target = $region53
  $region52: #{uniskip_forward.1} parent=0 // pred_region
    _
  $region53: #{uniskip_forward.1} parent=0 // pred_fallthru
    _
  // Predicated region
  $region54: #{uniskip_forward.1} parent=0 // pred_check
    _
  $region55: #{uniskip_forward.1} parent=0 // pred_check_branch
    %51 = sbr.rel (0) target = $region57
  $region56: #{uniskip_forward.1} parent=0 // pred_region
    _
  $region57: #{uniskip_forward.1} parent=0 // pred_fallthru
    _
  // Predicated region
  $region58: #{uniskip_forward.1} parent=0 // pred_check
    _
  $region59: #{uniskip_forward.1} parent=0 // pred_check_branch
    %53 = sbr.rel (0) target = $region61
  $region60: #{uniskip_forward.1} parent=0 // pred_region
    _
  $region61: #{uniskip_forward.1} parent=0 // pred_fallthru
    _
  // Predicated region
  $region62: #{uniskip_forward.1} parent=0 // pred_check
    _
  $region63: #{uniskip_forward.1} parent=0 // pred_check_branch
    %55 = sbr.rel (0) target = $region65
  $region64: #{uniskip_forward.1} parent=0 // pred_region
    _
  $region65: #{uniskip_forward.1} parent=0 // pred_fallthru
    _
  // Predicated region
  $region66: #{uniskip_forward.1} parent=0 // pred_check
    _
  $region67: #{uniskip_forward.1} parent=0 // pred_check_branch
    %57 = sbr.rel (0) target = $region69
  $region68: #{uniskip_forward.1} parent=0 // pred_region
    _
  $region69: #{uniskip_forward.1} parent=0 // pred_fallthru
    _
  %v59 = vld [vmem:[%s1] sm:$0xf]
  %v60 = vld [vmem:[%s1 + $0x4] sm:$0xf]
  %v61 = vld [vmem:[%s1 + $0x8] sm:$0xf]
  %v62 = vld [vmem:[%s1 + $0xc] sm:$0xf]
  %v63 = vld [vmem:[%s1 + $0x10] sm:$0xf]
  %v64 = vld [vmem:[%s1 + $0x14] sm:$0xf]
  %v65 = vld [vmem:[%s1 + $0x18] sm:$0xf]
  %v66 = vld [vmem:[%s1 + $0x1c] sm:$0xf]
  %v67 = vld [vmem:[%s4] sm:$0xff]
  %v68 = vld [vmem:[%s4 + $0x8] sm:$0xf]
  %v69 = vld [vmem:[%s4 + $0xc] sm:$0xff]
  %v70 = vld [vmem:[%s4 + $0x14] sm:$0xf]
  %v71 = vld [vmem:[%s4 + $0x18] sm:$0xff]
  %v72 = vld [vmem:[%s4 + $0x20] sm:$0xf]
  %v73 = vld [vmem:[%s4 + $0x24] sm:$0xff]
  %v74 = vld [vmem:[%s4 + $0x2c] sm:$0xf]
  %v75 = vld [vmem:[%s4 + $0x30] sm:$0xff]
  %v76 = vld [vmem:[%s4 + $0x38] sm:$0xf]
  %v77 = vld [vmem:[%s4 + $0x3c] sm:$0xff]
  %v78 = vld [vmem:[%s4 + $0x44] sm:$0xf]
  %v79 = vld [vmem:[%s4 + $0x48] sm:$0xff]
  %v80 = vld [vmem:[%s4 + $0x50] sm:$0xf]
  %v81 = vld [vmem:[%s4 + $0x54] sm:$0xff]
  %v82 = vld [vmem:[%s4 + $0x5c] sm:$0xf]
  %v83 = vld [vmem:[%s4 + $0x60] sm:$0xff]
  %v84 = vld [vmem:[%s4 + $0x68] sm:$0xf]
  %v85 = vld [vmem:[%s4 + $0x6c] sm:$0xff]
  %v86 = vld [vmem:[%s4 + $0x74] sm:$0xf]
  %v87 = vld [vmem:[%s4 + $0x78] sm:$0xff]
  %v88 = vld [vmem:[%s4 + $0x80] sm:$0xf]
  %v89 = vld [vmem:[%s4 + $0x84] sm:$0xff]
  %v90 = vld [vmem:[%s4 + $0x8c] sm:$0xf]
  %v91 = vld [vmem:[%s4 + $0x90] sm:$0xff]
  %v92 = vld [vmem:[%s4 + $0x98] sm:$0xf]
  %v93 = vld [vmem:[%s4 + $0x9c] sm:$0xff]
  %v94 = vld [vmem:[%s4 + $0xa4] sm:$0xf]
  %v95 = vld [vmem:[%s4 + $0xa8] sm:$0xff]
  %v96 = vld [vmem:[%s4 + $0xb0] sm:$0xf]
  %v97 = vld [vmem:[%s4 + $0xb4] sm:$0xff]
  %v98 = vld [vmem:[%s4 + $0xbc] sm:$0xf]
  %v99 = vld [vmem:[%s6] sm:$0x7]
  %v101 = vlaneseq
  %v102 = vshrl.u32 %v101, 7
  %v103 = vsub.s32 0, %v102
  %v104 = vrot.slane %v99, %v103
  %v105 = vlaneseq
  %v106 = vshrl.u32 %v105, 7
  %v107 = vsub.s32 1, %v106
  %v108 = vrot.slane %v99, %v107
  %v109 = vlaneseq
  %v110 = vshrl.u32 %v109, 7
  %v111 = vsub.s32 2, %v110
  %v112 = vrot.slane %v99, %v111
  %v124 = vunpack.c.l.b16 %v59
  %v125 = vunpack.c.l.b16 %v60
  %v126 = vunpack.c.l.b16 %v61
  %v127 = vunpack.c.l.b16 %v62
  %v128 = vunpack.c.l.b16 %v63
  %v129 = vunpack.c.l.b16 %v64
  %v130 = vunpack.c.l.b16 %v65
  %v131 = vunpack.c.l.b16 %v66
  %v132 = vpack.c.b16 %v125, %v124
  %v133 = vpack.c.b16 %v127, %v126
  %v134 = vpack.c.b16 %v129, %v128
  %v135 = vpack.c.b16 %v131, %v130
  %v172 = vunpack.c.l.b16 %v67
  %v173 = vunpack.c.h.b16 %v67
  %v174 = vunpack.c.l.b16 %v68
  %v175 = vunpack.c.l.b16 %v69
  %v176 = vunpack.c.h.b16 %v69
  %v177 = vunpack.c.l.b16 %v70
  %v178 = vunpack.c.l.b16 %v71
  %v179 = vunpack.c.h.b16 %v71
  %v180 = vunpack.c.l.b16 %v72
  %v181 = vunpack.c.l.b16 %v73
  %v182 = vunpack.c.h.b16 %v73
  %v183 = vunpack.c.l.b16 %v74
  %v184 = vunpack.c.l.b16 %v75
  %v185 = vunpack.c.h.b16 %v75
  %v186 = vunpack.c.l.b16 %v76
  %v187 = vunpack.c.l.b16 %v77
  %v188 = vunpack.c.h.b16 %v77
  %v189 = vunpack.c.l.b16 %v78
  %v190 = vunpack.c.l.b16 %v79
  %v191 = vunpack.c.h.b16 %v79
  %v192 = vunpack.c.l.b16 %v80
  %v193 = vunpack.c.l.b16 %v81
  %v194 = vunpack.c.h.b16 %v81
  %v195 = vunpack.c.l.b16 %v82
  %v196 = vunpack.c.l.b16 %v83
  %v197 = vunpack.c.h.b16 %v83
  %v198 = vunpack.c.l.b16 %v84
  %v199 = vunpack.c.l.b16 %v85
  %v200 = vunpack.c.h.b16 %v85
  %v201 = vunpack.c.l.b16 %v86
  %v202 = vunpack.c.l.b16 %v87
  %v203 = vunpack.c.h.b16 %v87
  %v204 = vunpack.c.l.b16 %v88
  %v205 = vunpack.c.l.b16 %v89
  %v206 = vunpack.c.h.b16 %v89
  %v207 = vunpack.c.l.b16 %v90
  %v208 = vunpack.c.l.b16 %v91
  %v209 = vunpack.c.h.b16 %v91
  %v210 = vunpack.c.l.b16 %v92
  %v211 = vunpack.c.l.b16 %v93
  %v212 = vunpack.c.h.b16 %v93
  %v213 = vunpack.c.l.b16 %v94
  %v214 = vunpack.c.l.b16 %v95
  %v215 = vunpack.c.h.b16 %v95
  %v216 = vunpack.c.l.b16 %v96
  %v217 = vunpack.c.l.b16 %v97
  %v218 = vunpack.c.h.b16 %v97
  %v219 = vunpack.c.l.b16 %v98
  %v220 = vpack.c.b16 %v175, %v172
  %v221 = vpack.c.b16 %v176, %v173
  %v222 = vpack.c.b16 %v177, %v174
  %v223 = vpack.c.b16 %v181, %v178
  %v224 = vpack.c.b16 %v182, %v179
  %v225 = vpack.c.b16 %v183, %v180
  %v226 = vpack.c.b16 %v187, %v184
  %v227 = vpack.c.b16 %v188, %v185
  %v228 = vpack.c.b16 %v189, %v186
  %v229 = vpack.c.b16 %v193, %v190
  %v230 = vpack.c.b16 %v194, %v191
  %v231 = vpack.c.b16 %v195, %v192
  %v232 = vpack.c.b16 %v199, %v196
  %v233 = vpack.c.b16 %v200, %v197
  %v234 = vpack.c.b16 %v201, %v198
  %v235 = vpack.c.b16 %v205, %v202
  %v236 = vpack.c.b16 %v206, %v203
  %v237 = vpack.c.b16 %v207, %v204
  %v238 = vpack.c.b16 %v211, %v208
  %v239 = vpack.c.b16 %v212, %v209
  %v240 = vpack.c.b16 %v213, %v210
  %v241 = vpack.c.b16 %v217, %v214
  %v242 = vpack.c.b16 %v218, %v215
  %v243 = vpack.c.b16 %v219, %v216
  %268 = vmatprep.subr.bf16.mxu0 %v221
  %269 = vmatpush1.bf16.msra.mxu0 %v220
  %270 = vmatprep.subr.bf16.mxu0 %v224
  %271 = vmatpush1.bf16.msra.mxu0 %v223
  %272 = vmatprep.subr.bf16.mxu0 %v227
  %273 = vmatpush1.bf16.msra.mxu0 %v226
  %274 = vmatprep.subr.bf16.mxu0 %v230
  %275 = vmatpush1.bf16.msra.mxu0 %v229
  %276 = vmatprep.subr.bf16.mxu0 %v233
  %277 = vmatpush1.bf16.msra.mxu0 %v232
  %278 = vmatprep.subr.bf16.mxu0 %v236
  %279 = vmatpush1.bf16.msra.mxu0 %v235
  %280 = vmatprep.subr.bf16.mxu0 %v239
  %281 = vmatpush1.bf16.msra.mxu0 %v238
  %282 = vmatprep.subr.bf16.mxu0 %v242
  %283 = vmatpush1.bf16.msra.mxu0 %v241
  %284 = vmatprep.subr.bf16.mxu0 0
  %285 = vmatpush1.bf16.msra.mxu0 0
  %286 = vmatprep.subr.bf16.mxu0 0
  %287 = vmatpush1.bf16.msra.mxu0 0
  %288 = vmatprep.subr.bf16.mxu0 0
  %289 = vmatpush1.bf16.msra.mxu0 0
  %290 = vmatprep.subr.bf16.mxu0 0
  %291 = vmatpush1.bf16.msra.mxu0 0
  %292 = vmatprep.subr.bf16.mxu0 0
  %293 = vmatpush1.bf16.msra.mxu0 0
  %294 = vmatprep.subr.bf16.mxu0 0
  %295 = vmatpush1.bf16.msra.mxu0 0
  %296 = vmatprep.subr.bf16.mxu0 0
  %297 = vmatpush1.bf16.msra.mxu0 0
  %298 = vmatprep.subr.bf16.mxu0 0
  %299 = vmatpush1.bf16.msra.mxu0 0
  %300 = vmatprep.mubr.bf16.mxu0 0
  %301 = vmatmul.mubr.bf16.gmra.mrb[0].mxu0 %v132
  %v302 = vpop.f32.mrb[0].mxu0
  %v303 = vadd.f32 %v104, %v302
  %v304 = vpop.f32.mrb[0].mxu0
  %v305 = vadd.f32 %v108, %v304
  %v306 = vpop.f32.mrb[0].mxu0
  %v307 = vadd.f32 %v104, %v306
  %v308 = vpop.f32.mrb[0].mxu0
  %v309 = vadd.f32 %v108, %v308
  %310 = vmatprep.mubr.bf16.mxu0 0
  %311 = vmatmul.mubr.bf16.gmra.mrb[0].mxu0 %v133
  %v312 = vpop.f32.mrb[0].mxu0
  %v313 = vadd.f32 %v104, %v312
  %v314 = vpop.f32.mrb[0].mxu0
  %v315 = vadd.f32 %v108, %v314
  %v316 = vpop.f32.mrb[0].mxu0
  %v317 = vadd.f32 %v104, %v316
  %v318 = vpop.f32.mrb[0].mxu0
  %v319 = vadd.f32 %v108, %v318
  %320 = vmatprep.mubr.bf16.mxu0 0
  %321 = vmatmul.mubr.bf16.gmra.mrb[0].mxu0 %v134
  %v322 = vpop.f32.mrb[0].mxu0
  %v323 = vadd.f32 %v104, %v322
  %v324 = vpop.f32.mrb[0].mxu0
  %v325 = vadd.f32 %v108, %v324
  %v326 = vpop.f32.mrb[0].mxu0
  %v327 = vadd.f32 %v104, %v326
  %v328 = vpop.f32.mrb[0].mxu0
  %v329 = vadd.f32 %v108, %v328
  %330 = vmatprep.mubr.bf16.mxu0 0
  %331 = vmatmul.mubr.bf16.gmra.mrb[0].mxu0 %v135
  %v332 = vpop.f32.mrb[0].mxu0
  %v333 = vadd.f32 %v104, %v332
  %v334 = vpop.f32.mrb[0].mxu0
  %v335 = vadd.f32 %v108, %v334
  %v336 = vpop.f32.mrb[0].mxu0
  %v337 = vadd.f32 %v104, %v336
  %v338 = vpop.f32.mrb[0].mxu0
  %v339 = vadd.f32 %v108, %v338
  %340 = vdwg.mxu0
  %341 = vmatprep.subr.bf16.mxu0 0
  %342 = vmatpush1.bf16.msra.mxu0 %v222
  %343 = vmatprep.subr.bf16.mxu0 0
  %344 = vmatpush1.bf16.msra.mxu0 %v225
  %345 = vmatprep.subr.bf16.mxu0 0
  %346 = vmatpush1.bf16.msra.mxu0 %v228
  %347 = vmatprep.subr.bf16.mxu0 0
  %348 = vmatpush1.bf16.msra.mxu0 %v231
  %349 = vmatprep.subr.bf16.mxu0 0
  %350 = vmatpush1.bf16.msra.mxu0 %v234
  %351 = vmatprep.subr.bf16.mxu0 0
  %352 = vmatpush1.bf16.msra.mxu0 %v237
  %353 = vmatprep.subr.bf16.mxu0 0
  %354 = vmatpush1.bf16.msra.mxu0 %v240
  %355 = vmatprep.subr.bf16.mxu0 0
  %356 = vmatpush1.bf16.msra.mxu0 %v243
  %357 = vmatprep.subr.bf16.mxu0 0
  %358 = vmatpush1.bf16.msra.mxu0 0
  %359 = vmatprep.subr.bf16.mxu0 0
  %360 = vmatpush1.bf16.msra.mxu0 0
  %361 = vmatprep.subr.bf16.mxu0 0
  %362 = vmatpush1.bf16.msra.mxu0 0
  %363 = vmatprep.subr.bf16.mxu0 0
  %364 = vmatpush1.bf16.msra.mxu0 0
  %365 = vmatprep.subr.bf16.mxu0 0
  %366 = vmatpush1.bf16.msra.mxu0 0
  %367 = vmatprep.subr.bf16.mxu0 0
  %368 = vmatpush1.bf16.msra.mxu0 0
  %369 = vmatprep.subr.bf16.mxu0 0
  %370 = vmatpush1.bf16.msra.mxu0 0
  %371 = vmatprep.subr.bf16.mxu0 0
  %372 = vmatpush1.bf16.msra.mxu0 0
  %373 = vmatprep.mubr.bf16.mxu0 0
  %374 = vmatmul.mubr.bf16.gmra.mrb[0].mxu0 %v132
  %v375 = vpop.f32.mrb[0].mxu0
  %v376 = vadd.f32 %v112, %v375
  %v377 = vpop.f32.mrb[0].mxu0
  %v378 = vpop.f32.mrb[0].mxu0
  %v379 = vadd.f32 %v112, %v378
  %v380 = vpop.f32.mrb[0].mxu0
  %381 = vmatprep.mubr.bf16.mxu0 0
  %382 = vmatmul.mubr.bf16.gmra.mrb[0].mxu0 %v133
  %v383 = vpop.f32.mrb[0].mxu0
  %v384 = vadd.f32 %v112, %v383
  %v385 = vpop.f32.mrb[0].mxu0
  %v386 = vpop.f32.mrb[0].mxu0
  %v387 = vadd.f32 %v112, %v386
  %v388 = vpop.f32.mrb[0].mxu0
  %389 = vmatprep.mubr.bf16.mxu0 0
  %390 = vmatmul.mubr.bf16.gmra.mrb[0].mxu0 %v134
  %v391 = vpop.f32.mrb[0].mxu0
  %v392 = vadd.f32 %v112, %v391
  %v393 = vpop.f32.mrb[0].mxu0
  %v394 = vpop.f32.mrb[0].mxu0
  %v395 = vadd.f32 %v112, %v394
  %v396 = vpop.f32.mrb[0].mxu0
  %397 = vmatprep.mubr.bf16.mxu0 0
  %398 = vmatmul.mubr.bf16.gmra.mrb[0].mxu0 %v135
  %v399 = vpop.f32.mrb[0].mxu0
  %v400 = vadd.f32 %v112, %v399
  %v401 = vpop.f32.mrb[0].mxu0
  %v402 = vpop.f32.mrb[0].mxu0
  %v403 = vadd.f32 %v112, %v402
  %v404 = vpop.f32.mrb[0].mxu0
  %405 = vdwg.mxu0
  %v406 = vld [vmem:[%s5] sm:$0xff]
  %v407 = vld [vmem:[%s5 + $0x8] sm:$0xf]
  %v408 = vld [vmem:[%s5 + $0xc] sm:$0xff]
  %v409 = vld [vmem:[%s5 + $0x14] sm:$0xf]
  %v410 = vld [vmem:[%s5 + $0x18] sm:$0xff]
  %v411 = vld [vmem:[%s5 + $0x20] sm:$0xf]
  %v412 = vld [vmem:[%s5 + $0x24] sm:$0xff]
  %v413 = vld [vmem:[%s5 + $0x2c] sm:$0xf]
  %v414 = vld [vmem:[%s5 + $0x30] sm:$0xff]
  %v415 = vld [vmem:[%s5 + $0x38] sm:$0xf]
  %v416 = vld [vmem:[%s5 + $0x3c] sm:$0xff]
  %v417 = vld [vmem:[%s5 + $0x44] sm:$0xf]
  %v418 = vld [vmem:[%s5 + $0x48] sm:$0xff]
  %v419 = vld [vmem:[%s5 + $0x50] sm:$0xf]
  %v420 = vld [vmem:[%s5 + $0x54] sm:$0xff]
  %v421 = vld [vmem:[%s5 + $0x5c] sm:$0xf]
  %v422 = vld [vmem:[%s5 + $0x60] sm:$0xff]
  %v423 = vld [vmem:[%s5 + $0x68] sm:$0xf]
  %v424 = vld [vmem:[%s5 + $0x6c] sm:$0xff]
  %v425 = vld [vmem:[%s5 + $0x74] sm:$0xf]
  %v426 = vld [vmem:[%s5 + $0x78] sm:$0xff]
  %v427 = vld [vmem:[%s5 + $0x80] sm:$0xf]
  %v428 = vld [vmem:[%s5 + $0x84] sm:$0xff]
  %v429 = vld [vmem:[%s5 + $0x8c] sm:$0xf]
  %v430 = vld [vmem:[%s5 + $0x90] sm:$0xff]
  %v431 = vld [vmem:[%s5 + $0x98] sm:$0xf]
  %v432 = vld [vmem:[%s5 + $0x9c] sm:$0xff]
  %v433 = vld [vmem:[%s5 + $0xa4] sm:$0xf]
  %v434 = vld [vmem:[%s5 + $0xa8] sm:$0xff]
  %v435 = vld [vmem:[%s5 + $0xb0] sm:$0xf]
  %v436 = vld [vmem:[%s5 + $0xb4] sm:$0xff]
  %v437 = vld [vmem:[%s5 + $0xbc] sm:$0xf]
  %v470 = vunpack.c.l.b16 %v406
  %v471 = vunpack.c.h.b16 %v406
  %v472 = vunpack.c.l.b16 %v407
  %v473 = vunpack.c.l.b16 %v408
  %v474 = vunpack.c.h.b16 %v408
  %v475 = vunpack.c.l.b16 %v409
  %v476 = vunpack.c.l.b16 %v410
  %v477 = vunpack.c.h.b16 %v410
  %v478 = vunpack.c.l.b16 %v411
  %v479 = vunpack.c.l.b16 %v412
  %v480 = vunpack.c.h.b16 %v412
  %v481 = vunpack.c.l.b16 %v413
  %v482 = vunpack.c.l.b16 %v414
  %v483 = vunpack.c.h.b16 %v414
  %v484 = vunpack.c.l.b16 %v415
  %v485 = vunpack.c.l.b16 %v416
  %v486 = vunpack.c.h.b16 %v416
  %v487 = vunpack.c.l.b16 %v417
  %v488 = vunpack.c.l.b16 %v418
  %v489 = vunpack.c.h.b16 %v418
  %v490 = vunpack.c.l.b16 %v419
  %v491 = vunpack.c.l.b16 %v420
  %v492 = vunpack.c.h.b16 %v420
  %v493 = vunpack.c.l.b16 %v421
  %v494 = vunpack.c.l.b16 %v422
  %v495 = vunpack.c.h.b16 %v422
  %v496 = vunpack.c.l.b16 %v423
  %v497 = vunpack.c.l.b16 %v424
  %v498 = vunpack.c.h.b16 %v424
  %v499 = vunpack.c.l.b16 %v425
  %v500 = vunpack.c.l.b16 %v426
  %v501 = vunpack.c.h.b16 %v426
  %v502 = vunpack.c.l.b16 %v427
  %v503 = vunpack.c.l.b16 %v428
  %v504 = vunpack.c.h.b16 %v428
  %v505 = vunpack.c.l.b16 %v429
  %v506 = vunpack.c.l.b16 %v430
  %v507 = vunpack.c.h.b16 %v430
  %v508 = vunpack.c.l.b16 %v431
  %v509 = vunpack.c.l.b16 %v432
  %v510 = vunpack.c.h.b16 %v432
  %v511 = vunpack.c.l.b16 %v433
  %v512 = vunpack.c.l.b16 %v434
  %v513 = vunpack.c.h.b16 %v434
  %v514 = vunpack.c.l.b16 %v435
  %v515 = vunpack.c.l.b16 %v436
  %v516 = vunpack.c.h.b16 %v436
  %v517 = vunpack.c.l.b16 %v437
  %v518 = vpack.c.b16 %v473, %v470
  %v519 = vpack.c.b16 %v474, %v471
  %v520 = vpack.c.b16 %v475, %v472
  %v521 = vpack.c.b16 %v479, %v476
  %v522 = vpack.c.b16 %v480, %v477
  %v523 = vpack.c.b16 %v481, %v478
  %v524 = vpack.c.b16 %v485, %v482
  %v525 = vpack.c.b16 %v486, %v483
  %v526 = vpack.c.b16 %v487, %v484
  %v527 = vpack.c.b16 %v491, %v488
  %v528 = vpack.c.b16 %v492, %v489
  %v529 = vpack.c.b16 %v493, %v490
  %v530 = vpack.c.b16 %v497, %v494
  %v531 = vpack.c.b16 %v498, %v495
  %v532 = vpack.c.b16 %v499, %v496
  %v533 = vpack.c.b16 %v503, %v500
  %v534 = vpack.c.b16 %v504, %v501
  %v535 = vpack.c.b16 %v505, %v502
  %v536 = vpack.c.b16 %v509, %v506
  %v537 = vpack.c.b16 %v510, %v507
  %v538 = vpack.c.b16 %v511, %v508
  %v539 = vpack.c.b16 %v515, %v512
  %v540 = vpack.c.b16 %v516, %v513
  %v541 = vpack.c.b16 %v517, %v514
  %566 = vmatprep.subr.bf16.mxu0 %v519
  %567 = vmatpush1.bf16.msra.mxu0 %v518
  %568 = vmatprep.subr.bf16.mxu0 %v522
  %569 = vmatpush1.bf16.msra.mxu0 %v521
  %570 = vmatprep.subr.bf16.mxu0 %v525
  %571 = vmatpush1.bf16.msra.mxu0 %v524
  %572 = vmatprep.subr.bf16.mxu0 %v528
  %573 = vmatpush1.bf16.msra.mxu0 %v527
  %574 = vmatprep.subr.bf16.mxu0 %v531
  %575 = vmatpush1.bf16.msra.mxu0 %v530
  %576 = vmatprep.subr.bf16.mxu0 %v534
  %577 = vmatpush1.bf16.msra.mxu0 %v533
  %578 = vmatprep.subr.bf16.mxu0 %v537
  %579 = vmatpush1.bf16.msra.mxu0 %v536
  %580 = vmatprep.subr.bf16.mxu0 %v540
  %581 = vmatpush1.bf16.msra.mxu0 %v539
  %582 = vmatprep.subr.bf16.mxu0 0
  %583 = vmatpush1.bf16.msra.mxu0 0
  %584 = vmatprep.subr.bf16.mxu0 0
  %585 = vmatpush1.bf16.msra.mxu0 0
  %586 = vmatprep.subr.bf16.mxu0 0
  %587 = vmatpush1.bf16.msra.mxu0 0
  %588 = vmatprep.subr.bf16.mxu0 0
  %589 = vmatpush1.bf16.msra.mxu0 0
  %590 = vmatprep.subr.bf16.mxu0 0
  %591 = vmatpush1.bf16.msra.mxu0 0
  %592 = vmatprep.subr.bf16.mxu0 0
  %593 = vmatpush1.bf16.msra.mxu0 0
  %594 = vmatprep.subr.bf16.mxu0 0
  %595 = vmatpush1.bf16.msra.mxu0 0
  %596 = vmatprep.subr.bf16.mxu0 0
  %597 = vmatpush1.bf16.msra.mxu0 0
  %598 = vmatprep.mubr.bf16.mxu0 0
  %599 = vmatmul.mubr.bf16.gmra.mrb[0].mxu0 0
  %v600 = vpop.f32.mrb[0].mxu0
  %v601 = vadd.f32 0.0, %v600
  %v602 = vpop.f32.mrb[0].mxu0
  %v603 = vadd.f32 0.0, %v602
  %v604 = vpop.f32.mrb[0].mxu0
  %v605 = vpop.f32.mrb[0].mxu0
  %606 = vdwg.mxu0
  %607 = vmatprep.subr.bf16.mxu0 0
  %608 = vmatpush1.bf16.msra.mxu0 %v520
  %609 = vmatprep.subr.bf16.mxu0 0
  %610 = vmatpush1.bf16.msra.mxu0 %v523
  %611 = vmatprep.subr.bf16.mxu0 0
  %612 = vmatpush1.bf16.msra.mxu0 %v526
  %613 = vmatprep.subr.bf16.mxu0 0
  %614 = vmatpush1.bf16.msra.mxu0 %v529
  %615 = vmatprep.subr.bf16.mxu0 0
  %616 = vmatpush1.bf16.msra.mxu0 %v532
  %617 = vmatprep.subr.bf16.mxu0 0
  %618 = vmatpush1.bf16.msra.mxu0 %v535
  %619 = vmatprep.subr.bf16.mxu0 0
  %620 = vmatpush1.bf16.msra.mxu0 %v538
  %621 = vmatprep.subr.bf16.mxu0 0
  %622 = vmatpush1.bf16.msra.mxu0 %v541
  %623 = vmatprep.subr.bf16.mxu0 0
  %624 = vmatpush1.bf16.msra.mxu0 0
  %625 = vmatprep.subr.bf16.mxu0 0
  %626 = vmatpush1.bf16.msra.mxu0 0
  %627 = vmatprep.subr.bf16.mxu0 0
  %628 = vmatpush1.bf16.msra.mxu0 0
  %629 = vmatprep.subr.bf16.mxu0 0
  %630 = vmatpush1.bf16.msra.mxu0 0
  %631 = vmatprep.subr.bf16.mxu0 0
  %632 = vmatpush1.bf16.msra.mxu0 0
  %633 = vmatprep.subr.bf16.mxu0 0
  %634 = vmatpush1.bf16.msra.mxu0 0
  %635 = vmatprep.subr.bf16.mxu0 0
  %636 = vmatpush1.bf16.msra.mxu0 0
  %637 = vmatprep.subr.bf16.mxu0 0
  %638 = vmatpush1.bf16.msra.mxu0 0
  %639 = vmatprep.mubr.bf16.mxu0 0
  %640 = vmatmul.mubr.bf16.gmra.mrb[0].mxu0 0
  %v641 = vpop.f32.mrb[0].mxu0
  %v642 = vadd.f32 0.0, %v641
  %v643 = vpop.f32.mrb[0].mxu0
  %v644 = vpop.f32.mrb[0].mxu0
  %v645 = vpop.f32.mrb[0].mxu0
  %646 = vdwg.mxu0
  %v647 = vadd.f32 %v303, %v601
  %v648 = vxor.u32 %v647, 2147483648
  %v649 = vmul.f32 %v648, 1.442695
  %v650 = vpow.pop %v649
  %v651 = vadd.f32 %v650, 1.0
  %v652 = vrcp.pop %v651
  %v653 = vmul.f32 1.0, %v652
  %v654 = vadd.f32 %v305, %v603
  %v655 = vxor.u32 %v654, 2147483648
  %v656 = vmul.f32 %v655, 1.442695
  %v657 = vpow.pop %v656
  %v658 = vadd.f32 %v657, 1.0
  %v659 = vrcp.pop %v658
  %v660 = vmul.f32 1.0, %v659
  %v661 = vmul.f32 %v653, %v642
  %v662 = vadd.f32 %v376, %v661
  %v663 = vtanh.pop %v662
  %v664 = vsub.f32 1.0, %v660
  %v665 = vmul.f32 %v664, %v663
  %v666 = vmul.f32 %v660, 0.0
  %v667 = vadd.f32 %v665, %v666
  %v668 = vld [vmem:[%s0] sm:$0xff]
  %670 = vset.pattern.permute.xlu0 0
  %671 = vperm.xlu0 %670, %v668
  %v672 = vpop.permute.xlu0 %671
  %v674 = vmul.f32 %v672, %v667
  %v675 = vsub.f32 1.0, %v668
  %677 = vset.pattern.permute.xlu0 0
  %678 = vperm.xlu0 %677, %v675
  %v679 = vpop.permute.xlu0 %678
  %v681 = vmul.f32 %v679, 0.0
  %v682 = vadd.f32 %v674, %v681
  %v683 = vpack.c.bf16 %v682, %v682
  %684 = vmatprep.subr.bf16.mxu0 %v519
  %685 = vmatpush1.bf16.msra.mxu0 %v518
  %686 = vmatprep.subr.bf16.mxu0 %v522
  %687 = vmatpush1.bf16.msra.mxu0 %v521
  %688 = vmatprep.subr.bf16.mxu0 %v525
  %689 = vmatpush1.bf16.msra.mxu0 %v524
  %690 = vmatprep.subr.bf16.mxu0 %v528
  %691 = vmatpush1.bf16.msra.mxu0 %v527
  %692 = vmatprep.subr.bf16.mxu0 %v531
  %693 = vmatpush1.bf16.msra.mxu0 %v530
  %694 = vmatprep.subr.bf16.mxu0 %v534
  %695 = vmatpush1.bf16.msra.mxu0 %v533
  %696 = vmatprep.subr.bf16.mxu0 %v537
  %697 = vmatpush1.bf16.msra.mxu0 %v536
  %698 = vmatprep.subr.bf16.mxu0 %v540
  %699 = vmatpush1.bf16.msra.mxu0 %v539
  %700 = vmatprep.subr.bf16.mxu0 0
  %701 = vmatpush1.bf16.msra.mxu0 0
  %702 = vmatprep.subr.bf16.mxu0 0
  %703 = vmatpush1.bf16.msra.mxu0 0
  %704 = vmatprep.subr.bf16.mxu0 0
  %705 = vmatpush1.bf16.msra.mxu0 0
  %706 = vmatprep.subr.bf16.mxu0 0
  %707 = vmatpush1.bf16.msra.mxu0 0
  %708 = vmatprep.subr.bf16.mxu0 0
  %709 = vmatpush1.bf16.msra.mxu0 0
  %710 = vmatprep.subr.bf16.mxu0 0
  %711 = vmatpush1.bf16.msra.mxu0 0
  %712 = vmatprep.subr.bf16.mxu0 0
  %713 = vmatpush1.bf16.msra.mxu0 0
  %714 = vmatprep.subr.bf16.mxu0 0
  %715 = vmatpush1.bf16.msra.mxu0 0
  %716 = vmatprep.mubr.bf16.mxu0 0
  %717 = vmatmul.mubr.bf16.gmra.mrb[0].mxu0 %v683
  %v718 = vpop.f32.mrb[0].mxu0
  %v719 = vadd.f32 0.0, %v718
  %v720 = vpop.f32.mrb[0].mxu0
  %v721 = vadd.f32 0.0, %v720
  %v722 = vpop.f32.mrb[0].mxu0
  %v723 = vpop.f32.mrb[0].mxu0
  %724 = vdwg.mxu0
  %725 = vmatprep.subr.bf16.mxu0 0
  %726 = vmatpush1.bf16.msra.mxu0 %v520
  %727 = vmatprep.subr.bf16.mxu0 0
  %728 = vmatpush1.bf16.msra.mxu0 %v523
  %729 = vmatprep.subr.bf16.mxu0 0
  %730 = vmatpush1.bf16.msra.mxu0 %v526
  %731 = vmatprep.subr.bf16.mxu0 0
  %732 = vmatpush1.bf16.msra.mxu0 %v529
  %733 = vmatprep.subr.bf16.mxu0 0
  %734 = vmatpush1.bf16.msra.mxu0 %v532
  %735 = vmatprep.subr.bf16.mxu0 0
  %736 = vmatpush1.bf16.msra.mxu0 %v535
  %737 = vmatprep.subr.bf16.mxu0 0
  %738 = vmatpush1.bf16.msra.mxu0 %v538
  %739 = vmatprep.subr.bf16.mxu0 0
  %740 = vmatpush1.bf16.msra.mxu0 %v541
  %741 = vmatprep.subr.bf16.mxu0 0
  %742 = vmatpush1.bf16.msra.mxu0 0
  %743 = vmatprep.subr.bf16.mxu0 0
  %744 = vmatpush1.bf16.msra.mxu0 0
  %745 = vmatprep.subr.bf16.mxu0 0
  %746 = vmatpush1.bf16.msra.mxu0 0
  %747 = vmatprep.subr.bf16.mxu0 0
  %748 = vmatpush1.bf16.msra.mxu0 0
  %749 = vmatprep.subr.bf16.mxu0 0
  %750 = vmatpush1.bf16.msra.mxu0 0
  %751 = vmatprep.subr.bf16.mxu0 0
  %752 = vmatpush1.bf16.msra.mxu0 0
  %753 = vmatprep.subr.bf16.mxu0 0
  %754 = vmatpush1.bf16.msra.mxu0 0
  %755 = vmatprep.subr.bf16.mxu0 0
  %756 = vmatpush1.bf16.msra.mxu0 0
  %757 = vmatprep.mubr.bf16.mxu0 0
  %758 = vmatmul.mubr.bf16.gmra.mrb[0].mxu0 %v683
  %v759 = vpop.f32.mrb[0].mxu0
  %v760 = vadd.f32 0.0, %v759
  %v761 = vpop.f32.mrb[0].mxu0
  %v762 = vpop.f32.mrb[0].mxu0
  %v763 = vpop.f32.mrb[0].mxu0
  %764 = vdwg.mxu0
  %v765 = vadd.f32 %v307, %v719
  %v766 = vxor.u32 %v765, 2147483648
  %v767 = vmul.f32 %v766, 1.442695
  %v768 = vpow.pop %v767
  %v769 = vadd.f32 %v768, 1.0
  %v770 = vrcp.pop %v769
  %v771 = vmul.f32 1.0, %v770
  %v772 = vadd.f32 %v309, %v721
  %v773 = vxor.u32 %v772, 2147483648
  %v774 = vmul.f32 %v773, 1.442695
  %v775 = vpow.pop %v774
  %v776 = vadd.f32 %v775, 1.0
  %v777 = vrcp.pop %v776
  %v778 = vmul.f32 1.0, %v777
  %v779 = vmul.f32 %v771, %v760
  %v780 = vadd.f32 %v379, %v779
  %v781 = vtanh.pop %v780
  %v782 = vsub.f32 1.0, %v778
  %v783 = vmul.f32 %v782, %v781
  %v784 = vmul.f32 %v778, %v682
  %v785 = vadd.f32 %v783, %v784
  %v786 = vld [vmem:[%s0 + $0x8] sm:$0xff]
  %788 = vset.pattern.permute.xlu0 0
  %789 = vperm.xlu0 %788, %v786
  %v790 = vpop.permute.xlu0 %789
  %v792 = vmul.f32 %v790, %v785
  %v793 = vsub.f32 1.0, %v786
  %795 = vset.pattern.permute.xlu0 0
  %796 = vperm.xlu0 %795, %v793
  %v797 = vpop.permute.xlu0 %796
  %v799 = vmul.f32 %v797, %v682
  %v800 = vadd.f32 %v792, %v799
  %v801 = vpack.c.bf16 %v800, %v800
  %802 = vmatprep.subr.bf16.mxu0 %v519
  %803 = vmatpush1.bf16.msra.mxu0 %v518
  %804 = vmatprep.subr.bf16.mxu0 %v522
  %805 = vmatpush1.bf16.msra.mxu0 %v521
  %806 = vmatprep.subr.bf16.mxu0 %v525
  %807 = vmatpush1.bf16.msra.mxu0 %v524
  %808 = vmatprep.subr.bf16.mxu0 %v528
  %809 = vmatpush1.bf16.msra.mxu0 %v527
  %810 = vmatprep.subr.bf16.mxu0 %v531
  %811 = vmatpush1.bf16.msra.mxu0 %v530
  %812 = vmatprep.subr.bf16.mxu0 %v534
  %813 = vmatpush1.bf16.msra.mxu0 %v533
  %814 = vmatprep.subr.bf16.mxu0 %v537
  %815 = vmatpush1.bf16.msra.mxu0 %v536
  %816 = vmatprep.subr.bf16.mxu0 %v540
  %817 = vmatpush1.bf16.msra.mxu0 %v539
  %818 = vmatprep.subr.bf16.mxu0 0
  %819 = vmatpush1.bf16.msra.mxu0 0
  %820 = vmatprep.subr.bf16.mxu0 0
  %821 = vmatpush1.bf16.msra.mxu0 0
  %822 = vmatprep.subr.bf16.mxu0 0
  %823 = vmatpush1.bf16.msra.mxu0 0
  %824 = vmatprep.subr.bf16.mxu0 0
  %825 = vmatpush1.bf16.msra.mxu0 0
  %826 = vmatprep.subr.bf16.mxu0 0
  %827 = vmatpush1.bf16.msra.mxu0 0
  %828 = vmatprep.subr.bf16.mxu0 0
  %829 = vmatpush1.bf16.msra.mxu0 0
  %830 = vmatprep.subr.bf16.mxu0 0
  %831 = vmatpush1.bf16.msra.mxu0 0
  %832 = vmatprep.subr.bf16.mxu0 0
  %833 = vmatpush1.bf16.msra.mxu0 0
  %834 = vmatprep.mubr.bf16.mxu0 0
  %835 = vmatmul.mubr.bf16.gmra.mrb[0].mxu0 %v801
  %v836 = vpop.f32.mrb[0].mxu0
  %v837 = vadd.f32 0.0, %v836
  %v838 = vpop.f32.mrb[0].mxu0
  %v839 = vadd.f32 0.0, %v838
  %v840 = vpop.f32.mrb[0].mxu0
  %v841 = vpop.f32.mrb[0].mxu0
  %842 = vdwg.mxu0
  %843 = vmatprep.subr.bf16.mxu0 0
  %844 = vmatpush1.bf16.msra.mxu0 %v520
  %845 = vmatprep.subr.bf16.mxu0 0
  %846 = vmatpush1.bf16.msra.mxu0 %v523
  %847 = vmatprep.subr.bf16.mxu0 0
  %848 = vmatpush1.bf16.msra.mxu0 %v526
  %849 = vmatprep.subr.bf16.mxu0 0
  %850 = vmatpush1.bf16.msra.mxu0 %v529
  %851 = vmatprep.subr.bf16.mxu0 0
  %852 = vmatpush1.bf16.msra.mxu0 %v532
  %853 = vmatprep.subr.bf16.mxu0 0
  %854 = vmatpush1.bf16.msra.mxu0 %v535
  %855 = vmatprep.subr.bf16.mxu0 0
  %856 = vmatpush1.bf16.msra.mxu0 %v538
  %857 = vmatprep.subr.bf16.mxu0 0
  %858 = vmatpush1.bf16.msra.mxu0 %v541
  %859 = vmatprep.subr.bf16.mxu0 0
  %860 = vmatpush1.bf16.msra.mxu0 0
  %861 = vmatprep.subr.bf16.mxu0 0
  %862 = vmatpush1.bf16.msra.mxu0 0
  %863 = vmatprep.subr.bf16.mxu0 0
  %864 = vmatpush1.bf16.msra.mxu0 0
  %865 = vmatprep.subr.bf16.mxu0 0
  %866 = vmatpush1.bf16.msra.mxu0 0
  %867 = vmatprep.subr.bf16.mxu0 0
  %868 = vmatpush1.bf16.msra.mxu0 0
  %869 = vmatprep.subr.bf16.mxu0 0
  %870 = vmatpush1.bf16.msra.mxu0 0
  %871 = vmatprep.subr.bf16.mxu0 0
  %872 = vmatpush1.bf16.msra.mxu0 0
  %873 = vmatprep.subr.bf16.mxu0 0
  %874 = vmatpush1.bf16.msra.mxu0 0
  %875 = vmatprep.mubr.bf16.mxu0 0
  %876 = vmatmul.mubr.bf16.gmra.mrb[0].mxu0 %v801
  %v877 = vpop.f32.mrb[0].mxu0
  %v878 = vadd.f32 0.0, %v877
  %v879 = vpop.f32.mrb[0].mxu0
  %v880 = vpop.f32.mrb[0].mxu0
  %v881 = vpop.f32.mrb[0].mxu0
  %882 = vdwg.mxu0
  %v883 = vadd.f32 %v313, %v837
  %v884 = vxor.u32 %v883, 2147483648
  %v885 = vmul.f32 %v884, 1.442695
  %v886 = vpow.pop %v885
  %v887 = vadd.f32 %v886, 1.0
  %v888 = vrcp.pop %v887
  %v889 = vmul.f32 1.0, %v888
  %v890 = vadd.f32 %v315, %v839
  %v891 = vxor.u32 %v890, 2147483648
  %v892 = vmul.f32 %v891, 1.442695
  %v893 = vpow.pop %v892
  %v894 = vadd.f32 %v893, 1.0
  %v895 = vrcp.pop %v894
  %v896 = vmul.f32 1.0, %v895
  %v897 = vmul.f32 %v889, %v878
  %v898 = vadd.f32 %v384, %v897
  %v899 = vtanh.pop %v898
  %v900 = vsub.f32 1.0, %v896
  %v901 = vmul.f32 %v900, %v899
  %v902 = vmul.f32 %v896, %v800
  %v903 = vadd.f32 %v901, %v902
  %v904 = vld [vmem:[%s0 + $0x10] sm:$0xff]
  %906 = vset.pattern.permute.xlu0 0
  %907 = vperm.xlu0 %906, %v904
  %v908 = vpop.permute.xlu0 %907
  %v910 = vmul.f32 %v908, %v903
  %v911 = vsub.f32 1.0, %v904
  %913 = vset.pattern.permute.xlu0 0
  %914 = vperm.xlu0 %913, %v911
  %v915 = vpop.permute.xlu0 %914
  %v917 = vmul.f32 %v915, %v800
  %v918 = vadd.f32 %v910, %v917
  %v919 = vpack.c.bf16 %v918, %v918
  %920 = vmatprep.subr.bf16.mxu0 %v519
  %921 = vmatpush1.bf16.msra.mxu0 %v518
  %922 = vmatprep.subr.bf16.mxu0 %v522
  %923 = vmatpush1.bf16.msra.mxu0 %v521
  %924 = vmatprep.subr.bf16.mxu0 %v525
  %925 = vmatpush1.bf16.msra.mxu0 %v524
  %926 = vmatprep.subr.bf16.mxu0 %v528
  %927 = vmatpush1.bf16.msra.mxu0 %v527
  %928 = vmatprep.subr.bf16.mxu0 %v531
  %929 = vmatpush1.bf16.msra.mxu0 %v530
  %930 = vmatprep.subr.bf16.mxu0 %v534
  %931 = vmatpush1.bf16.msra.mxu0 %v533
  %932 = vmatprep.subr.bf16.mxu0 %v537
  %933 = vmatpush1.bf16.msra.mxu0 %v536
  %934 = vmatprep.subr.bf16.mxu0 %v540
  %935 = vmatpush1.bf16.msra.mxu0 %v539
  %936 = vmatprep.subr.bf16.mxu0 0
  %937 = vmatpush1.bf16.msra.mxu0 0
  %938 = vmatprep.subr.bf16.mxu0 0
  %939 = vmatpush1.bf16.msra.mxu0 0
  %940 = vmatprep.subr.bf16.mxu0 0
  %941 = vmatpush1.bf16.msra.mxu0 0
  %942 = vmatprep.subr.bf16.mxu0 0
  %943 = vmatpush1.bf16.msra.mxu0 0
  %944 = vmatprep.subr.bf16.mxu0 0
  %945 = vmatpush1.bf16.msra.mxu0 0
  %946 = vmatprep.subr.bf16.mxu0 0
  %947 = vmatpush1.bf16.msra.mxu0 0
  %948 = vmatprep.subr.bf16.mxu0 0
  %949 = vmatpush1.bf16.msra.mxu0 0
  %950 = vmatprep.subr.bf16.mxu0 0
  %951 = vmatpush1.bf16.msra.mxu0 0
  %952 = vmatprep.mubr.bf16.mxu0 0
  %953 = vmatmul.mubr.bf16.gmra.mrb[0].mxu0 %v919
  %v954 = vpop.f32.mrb[0].mxu0
  %v955 = vadd.f32 0.0, %v954
  %v956 = vpop.f32.mrb[0].mxu0
  %v957 = vadd.f32 0.0, %v956
  %v958 = vpop.f32.mrb[0].mxu0
  %v959 = vpop.f32.mrb[0].mxu0
  %960 = vdwg.mxu0
  %961 = vmatprep.subr.bf16.mxu0 0
  %962 = vmatpush1.bf16.msra.mxu0 %v520
  %963 = vmatprep.subr.bf16.mxu0 0
  %964 = vmatpush1.bf16.msra.mxu0 %v523
  %965 = vmatprep.subr.bf16.mxu0 0
  %966 = vmatpush1.bf16.msra.mxu0 %v526
  %967 = vmatprep.subr.bf16.mxu0 0
  %968 = vmatpush1.bf16.msra.mxu0 %v529
  %969 = vmatprep.subr.bf16.mxu0 0
  %970 = vmatpush1.bf16.msra.mxu0 %v532
  %971 = vmatprep.subr.bf16.mxu0 0
  %972 = vmatpush1.bf16.msra.mxu0 %v535
  %973 = vmatprep.subr.bf16.mxu0 0
  %974 = vmatpush1.bf16.msra.mxu0 %v538
  %975 = vmatprep.subr.bf16.mxu0 0
  %976 = vmatpush1.bf16.msra.mxu0 %v541
  %977 = vmatprep.subr.bf16.mxu0 0
  %978 = vmatpush1.bf16.msra.mxu0 0
  %979 = vmatprep.subr.bf16.mxu0 0
  %980 = vmatpush1.bf16.msra.mxu0 0
  %981 = vmatprep.subr.bf16.mxu0 0
  %982 = vmatpush1.bf16.msra.mxu0 0
  %983 = vmatprep.subr.bf16.mxu0 0
  %984 = vmatpush1.bf16.msra.mxu0 0
  %985 = vmatprep.subr.bf16.mxu0 0
  %986 = vmatpush1.bf16.msra.mxu0 0
  %987 = vmatprep.subr.bf16.mxu0 0
  %988 = vmatpush1.bf16.msra.mxu0 0
  %989 = vmatprep.subr.bf16.mxu0 0
  %990 = vmatpush1.bf16.msra.mxu0 0
  %991 = vmatprep.subr.bf16.mxu0 0
  %992 = vmatpush1.bf16.msra.mxu0 0
  %993 = vmatprep.mubr.bf16.mxu0 0
  %994 = vmatmul.mubr.bf16.gmra.mrb[0].mxu0 %v919
  %v995 = vpop.f32.mrb[0].mxu0
  %v996 = vadd.f32 0.0, %v995
  %v997 = vpop.f32.mrb[0].mxu0
  %v998 = vpop.f32.mrb[0].mxu0
  %v999 = vpop.f32.mrb[0].mxu0
  %1000 = vdwg.mxu0
  %v1001 = vadd.f32 %v317, %v955
  %v1002 = vxor.u32 %v1001, 2147483648
  %v1003 = vmul.f32 %v1002, 1.442695
  %v1004 = vpow.pop %v1003
  %v1005 = vadd.f32 %v1004, 1.0
  %v1006 = vrcp.pop %v1005
  %v1007 = vmul.f32 1.0, %v1006
  %v1008 = vadd.f32 %v319, %v957
  %v1009 = vxor.u32 %v1008, 2147483648
  %v1010 = vmul.f32 %v1009, 1.442695
  %v1011 = vpow.pop %v1010
  %v1012 = vadd.f32 %v1011, 1.0
  %v1013 = vrcp.pop %v1012
  %v1014 = vmul.f32 1.0, %v1013
  %v1015 = vmul.f32 %v1007, %v996
  %v1016 = vadd.f32 %v387, %v1015
  %v1017 = vtanh.pop %v1016
  %v1018 = vsub.f32 1.0, %v1014
  %v1019 = vmul.f32 %v1018, %v1017
  %v1020 = vmul.f32 %v1014, %v918
  %v1021 = vadd.f32 %v1019, %v1020
  %v1022 = vld [vmem:[%s0 + $0x18] sm:$0xff]
  %1024 = vset.pattern.permute.xlu0 0
  %1025 = vperm.xlu0 %1024, %v1022
  %v1026 = vpop.permute.xlu0 %1025
  %v1028 = vmul.f32 %v1026, %v1021
  %v1029 = vsub.f32 1.0, %v1022
  %1031 = vset.pattern.permute.xlu0 0
  %1032 = vperm.xlu0 %1031, %v1029
  %v1033 = vpop.permute.xlu0 %1032
  %v1035 = vmul.f32 %v1033, %v918
  %v1036 = vadd.f32 %v1028, %v1035
  %v1037 = vpack.c.bf16 %v1036, %v1036
  %1038 = vmatprep.subr.bf16.mxu0 %v519
  %1039 = vmatpush1.bf16.msra.mxu0 %v518
  %1040 = vmatprep.subr.bf16.mxu0 %v522
  %1041 = vmatpush1.bf16.msra.mxu0 %v521
  %1042 = vmatprep.subr.bf16.mxu0 %v525
  %1043 = vmatpush1.bf16.msra.mxu0 %v524
  %1044 = vmatprep.subr.bf16.mxu0 %v528
  %1045 = vmatpush1.bf16.msra.mxu0 %v527
  %1046 = vmatprep.subr.bf16.mxu0 %v531
  %1047 = vmatpush1.bf16.msra.mxu0 %v530
  %1048 = vmatprep.subr.bf16.mxu0 %v534
  %1049 = vmatpush1.bf16.msra.mxu0 %v533
  %1050 = vmatprep.subr.bf16.mxu0 %v537
  %1051 = vmatpush1.bf16.msra.mxu0 %v536
  %1052 = vmatprep.subr.bf16.mxu0 %v540
  %1053 = vmatpush1.bf16.msra.mxu0 %v539
  %1054 = vmatprep.subr.bf16.mxu0 0
  %1055 = vmatpush1.bf16.msra.mxu0 0
  %1056 = vmatprep.subr.bf16.mxu0 0
  %1057 = vmatpush1.bf16.msra.mxu0 0
  %1058 = vmatprep.subr.bf16.mxu0 0
  %1059 = vmatpush1.bf16.msra.mxu0 0
  %1060 = vmatprep.subr.bf16.mxu0 0
  %1061 = vmatpush1.bf16.msra.mxu0 0
  %1062 = vmatprep.subr.bf16.mxu0 0
  %1063 = vmatpush1.bf16.msra.mxu0 0
  %1064 = vmatprep.subr.bf16.mxu0 0
  %1065 = vmatpush1.bf16.msra.mxu0 0
  %1066 = vmatprep.subr.bf16.mxu0 0
  %1067 = vmatpush1.bf16.msra.mxu0 0
  %1068 = vmatprep.subr.bf16.mxu0 0
  %1069 = vmatpush1.bf16.msra.mxu0 0
  %1070 = vmatprep.mubr.bf16.mxu0 0
  %1071 = vmatmul.mubr.bf16.gmra.mrb[0].mxu0 %v1037
  %v1072 = vpop.f32.mrb[0].mxu0
  %v1073 = vadd.f32 0.0, %v1072
  %v1074 = vpop.f32.mrb[0].mxu0
  %v1075 = vadd.f32 0.0, %v1074
  %v1076 = vpop.f32.mrb[0].mxu0
  %v1077 = vpop.f32.mrb[0].mxu0
  %1078 = vdwg.mxu0
  %1079 = vmatprep.subr.bf16.mxu0 0
  %1080 = vmatpush1.bf16.msra.mxu0 %v520
  %1081 = vmatprep.subr.bf16.mxu0 0
  %1082 = vmatpush1.bf16.msra.mxu0 %v523
  %1083 = vmatprep.subr.bf16.mxu0 0
  %1084 = vmatpush1.bf16.msra.mxu0 %v526
  %1085 = vmatprep.subr.bf16.mxu0 0
  %1086 = vmatpush1.bf16.msra.mxu0 %v529
  %1087 = vmatprep.subr.bf16.mxu0 0
  %1088 = vmatpush1.bf16.msra.mxu0 %v532
  %1089 = vmatprep.subr.bf16.mxu0 0
  %1090 = vmatpush1.bf16.msra.mxu0 %v535
  %1091 = vmatprep.subr.bf16.mxu0 0
  %1092 = vmatpush1.bf16.msra.mxu0 %v538
  %1093 = vmatprep.subr.bf16.mxu0 0
  %1094 = vmatpush1.bf16.msra.mxu0 %v541
  %1095 = vmatprep.subr.bf16.mxu0 0
  %1096 = vmatpush1.bf16.msra.mxu0 0
  %1097 = vmatprep.subr.bf16.mxu0 0
  %1098 = vmatpush1.bf16.msra.mxu0 0
  %1099 = vmatprep.subr.bf16.mxu0 0
  %1100 = vmatpush1.bf16.msra.mxu0 0
  %1101 = vmatprep.subr.bf16.mxu0 0
  %1102 = vmatpush1.bf16.msra.mxu0 0
  %1103 = vmatprep.subr.bf16.mxu0 0
  %1104 = vmatpush1.bf16.msra.mxu0 0
  %1105 = vmatprep.subr.bf16.mxu0 0
  %1106 = vmatpush1.bf16.msra.mxu0 0
  %1107 = vmatprep.subr.bf16.mxu0 0
  %1108 = vmatpush1.bf16.msra.mxu0 0
  %1109 = vmatprep.subr.bf16.mxu0 0
  %1110 = vmatpush1.bf16.msra.mxu0 0
  %1111 = vmatprep.mubr.bf16.mxu0 0
  %1112 = vmatmul.mubr.bf16.gmra.mrb[0].mxu0 %v1037
  %v1113 = vpop.f32.mrb[0].mxu0
  %v1114 = vadd.f32 0.0, %v1113
  %v1115 = vpop.f32.mrb[0].mxu0
  %v1116 = vpop.f32.mrb[0].mxu0
  %v1117 = vpop.f32.mrb[0].mxu0
  %1118 = vdwg.mxu0
  %v1119 = vadd.f32 %v323, %v1073
  %v1120 = vxor.u32 %v1119, 2147483648
  %v1121 = vmul.f32 %v1120, 1.442695
  %v1122 = vpow.pop %v1121
  %v1123 = vadd.f32 %v1122, 1.0
  %v1124 = vrcp.pop %v1123
  %v1125 = vmul.f32 1.0, %v1124
  %v1126 = vadd.f32 %v325, %v1075
  %v1127 = vxor.u32 %v1126, 2147483648
  %v1128 = vmul.f32 %v1127, 1.442695
  %v1129 = vpow.pop %v1128
  %v1130 = vadd.f32 %v1129, 1.0
  %v1131 = vrcp.pop %v1130
  %v1132 = vmul.f32 1.0, %v1131
  %v1133 = vmul.f32 %v1125, %v1114
  %v1134 = vadd.f32 %v392, %v1133
  %v1135 = vtanh.pop %v1134
  %v1136 = vsub.f32 1.0, %v1132
  %v1137 = vmul.f32 %v1136, %v1135
  %v1138 = vmul.f32 %v1132, %v1036
  %v1139 = vadd.f32 %v1137, %v1138
  %v1140 = vld [vmem:[%s0 + $0x20] sm:$0xff]
  %1142 = vset.pattern.permute.xlu0 0
  %1143 = vperm.xlu0 %1142, %v1140
  %v1144 = vpop.permute.xlu0 %1143
  %v1146 = vmul.f32 %v1144, %v1139
  %v1147 = vsub.f32 1.0, %v1140
  %1149 = vset.pattern.permute.xlu0 0
  %1150 = vperm.xlu0 %1149, %v1147
  %v1151 = vpop.permute.xlu0 %1150
  %v1153 = vmul.f32 %v1151, %v1036
  %v1154 = vadd.f32 %v1146, %v1153
  %v1155 = vpack.c.bf16 %v1154, %v1154
  %1156 = vmatprep.subr.bf16.mxu0 %v519
  %1157 = vmatpush1.bf16.msra.mxu0 %v518
  %1158 = vmatprep.subr.bf16.mxu0 %v522
  %1159 = vmatpush1.bf16.msra.mxu0 %v521
  %1160 = vmatprep.subr.bf16.mxu0 %v525
  %1161 = vmatpush1.bf16.msra.mxu0 %v524
  %1162 = vmatprep.subr.bf16.mxu0 %v528
  %1163 = vmatpush1.bf16.msra.mxu0 %v527
  %1164 = vmatprep.subr.bf16.mxu0 %v531
  %1165 = vmatpush1.bf16.msra.mxu0 %v530
  %1166 = vmatprep.subr.bf16.mxu0 %v534
  %1167 = vmatpush1.bf16.msra.mxu0 %v533
  %1168 = vmatprep.subr.bf16.mxu0 %v537
  %1169 = vmatpush1.bf16.msra.mxu0 %v536
  %1170 = vmatprep.subr.bf16.mxu0 %v540
  %1171 = vmatpush1.bf16.msra.mxu0 %v539
  %1172 = vmatprep.subr.bf16.mxu0 0
  %1173 = vmatpush1.bf16.msra.mxu0 0
  %1174 = vmatprep.subr.bf16.mxu0 0
  %1175 = vmatpush1.bf16.msra.mxu0 0
  %1176 = vmatprep.subr.bf16.mxu0 0
  %1177 = vmatpush1.bf16.msra.mxu0 0
  %1178 = vmatprep.subr.bf16.mxu0 0
  %1179 = vmatpush1.bf16.msra.mxu0 0
  %1180 = vmatprep.subr.bf16.mxu0 0
  %1181 = vmatpush1.bf16.msra.mxu0 0
  %1182 = vmatprep.subr.bf16.mxu0 0
  %1183 = vmatpush1.bf16.msra.mxu0 0
  %1184 = vmatprep.subr.bf16.mxu0 0
  %1185 = vmatpush1.bf16.msra.mxu0 0
  %1186 = vmatprep.subr.bf16.mxu0 0
  %1187 = vmatpush1.bf16.msra.mxu0 0
  %1188 = vmatprep.mubr.bf16.mxu0 0
  %1189 = vmatmul.mubr.bf16.gmra.mrb[0].mxu0 %v1155
  %v1190 = vpop.f32.mrb[0].mxu0
  %v1191 = vadd.f32 0.0, %v1190
  %v1192 = vpop.f32.mrb[0].mxu0
  %v1193 = vadd.f32 0.0, %v1192
  %v1194 = vpop.f32.mrb[0].mxu0
  %v1195 = vpop.f32.mrb[0].mxu0
  %1196 = vdwg.mxu0
  %1197 = vmatprep.subr.bf16.mxu0 0
  %1198 = vmatpush1.bf16.msra.mxu0 %v520
  %1199 = vmatprep.subr.bf16.mxu0 0
  %1200 = vmatpush1.bf16.msra.mxu0 %v523
  %1201 = vmatprep.subr.bf16.mxu0 0
  %1202 = vmatpush1.bf16.msra.mxu0 %v526
  %1203 = vmatprep.subr.bf16.mxu0 0
  %1204 = vmatpush1.bf16.msra.mxu0 %v529
  %1205 = vmatprep.subr.bf16.mxu0 0
  %1206 = vmatpush1.bf16.msra.mxu0 %v532
  %1207 = vmatprep.subr.bf16.mxu0 0
  %1208 = vmatpush1.bf16.msra.mxu0 %v535
  %1209 = vmatprep.subr.bf16.mxu0 0
  %1210 = vmatpush1.bf16.msra.mxu0 %v538
  %1211 = vmatprep.subr.bf16.mxu0 0
  %1212 = vmatpush1.bf16.msra.mxu0 %v541
  %1213 = vmatprep.subr.bf16.mxu0 0
  %1214 = vmatpush1.bf16.msra.mxu0 0
  %1215 = vmatprep.subr.bf16.mxu0 0
  %1216 = vmatpush1.bf16.msra.mxu0 0
  %1217 = vmatprep.subr.bf16.mxu0 0
  %1218 = vmatpush1.bf16.msra.mxu0 0
  %1219 = vmatprep.subr.bf16.mxu0 0
  %1220 = vmatpush1.bf16.msra.mxu0 0
  %1221 = vmatprep.subr.bf16.mxu0 0
  %1222 = vmatpush1.bf16.msra.mxu0 0
  %1223 = vmatprep.subr.bf16.mxu0 0
  %1224 = vmatpush1.bf16.msra.mxu0 0
  %1225 = vmatprep.subr.bf16.mxu0 0
  %1226 = vmatpush1.bf16.msra.mxu0 0
  %1227 = vmatprep.subr.bf16.mxu0 0
  %1228 = vmatpush1.bf16.msra.mxu0 0
  %1229 = vmatprep.mubr.bf16.mxu0 0
  %1230 = vmatmul.mubr.bf16.gmra.mrb[0].mxu0 %v1155
  %v1231 = vpop.f32.mrb[0].mxu0
  %v1232 = vadd.f32 0.0, %v1231
  %v1233 = vpop.f32.mrb[0].mxu0
  %v1234 = vpop.f32.mrb[0].mxu0
  %v1235 = vpop.f32.mrb[0].mxu0
  %1236 = vdwg.mxu0
  %v1237 = vadd.f32 %v327, %v1191
  %v1238 = vxor.u32 %v1237, 2147483648
  %v1239 = vmul.f32 %v1238, 1.442695
  %v1240 = vpow.pop %v1239
  %v1241 = vadd.f32 %v1240, 1.0
  %v1242 = vrcp.pop %v1241
  %v1243 = vmul.f32 1.0, %v1242
  %v1244 = vadd.f32 %v329, %v1193
  %v1245 = vxor.u32 %v1244, 2147483648
  %v1246 = vmul.f32 %v1245, 1.442695
  %v1247 = vpow.pop %v1246
  %v1248 = vadd.f32 %v1247, 1.0
  %v1249 = vrcp.pop %v1248
  %v1250 = vmul.f32 1.0, %v1249
  %v1251 = vmul.f32 %v1243, %v1232
  %v1252 = vadd.f32 %v395, %v1251
  %v1253 = vtanh.pop %v1252
  %v1254 = vsub.f32 1.0, %v1250
  %v1255 = vmul.f32 %v1254, %v1253
  %v1256 = vmul.f32 %v1250, %v1154
  %v1257 = vadd.f32 %v1255, %v1256
  %v1258 = vld [vmem:[%s0 + $0x28] sm:$0xff]
  %1260 = vset.pattern.permute.xlu0 0
  %1261 = vperm.xlu0 %1260, %v1258
  %v1262 = vpop.permute.xlu0 %1261
  %v1264 = vmul.f32 %v1262, %v1257
  %v1265 = vsub.f32 1.0, %v1258
  %1267 = vset.pattern.permute.xlu0 0
  %1268 = vperm.xlu0 %1267, %v1265
  %v1269 = vpop.permute.xlu0 %1268
  %v1271 = vmul.f32 %v1269, %v1154
  %v1272 = vadd.f32 %v1264, %v1271
  %v1273 = vpack.c.bf16 %v1272, %v1272
  %1274 = vmatprep.subr.bf16.mxu0 %v519
  %1275 = vmatpush1.bf16.msra.mxu0 %v518
  %1276 = vmatprep.subr.bf16.mxu0 %v522
  %1277 = vmatpush1.bf16.msra.mxu0 %v521
  %1278 = vmatprep.subr.bf16.mxu0 %v525
  %1279 = vmatpush1.bf16.msra.mxu0 %v524
  %1280 = vmatprep.subr.bf16.mxu0 %v528
  %1281 = vmatpush1.bf16.msra.mxu0 %v527
  %1282 = vmatprep.subr.bf16.mxu0 %v531
  %1283 = vmatpush1.bf16.msra.mxu0 %v530
  %1284 = vmatprep.subr.bf16.mxu0 %v534
  %1285 = vmatpush1.bf16.msra.mxu0 %v533
  %1286 = vmatprep.subr.bf16.mxu0 %v537
  %1287 = vmatpush1.bf16.msra.mxu0 %v536
  %1288 = vmatprep.subr.bf16.mxu0 %v540
  %1289 = vmatpush1.bf16.msra.mxu0 %v539
  %1290 = vmatprep.subr.bf16.mxu0 0
  %1291 = vmatpush1.bf16.msra.mxu0 0
  %1292 = vmatprep.subr.bf16.mxu0 0
  %1293 = vmatpush1.bf16.msra.mxu0 0
  %1294 = vmatprep.subr.bf16.mxu0 0
  %1295 = vmatpush1.bf16.msra.mxu0 0
  %1296 = vmatprep.subr.bf16.mxu0 0
  %1297 = vmatpush1.bf16.msra.mxu0 0
  %1298 = vmatprep.subr.bf16.mxu0 0
  %1299 = vmatpush1.bf16.msra.mxu0 0
  %1300 = vmatprep.subr.bf16.mxu0 0
  %1301 = vmatpush1.bf16.msra.mxu0 0
  %1302 = vmatprep.subr.bf16.mxu0 0
  %1303 = vmatpush1.bf16.msra.mxu0 0
  %1304 = vmatprep.subr.bf16.mxu0 0
  %1305 = vmatpush1.bf16.msra.mxu0 0
  %1306 = vmatprep.mubr.bf16.mxu0 0
  %1307 = vmatmul.mubr.bf16.gmra.mrb[0].mxu0 %v1273
  %v1308 = vpop.f32.mrb[0].mxu0
  %v1309 = vadd.f32 0.0, %v1308
  %v1310 = vpop.f32.mrb[0].mxu0
  %v1311 = vadd.f32 0.0, %v1310
  %v1312 = vpop.f32.mrb[0].mxu0
  %v1313 = vpop.f32.mrb[0].mxu0
  %1314 = vdwg.mxu0
  %1315 = vmatprep.subr.bf16.mxu0 0
  %1316 = vmatpush1.bf16.msra.mxu0 %v520
  %1317 = vmatprep.subr.bf16.mxu0 0
  %1318 = vmatpush1.bf16.msra.mxu0 %v523
  %1319 = vmatprep.subr.bf16.mxu0 0
  %1320 = vmatpush1.bf16.msra.mxu0 %v526
  %1321 = vmatprep.subr.bf16.mxu0 0
  %1322 = vmatpush1.bf16.msra.mxu0 %v529
  %1323 = vmatprep.subr.bf16.mxu0 0
  %1324 = vmatpush1.bf16.msra.mxu0 %v532
  %1325 = vmatprep.subr.bf16.mxu0 0
  %1326 = vmatpush1.bf16.msra.mxu0 %v535
  %1327 = vmatprep.subr.bf16.mxu0 0
  %1328 = vmatpush1.bf16.msra.mxu0 %v538
  %1329 = vmatprep.subr.bf16.mxu0 0
  %1330 = vmatpush1.bf16.msra.mxu0 %v541
  %1331 = vmatprep.subr.bf16.mxu0 0
  %1332 = vmatpush1.bf16.msra.mxu0 0
  %1333 = vmatprep.subr.bf16.mxu0 0
  %1334 = vmatpush1.bf16.msra.mxu0 0
  %1335 = vmatprep.subr.bf16.mxu0 0
  %1336 = vmatpush1.bf16.msra.mxu0 0
  %1337 = vmatprep.subr.bf16.mxu0 0
  %1338 = vmatpush1.bf16.msra.mxu0 0
  %1339 = vmatprep.subr.bf16.mxu0 0
  %1340 = vmatpush1.bf16.msra.mxu0 0
  %1341 = vmatprep.subr.bf16.mxu0 0
  %1342 = vmatpush1.bf16.msra.mxu0 0
  %1343 = vmatprep.subr.bf16.mxu0 0
  %1344 = vmatpush1.bf16.msra.mxu0 0
  %1345 = vmatprep.subr.bf16.mxu0 0
  %1346 = vmatpush1.bf16.msra.mxu0 0
  %1347 = vmatprep.mubr.bf16.mxu0 0
  %1348 = vmatmul.mubr.bf16.gmra.mrb[0].mxu0 %v1273
  %v1349 = vpop.f32.mrb[0].mxu0
  %v1350 = vadd.f32 0.0, %v1349
  %v1351 = vpop.f32.mrb[0].mxu0
  %v1352 = vpop.f32.mrb[0].mxu0
  %v1353 = vpop.f32.mrb[0].mxu0
  %1354 = vdwg.mxu0
  %v1355 = vadd.f32 %v333, %v1309
  %v1356 = vxor.u32 %v1355, 2147483648
  %v1357 = vmul.f32 %v1356, 1.442695
  %v1358 = vpow.pop %v1357
  %v1359 = vadd.f32 %v1358, 1.0
  %v1360 = vrcp.pop %v1359
  %v1361 = vmul.f32 1.0, %v1360
  %v1362 = vadd.f32 %v335, %v1311
  %v1363 = vxor.u32 %v1362, 2147483648
  %v1364 = vmul.f32 %v1363, 1.442695
  %v1365 = vpow.pop %v1364
  %v1366 = vadd.f32 %v1365, 1.0
  %v1367 = vrcp.pop %v1366
  %v1368 = vmul.f32 1.0, %v1367
  %v1369 = vmul.f32 %v1361, %v1350
  %v1370 = vadd.f32 %v400, %v1369
  %v1371 = vtanh.pop %v1370
  %v1372 = vsub.f32 1.0, %v1368
  %v1373 = vmul.f32 %v1372, %v1371
  %v1374 = vmul.f32 %v1368, %v1272
  %v1375 = vadd.f32 %v1373, %v1374
  %v1376 = vld [vmem:[%s0 + $0x30] sm:$0xff]
  %1378 = vset.pattern.permute.xlu0 0
  %1379 = vperm.xlu0 %1378, %v1376
  %v1380 = vpop.permute.xlu0 %1379
  %v1382 = vmul.f32 %v1380, %v1375
  %v1383 = vsub.f32 1.0, %v1376
  %1385 = vset.pattern.permute.xlu0 0
  %1386 = vperm.xlu0 %1385, %v1383
  %v1387 = vpop.permute.xlu0 %1386
  %v1389 = vmul.f32 %v1387, %v1272
  %v1390 = vadd.f32 %v1382, %v1389
  %v1391 = vpack.c.bf16 %v1390, %v1390
  %1392 = vmatprep.subr.bf16.mxu0 %v519
  %1393 = vmatpush1.bf16.msra.mxu0 %v518
  %1394 = vmatprep.subr.bf16.mxu0 %v522
  %1395 = vmatpush1.bf16.msra.mxu0 %v521
  %1396 = vmatprep.subr.bf16.mxu0 %v525
  %1397 = vmatpush1.bf16.msra.mxu0 %v524
  %1398 = vmatprep.subr.bf16.mxu0 %v528
  %1399 = vmatpush1.bf16.msra.mxu0 %v527
  %1400 = vmatprep.subr.bf16.mxu0 %v531
  %1401 = vmatpush1.bf16.msra.mxu0 %v530
  %1402 = vmatprep.subr.bf16.mxu0 %v534
  %1403 = vmatpush1.bf16.msra.mxu0 %v533
  %1404 = vmatprep.subr.bf16.mxu0 %v537
  %1405 = vmatpush1.bf16.msra.mxu0 %v536
  %1406 = vmatprep.subr.bf16.mxu0 %v540
  %1407 = vmatpush1.bf16.msra.mxu0 %v539
  %1408 = vmatprep.subr.bf16.mxu0 0
  %1409 = vmatpush1.bf16.msra.mxu0 0
  %1410 = vmatprep.subr.bf16.mxu0 0
  %1411 = vmatpush1.bf16.msra.mxu0 0
  %1412 = vmatprep.subr.bf16.mxu0 0
  %1413 = vmatpush1.bf16.msra.mxu0 0
  %1414 = vmatprep.subr.bf16.mxu0 0
  %1415 = vmatpush1.bf16.msra.mxu0 0
  %1416 = vmatprep.subr.bf16.mxu0 0
  %1417 = vmatpush1.bf16.msra.mxu0 0
  %1418 = vmatprep.subr.bf16.mxu0 0
  %1419 = vmatpush1.bf16.msra.mxu0 0
  %1420 = vmatprep.subr.bf16.mxu0 0
  %1421 = vmatpush1.bf16.msra.mxu0 0
  %1422 = vmatprep.subr.bf16.mxu0 0
  %1423 = vmatpush1.bf16.msra.mxu0 0
  %1424 = vmatprep.mubr.bf16.mxu0 0
  %1425 = vmatmul.mubr.bf16.gmra.mrb[0].mxu0 %v1391
  %v1426 = vpop.f32.mrb[0].mxu0
  %v1427 = vadd.f32 0.0, %v1426
  %v1428 = vpop.f32.mrb[0].mxu0
  %v1429 = vadd.f32 0.0, %v1428
  %v1430 = vpop.f32.mrb[0].mxu0
  %v1431 = vpop.f32.mrb[0].mxu0
  %1432 = vdwg.mxu0
  %1433 = vmatprep.subr.bf16.mxu0 0
  %1434 = vmatpush1.bf16.msra.mxu0 %v520
  %1435 = vmatprep.subr.bf16.mxu0 0
  %1436 = vmatpush1.bf16.msra.mxu0 %v523
  %1437 = vmatprep.subr.bf16.mxu0 0
  %1438 = vmatpush1.bf16.msra.mxu0 %v526
  %1439 = vmatprep.subr.bf16.mxu0 0
  %1440 = vmatpush1.bf16.msra.mxu0 %v529
  %1441 = vmatprep.subr.bf16.mxu0 0
  %1442 = vmatpush1.bf16.msra.mxu0 %v532
  %1443 = vmatprep.subr.bf16.mxu0 0
  %1444 = vmatpush1.bf16.msra.mxu0 %v535
  %1445 = vmatprep.subr.bf16.mxu0 0
  %1446 = vmatpush1.bf16.msra.mxu0 %v538
  %1447 = vmatprep.subr.bf16.mxu0 0
  %1448 = vmatpush1.bf16.msra.mxu0 %v541
  %1449 = vmatprep.subr.bf16.mxu0 0
  %1450 = vmatpush1.bf16.msra.mxu0 0
  %1451 = vmatprep.subr.bf16.mxu0 0
  %1452 = vmatpush1.bf16.msra.mxu0 0
  %1453 = vmatprep.subr.bf16.mxu0 0
  %1454 = vmatpush1.bf16.msra.mxu0 0
  %1455 = vmatprep.subr.bf16.mxu0 0
  %1456 = vmatpush1.bf16.msra.mxu0 0
  %1457 = vmatprep.subr.bf16.mxu0 0
  %1458 = vmatpush1.bf16.msra.mxu0 0
  %1459 = vmatprep.subr.bf16.mxu0 0
  %1460 = vmatpush1.bf16.msra.mxu0 0
  %1461 = vmatprep.subr.bf16.mxu0 0
  %1462 = vmatpush1.bf16.msra.mxu0 0
  %1463 = vmatprep.subr.bf16.mxu0 0
  %1464 = vmatpush1.bf16.msra.mxu0 0
  %1465 = vmatprep.mubr.bf16.mxu0 0
  %1466 = vmatmul.mubr.bf16.gmra.mrb[0].mxu0 %v1391
  %v1467 = vpop.f32.mrb[0].mxu0
  %v1468 = vadd.f32 0.0, %v1467
  %v1469 = vpop.f32.mrb[0].mxu0
  %v1470 = vpop.f32.mrb[0].mxu0
  %v1471 = vpop.f32.mrb[0].mxu0
  %1472 = vdwg.mxu0
  %v1473 = vadd.f32 %v337, %v1427
  %v1474 = vxor.u32 %v1473, 2147483648
  %v1475 = vmul.f32 %v1474, 1.442695
  %v1476 = vpow.pop %v1475
  %v1477 = vadd.f32 %v1476, 1.0
  %v1478 = vrcp.pop %v1477
  %v1479 = vmul.f32 1.0, %v1478
  %v1480 = vadd.f32 %v339, %v1429
  %v1481 = vxor.u32 %v1480, 2147483648
  %v1482 = vmul.f32 %v1481, 1.442695
  %v1483 = vpow.pop %v1482
  %v1484 = vadd.f32 %v1483, 1.0
  %v1485 = vrcp.pop %v1484
  %v1486 = vmul.f32 1.0, %v1485
  %v1487 = vmul.f32 %v1479, %v1468
  %v1488 = vadd.f32 %v403, %v1487
  %v1489 = vtanh.pop %v1488
  %v1490 = vsub.f32 1.0, %v1486
  %v1491 = vmul.f32 %v1490, %v1489
  %v1492 = vmul.f32 %v1486, %v1390
  %v1493 = vadd.f32 %v1491, %v1492
  %v1494 = vld [vmem:[%s0 + $0x38] sm:$0xff]
  %1496 = vset.pattern.permute.xlu0 0
  %1497 = vperm.xlu0 %1496, %v1494
  %v1498 = vpop.permute.xlu0 %1497
  %v1500 = vmul.f32 %v1498, %v1493
  %v1501 = vsub.f32 1.0, %v1494
  %1503 = vset.pattern.permute.xlu0 0
  %1504 = vperm.xlu0 %1503, %v1501
  %v1505 = vpop.permute.xlu0 %1504
  %v1507 = vmul.f32 %v1505, %v1390
  %v1508 = vadd.f32 %v1500, %v1507
  %v1509 = vld [vmem:[%s2] sm:$0xf]
  %v1510 = vld [vmem:[%s2 + $0x4] sm:$0xf]
  %v1511 = vld [vmem:[%s2 + $0x8] sm:$0xf]
  %v1512 = vld [vmem:[%s2 + $0xc] sm:$0xf]
  %v1513 = vld [vmem:[%s2 + $0x10] sm:$0xf]
  %v1514 = vld [vmem:[%s2 + $0x14] sm:$0xf]
  %v1515 = vld [vmem:[%s2 + $0x18] sm:$0xf]
  %v1516 = vld [vmem:[%s2 + $0x1c] sm:$0xf]
  %v1517 = vld [vmem:[%s7] sm:$0xff]
  %v1518 = vld [vmem:[%s7 + $0x8] sm:$0xf]
  %v1519 = vld [vmem:[%s7 + $0xc] sm:$0xff]
  %v1520 = vld [vmem:[%s7 + $0x14] sm:$0xf]
  %v1521 = vld [vmem:[%s7 + $0x18] sm:$0xff]
  %v1522 = vld [vmem:[%s7 + $0x20] sm:$0xf]
  %v1523 = vld [vmem:[%s7 + $0x24] sm:$0xff]
  %v1524 = vld [vmem:[%s7 + $0x2c] sm:$0xf]
  %v1525 = vld [vmem:[%s7 + $0x30] sm:$0xff]
  %v1526 = vld [vmem:[%s7 + $0x38] sm:$0xf]
  %v1527 = vld [vmem:[%s7 + $0x3c] sm:$0xff]
  %v1528 = vld [vmem:[%s7 + $0x44] sm:$0xf]
  %v1529 = vld [vmem:[%s7 + $0x48] sm:$0xff]
  %v1530 = vld [vmem:[%s7 + $0x50] sm:$0xf]
  %v1531 = vld [vmem:[%s7 + $0x54] sm:$0xff]
  %v1532 = vld [vmem:[%s7 + $0x5c] sm:$0xf]
  %v1533 = vld [vmem:[%s7 + $0x60] sm:$0xff]
  %v1534 = vld [vmem:[%s7 + $0x68] sm:$0xf]
  %v1535 = vld [vmem:[%s7 + $0x6c] sm:$0xff]
  %v1536 = vld [vmem:[%s7 + $0x74] sm:$0xf]
  %v1537 = vld [vmem:[%s7 + $0x78] sm:$0xff]
  %v1538 = vld [vmem:[%s7 + $0x80] sm:$0xf]
  %v1539 = vld [vmem:[%s7 + $0x84] sm:$0xff]
  %v1540 = vld [vmem:[%s7 + $0x8c] sm:$0xf]
  %v1541 = vld [vmem:[%s7 + $0x90] sm:$0xff]
  %v1542 = vld [vmem:[%s7 + $0x98] sm:$0xf]
  %v1543 = vld [vmem:[%s7 + $0x9c] sm:$0xff]
  %v1544 = vld [vmem:[%s7 + $0xa4] sm:$0xf]
  %v1545 = vld [vmem:[%s7 + $0xa8] sm:$0xff]
  %v1546 = vld [vmem:[%s7 + $0xb0] sm:$0xf]
  %v1547 = vld [vmem:[%s7 + $0xb4] sm:$0xff]
  %v1548 = vld [vmem:[%s7 + $0xbc] sm:$0xf]
  %v1549 = vld [vmem:[%s9] sm:$0x7]
  %v1551 = vlaneseq
  %v1552 = vshrl.u32 %v1551, 7
  %v1553 = vsub.s32 0, %v1552
  %v1554 = vrot.slane %v1549, %v1553
  %v1555 = vlaneseq
  %v1556 = vshrl.u32 %v1555, 7
  %v1557 = vsub.s32 1, %v1556
  %v1558 = vrot.slane %v1549, %v1557
  %v1559 = vlaneseq
  %v1560 = vshrl.u32 %v1559, 7
  %v1561 = vsub.s32 2, %v1560
  %v1562 = vrot.slane %v1549, %v1561
  %v1574 = vunpack.c.l.b16 %v1509
  %v1575 = vunpack.c.l.b16 %v1510
  %v1576 = vunpack.c.l.b16 %v1511
  %v1577 = vunpack.c.l.b16 %v1512
  %v1578 = vunpack.c.l.b16 %v1513
  %v1579 = vunpack.c.l.b16 %v1514
  %v1580 = vunpack.c.l.b16 %v1515
  %v1581 = vunpack.c.l.b16 %v1516
  %v1582 = vpack.c.b16 %v1575, %v1574
  %v1583 = vpack.c.b16 %v1577, %v1576
  %v1584 = vpack.c.b16 %v1579, %v1578
  %v1585 = vpack.c.b16 %v1581, %v1580
  %v1622 = vunpack.c.l.b16 %v1517
  %v1623 = vunpack.c.h.b16 %v1517
  %v1624 = vunpack.c.l.b16 %v1518
  %v1625 = vunpack.c.l.b16 %v1519
  %v1626 = vunpack.c.h.b16 %v1519
  %v1627 = vunpack.c.l.b16 %v1520
  %v1628 = vunpack.c.l.b16 %v1521
  %v1629 = vunpack.c.h.b16 %v1521
  %v1630 = vunpack.c.l.b16 %v1522
  %v1631 = vunpack.c.l.b16 %v1523
  %v1632 = vunpack.c.h.b16 %v1523
  %v1633 = vunpack.c.l.b16 %v1524
  %v1634 = vunpack.c.l.b16 %v1525
  %v1635 = vunpack.c.h.b16 %v1525
  %v1636 = vunpack.c.l.b16 %v1526
  %v1637 = vunpack.c.l.b16 %v1527
  %v1638 = vunpack.c.h.b16 %v1527
  %v1639 = vunpack.c.l.b16 %v1528
  %v1640 = vunpack.c.l.b16 %v1529
  %v1641 = vunpack.c.h.b16 %v1529
  %v1642 = vunpack.c.l.b16 %v1530
  %v1643 = vunpack.c.l.b16 %v1531
  %v1644 = vunpack.c.h.b16 %v1531
  %v1645 = vunpack.c.l.b16 %v1532
  %v1646 = vunpack.c.l.b16 %v1533
  %v1647 = vunpack.c.h.b16 %v1533
  %v1648 = vunpack.c.l.b16 %v1534
  %v1649 = vunpack.c.l.b16 %v1535
  %v1650 = vunpack.c.h.b16 %v1535
  %v1651 = vunpack.c.l.b16 %v1536
  %v1652 = vunpack.c.l.b16 %v1537
  %v1653 = vunpack.c.h.b16 %v1537
  %v1654 = vunpack.c.l.b16 %v1538
  %v1655 = vunpack.c.l.b16 %v1539
  %v1656 = vunpack.c.h.b16 %v1539
  %v1657 = vunpack.c.l.b16 %v1540
  %v1658 = vunpack.c.l.b16 %v1541
  %v1659 = vunpack.c.h.b16 %v1541
  %v1660 = vunpack.c.l.b16 %v1542
  %v1661 = vunpack.c.l.b16 %v1543
  %v1662 = vunpack.c.h.b16 %v1543
  %v1663 = vunpack.c.l.b16 %v1544
  %v1664 = vunpack.c.l.b16 %v1545
  %v1665 = vunpack.c.h.b16 %v1545
  %v1666 = vunpack.c.l.b16 %v1546
  %v1667 = vunpack.c.l.b16 %v1547
  %v1668 = vunpack.c.h.b16 %v1547
  %v1669 = vunpack.c.l.b16 %v1548
  %v1670 = vpack.c.b16 %v1625, %v1622
  %v1671 = vpack.c.b16 %v1626, %v1623
  %v1672 = vpack.c.b16 %v1627, %v1624
  %v1673 = vpack.c.b16 %v1631, %v1628
  %v1674 = vpack.c.b16 %v1632, %v1629
  %v1675 = vpack.c.b16 %v1633, %v1630
  %v1676 = vpack.c.b16 %v1637, %v1634
  %v1677 = vpack.c.b16 %v1638, %v1635
  %v1678 = vpack.c.b16 %v1639, %v1636
  %v1679 = vpack.c.b16 %v1643, %v1640
  %v1680 = vpack.c.b16 %v1644, %v1641
  %v1681 = vpack.c.b16 %v1645, %v1642
  %v1682 = vpack.c.b16 %v1649, %v1646
  %v1683 = vpack.c.b16 %v1650, %v1647
  %v1684 = vpack.c.b16 %v1651, %v1648
  %v1685 = vpack.c.b16 %v1655, %v1652
  %v1686 = vpack.c.b16 %v1656, %v1653
  %v1687 = vpack.c.b16 %v1657, %v1654
  %v1688 = vpack.c.b16 %v1661, %v1658
  %v1689 = vpack.c.b16 %v1662, %v1659
  %v1690 = vpack.c.b16 %v1663, %v1660
  %v1691 = vpack.c.b16 %v1667, %v1664
  %v1692 = vpack.c.b16 %v1668, %v1665
  %v1693 = vpack.c.b16 %v1669, %v1666
  %1718 = vmatprep.subr.bf16.mxu0 %v1671
  %1719 = vmatpush1.bf16.msra.mxu0 %v1670
  %1720 = vmatprep.subr.bf16.mxu0 %v1674
  %1721 = vmatpush1.bf16.msra.mxu0 %v1673
  %1722 = vmatprep.subr.bf16.mxu0 %v1677
  %1723 = vmatpush1.bf16.msra.mxu0 %v1676
  %1724 = vmatprep.subr.bf16.mxu0 %v1680
  %1725 = vmatpush1.bf16.msra.mxu0 %v1679
  %1726 = vmatprep.subr.bf16.mxu0 %v1683
  %1727 = vmatpush1.bf16.msra.mxu0 %v1682
  %1728 = vmatprep.subr.bf16.mxu0 %v1686
  %1729 = vmatpush1.bf16.msra.mxu0 %v1685
  %1730 = vmatprep.subr.bf16.mxu0 %v1689
  %1731 = vmatpush1.bf16.msra.mxu0 %v1688
  %1732 = vmatprep.subr.bf16.mxu0 %v1692
  %1733 = vmatpush1.bf16.msra.mxu0 %v1691
  %1734 = vmatprep.subr.bf16.mxu0 0
  %1735 = vmatpush1.bf16.msra.mxu0 0
  %1736 = vmatprep.subr.bf16.mxu0 0
  %1737 = vmatpush1.bf16.msra.mxu0 0
  %1738 = vmatprep.subr.bf16.mxu0 0
  %1739 = vmatpush1.bf16.msra.mxu0 0
  %1740 = vmatprep.subr.bf16.mxu0 0
  %1741 = vmatpush1.bf16.msra.mxu0 0
  %1742 = vmatprep.subr.bf16.mxu0 0
  %1743 = vmatpush1.bf16.msra.mxu0 0
  %1744 = vmatprep.subr.bf16.mxu0 0
  %1745 = vmatpush1.bf16.msra.mxu0 0
  %1746 = vmatprep.subr.bf16.mxu0 0
  %1747 = vmatpush1.bf16.msra.mxu0 0
  %1748 = vmatprep.subr.bf16.mxu0 0
  %1749 = vmatpush1.bf16.msra.mxu0 0
  %1750 = vmatprep.mubr.bf16.mxu0 0
  %1751 = vmatmul.mubr.bf16.gmra.mrb[0].mxu0 %v1582
  %v1752 = vpop.f32.mrb[0].mxu0
  %v1753 = vadd.f32 %v1554, %v1752
  %v1754 = vpop.f32.mrb[0].mxu0
  %v1755 = vadd.f32 %v1558, %v1754
  %v1756 = vpop.f32.mrb[0].mxu0
  %v1757 = vadd.f32 %v1554, %v1756
  %v1758 = vpop.f32.mrb[0].mxu0
  %v1759 = vadd.f32 %v1558, %v1758
  %1760 = vmatprep.mubr.bf16.mxu0 0
  %1761 = vmatmul.mubr.bf16.gmra.mrb[0].mxu0 %v1583
  %v1762 = vpop.f32.mrb[0].mxu0
  %v1763 = vadd.f32 %v1554, %v1762
  %v1764 = vpop.f32.mrb[0].mxu0
  %v1765 = vadd.f32 %v1558, %v1764
  %v1766 = vpop.f32.mrb[0].mxu0
  %v1767 = vadd.f32 %v1554, %v1766
  %v1768 = vpop.f32.mrb[0].mxu0
  %v1769 = vadd.f32 %v1558, %v1768
  %1770 = vmatprep.mubr.bf16.mxu0 0
  %1771 = vmatmul.mubr.bf16.gmra.mrb[0].mxu0 %v1584
  %v1772 = vpop.f32.mrb[0].mxu0
  %v1773 = vadd.f32 %v1554, %v1772
  %v1774 = vpop.f32.mrb[0].mxu0
  %v1775 = vadd.f32 %v1558, %v1774
  %v1776 = vpop.f32.mrb[0].mxu0
  %v1777 = vadd.f32 %v1554, %v1776
  %v1778 = vpop.f32.mrb[0].mxu0
  %v1779 = vadd.f32 %v1558, %v1778
  %1780 = vmatprep.mubr.bf16.mxu0 0
  %1781 = vmatmul.mubr.bf16.gmra.mrb[0].mxu0 %v1585
  %v1782 = vpop.f32.mrb[0].mxu0
  %v1783 = vadd.f32 %v1554, %v1782
  %v1784 = vpop.f32.mrb[0].mxu0
  %v1785 = vadd.f32 %v1558, %v1784
  %v1786 = vpop.f32.mrb[0].mxu0
  %v1787 = vadd.f32 %v1554, %v1786
  %v1788 = vpop.f32.mrb[0].mxu0
  %v1789 = vadd.f32 %v1558, %v1788
  %1790 = vdwg.mxu0
  %1791 = vmatprep.subr.bf16.mxu0 0
  %1792 = vmatpush1.bf16.msra.mxu0 %v1672
  %1793 = vmatprep.subr.bf16.mxu0 0
  %1794 = vmatpush1.bf16.msra.mxu0 %v1675
  %1795 = vmatprep.subr.bf16.mxu0 0
  %1796 = vmatpush1.bf16.msra.mxu0 %v1678
  %1797 = vmatprep.subr.bf16.mxu0 0
  %1798 = vmatpush1.bf16.msra.mxu0 %v1681
  %1799 = vmatprep.subr.bf16.mxu0 0
  %1800 = vmatpush1.bf16.msra.mxu0 %v1684
  %1801 = vmatprep.subr.bf16.mxu0 0
  %1802 = vmatpush1.bf16.msra.mxu0 %v1687
  %1803 = vmatprep.subr.bf16.mxu0 0
  %1804 = vmatpush1.bf16.msra.mxu0 %v1690
  %1805 = vmatprep.subr.bf16.mxu0 0
  %1806 = vmatpush1.bf16.msra.mxu0 %v1693
  %1807 = vmatprep.subr.bf16.mxu0 0
  %1808 = vmatpush1.bf16.msra.mxu0 0
  %1809 = vmatprep.subr.bf16.mxu0 0
  %1810 = vmatpush1.bf16.msra.mxu0 0
  %1811 = vmatprep.subr.bf16.mxu0 0
  %1812 = vmatpush1.bf16.msra.mxu0 0
  %1813 = vmatprep.subr.bf16.mxu0 0
  %1814 = vmatpush1.bf16.msra.mxu0 0
  %1815 = vmatprep.subr.bf16.mxu0 0
  %1816 = vmatpush1.bf16.msra.mxu0 0
  %1817 = vmatprep.subr.bf16.mxu0 0
  %1818 = vmatpush1.bf16.msra.mxu0 0
  %1819 = vmatprep.subr.bf16.mxu0 0
  %1820 = vmatpush1.bf16.msra.mxu0 0
  %1821 = vmatprep.subr.bf16.mxu0 0
  %1822 = vmatpush1.bf16.msra.mxu0 0
  %1823 = vmatprep.mubr.bf16.mxu0 0
  %1824 = vmatmul.mubr.bf16.gmra.mrb[0].mxu0 %v1582
  %v1825 = vpop.f32.mrb[0].mxu0
  %v1826 = vadd.f32 %v1562, %v1825
  %v1827 = vpop.f32.mrb[0].mxu0
  %v1828 = vpop.f32.mrb[0].mxu0
  %v1829 = vadd.f32 %v1562, %v1828
  %v1830 = vpop.f32.mrb[0].mxu0
  %1831 = vmatprep.mubr.bf16.mxu0 0
  %1832 = vmatmul.mubr.bf16.gmra.mrb[0].mxu0 %v1583
  %v1833 = vpop.f32.mrb[0].mxu0
  %v1834 = vadd.f32 %v1562, %v1833
  %v1835 = vpop.f32.mrb[0].mxu0
  %v1836 = vpop.f32.mrb[0].mxu0
  %v1837 = vadd.f32 %v1562, %v1836
  %v1838 = vpop.f32.mrb[0].mxu0
  %1839 = vmatprep.mubr.bf16.mxu0 0
  %1840 = vmatmul.mubr.bf16.gmra.mrb[0].mxu0 %v1584
  %v1841 = vpop.f32.mrb[0].mxu0
  %v1842 = vadd.f32 %v1562, %v1841
  %v1843 = vpop.f32.mrb[0].mxu0
  %v1844 = vpop.f32.mrb[0].mxu0
  %v1845 = vadd.f32 %v1562, %v1844
  %v1846 = vpop.f32.mrb[0].mxu0
  %1847 = vmatprep.mubr.bf16.mxu0 0
  %1848 = vmatmul.mubr.bf16.gmra.mrb[0].mxu0 %v1585
  %v1849 = vpop.f32.mrb[0].mxu0
  %v1850 = vadd.f32 %v1562, %v1849
  %v1851 = vpop.f32.mrb[0].mxu0
  %v1852 = vpop.f32.mrb[0].mxu0
  %v1853 = vadd.f32 %v1562, %v1852
  %v1854 = vpop.f32.mrb[0].mxu0
  %1855 = vdwg.mxu0
  %v1856 = vld [vmem:[%s3] sm:$0xf]
  %v1857 = vld [vmem:[%s3 + $0x4] sm:$0xf]
  %v1858 = vld [vmem:[%s3 + $0x8] sm:$0xf]
  %v1859 = vld [vmem:[%s3 + $0xc] sm:$0xf]
  %v1860 = vld [vmem:[%s3 + $0x10] sm:$0xf]
  %v1861 = vld [vmem:[%s3 + $0x14] sm:$0xf]
  %v1862 = vld [vmem:[%s3 + $0x18] sm:$0xf]
  %v1863 = vld [vmem:[%s3 + $0x1c] sm:$0xf]
  %v1864 = vld [vmem:[%s10] sm:$0xff]
  %v1865 = vld [vmem:[%s10 + $0x8] sm:$0xf]
  %v1866 = vld [vmem:[%s10 + $0xc] sm:$0xff]
  %v1867 = vld [vmem:[%s10 + $0x14] sm:$0xf]
  %v1868 = vld [vmem:[%s10 + $0x18] sm:$0xff]
  %v1869 = vld [vmem:[%s10 + $0x20] sm:$0xf]
  %v1870 = vld [vmem:[%s10 + $0x24] sm:$0xff]
  %v1871 = vld [vmem:[%s10 + $0x2c] sm:$0xf]
  %v1872 = vld [vmem:[%s10 + $0x30] sm:$0xff]
  %v1873 = vld [vmem:[%s10 + $0x38] sm:$0xf]
  %v1874 = vld [vmem:[%s10 + $0x3c] sm:$0xff]
  %v1875 = vld [vmem:[%s10 + $0x44] sm:$0xf]
  %v1876 = vld [vmem:[%s10 + $0x48] sm:$0xff]
  %v1877 = vld [vmem:[%s10 + $0x50] sm:$0xf]
  %v1878 = vld [vmem:[%s10 + $0x54] sm:$0xff]
  %v1879 = vld [vmem:[%s10 + $0x5c] sm:$0xf]
  %v1880 = vld [vmem:[%s10 + $0x60] sm:$0xff]
  %v1881 = vld [vmem:[%s10 + $0x68] sm:$0xf]
  %v1882 = vld [vmem:[%s10 + $0x6c] sm:$0xff]
  %v1883 = vld [vmem:[%s10 + $0x74] sm:$0xf]
  %v1884 = vld [vmem:[%s10 + $0x78] sm:$0xff]
  %v1885 = vld [vmem:[%s10 + $0x80] sm:$0xf]
  %v1886 = vld [vmem:[%s10 + $0x84] sm:$0xff]
  %v1887 = vld [vmem:[%s10 + $0x8c] sm:$0xf]
  %v1888 = vld [vmem:[%s10 + $0x90] sm:$0xff]
  %v1889 = vld [vmem:[%s10 + $0x98] sm:$0xf]
  %v1890 = vld [vmem:[%s10 + $0x9c] sm:$0xff]
  %v1891 = vld [vmem:[%s10 + $0xa4] sm:$0xf]
  %v1892 = vld [vmem:[%s10 + $0xa8] sm:$0xff]
  %v1893 = vld [vmem:[%s10 + $0xb0] sm:$0xf]
  %v1894 = vld [vmem:[%s10 + $0xb4] sm:$0xff]
  %v1895 = vld [vmem:[%s10 + $0xbc] sm:$0xf]
  %v1896 = vld [vmem:[%s12] sm:$0x7]
  %v1898 = vlaneseq
  %v1899 = vshrl.u32 %v1898, 7
  %v1900 = vsub.s32 0, %v1899
  %v1901 = vrot.slane %v1896, %v1900
  %v1902 = vlaneseq
  %v1903 = vshrl.u32 %v1902, 7
  %v1904 = vsub.s32 1, %v1903
  %v1905 = vrot.slane %v1896, %v1904
  %v1906 = vlaneseq
  %v1907 = vshrl.u32 %v1906, 7
  %v1908 = vsub.s32 2, %v1907
  %v1909 = vrot.slane %v1896, %v1908
  %v1921 = vunpack.c.l.b16 %v1856
  %v1922 = vunpack.c.l.b16 %v1857
  %v1923 = vunpack.c.l.b16 %v1858
  %v1924 = vunpack.c.l.b16 %v1859
  %v1925 = vunpack.c.l.b16 %v1860
  %v1926 = vunpack.c.l.b16 %v1861
  %v1927 = vunpack.c.l.b16 %v1862
  %v1928 = vunpack.c.l.b16 %v1863
  %v1929 = vpack.c.b16 %v1922, %v1921
  %v1930 = vpack.c.b16 %v1924, %v1923
  %v1931 = vpack.c.b16 %v1926, %v1925
  %v1932 = vpack.c.b16 %v1928, %v1927
  %v1969 = vunpack.c.l.b16 %v1864
  %v1970 = vunpack.c.h.b16 %v1864
  %v1971 = vunpack.c.l.b16 %v1865
  %v1972 = vunpack.c.l.b16 %v1866
  %v1973 = vunpack.c.h.b16 %v1866
  %v1974 = vunpack.c.l.b16 %v1867
  %v1975 = vunpack.c.l.b16 %v1868
  %v1976 = vunpack.c.h.b16 %v1868
  %v1977 = vunpack.c.l.b16 %v1869
  %v1978 = vunpack.c.l.b16 %v1870
  %v1979 = vunpack.c.h.b16 %v1870
  %v1980 = vunpack.c.l.b16 %v1871
  %v1981 = vunpack.c.l.b16 %v1872
  %v1982 = vunpack.c.h.b16 %v1872
  %v1983 = vunpack.c.l.b16 %v1873
  %v1984 = vunpack.c.l.b16 %v1874
  %v1985 = vunpack.c.h.b16 %v1874
  %v1986 = vunpack.c.l.b16 %v1875
  %v1987 = vunpack.c.l.b16 %v1876
  %v1988 = vunpack.c.h.b16 %v1876
  %v1989 = vunpack.c.l.b16 %v1877
  %v1990 = vunpack.c.l.b16 %v1878
  %v1991 = vunpack.c.h.b16 %v1878
  %v1992 = vunpack.c.l.b16 %v1879
  %v1993 = vunpack.c.l.b16 %v1880
  %v1994 = vunpack.c.h.b16 %v1880
  %v1995 = vunpack.c.l.b16 %v1881
  %v1996 = vunpack.c.l.b16 %v1882
  %v1997 = vunpack.c.h.b16 %v1882
  %v1998 = vunpack.c.l.b16 %v1883
  %v1999 = vunpack.c.l.b16 %v1884
  %v2000 = vunpack.c.h.b16 %v1884
  %v2001 = vunpack.c.l.b16 %v1885
  %v2002 = vunpack.c.l.b16 %v1886
  %v2003 = vunpack.c.h.b16 %v1886
  %v2004 = vunpack.c.l.b16 %v1887
  %v2005 = vunpack.c.l.b16 %v1888
  %v2006 = vunpack.c.h.b16 %v1888
  %v2007 = vunpack.c.l.b16 %v1889
  %v2008 = vunpack.c.l.b16 %v1890
  %v2009 = vunpack.c.h.b16 %v1890
  %v2010 = vunpack.c.l.b16 %v1891
  %v2011 = vunpack.c.l.b16 %v1892
  %v2012 = vunpack.c.h.b16 %v1892
  %v2013 = vunpack.c.l.b16 %v1893
  %v2014 = vunpack.c.l.b16 %v1894
  %v2015 = vunpack.c.h.b16 %v1894
  %v2016 = vunpack.c.l.b16 %v1895
  %v2017 = vpack.c.b16 %v1972, %v1969
  %v2018 = vpack.c.b16 %v1973, %v1970
  %v2019 = vpack.c.b16 %v1974, %v1971
  %v2020 = vpack.c.b16 %v1978, %v1975
  %v2021 = vpack.c.b16 %v1979, %v1976
  %v2022 = vpack.c.b16 %v1980, %v1977
  %v2023 = vpack.c.b16 %v1984, %v1981
  %v2024 = vpack.c.b16 %v1985, %v1982
  %v2025 = vpack.c.b16 %v1986, %v1983
  %v2026 = vpack.c.b16 %v1990, %v1987
  %v2027 = vpack.c.b16 %v1991, %v1988
  %v2028 = vpack.c.b16 %v1992, %v1989
  %v2029 = vpack.c.b16 %v1996, %v1993
  %v2030 = vpack.c.b16 %v1997, %v1994
  %v2031 = vpack.c.b16 %v1998, %v1995
  %v2032 = vpack.c.b16 %v2002, %v1999
  %v2033 = vpack.c.b16 %v2003, %v2000
  %v2034 = vpack.c.b16 %v2004, %v2001
  %v2035 = vpack.c.b16 %v2008, %v2005
  %v2036 = vpack.c.b16 %v2009, %v2006
  %v2037 = vpack.c.b16 %v2010, %v2007
  %v2038 = vpack.c.b16 %v2014, %v2011
  %v2039 = vpack.c.b16 %v2015, %v2012
  %v2040 = vpack.c.b16 %v2016, %v2013
  %2065 = vmatprep.subr.bf16.mxu0 %v2018
  %2066 = vmatpush1.bf16.msra.mxu0 %v2017
  %2067 = vmatprep.subr.bf16.mxu0 %v2021
  %2068 = vmatpush1.bf16.msra.mxu0 %v2020
  %2069 = vmatprep.subr.bf16.mxu0 %v2024
  %2070 = vmatpush1.bf16.msra.mxu0 %v2023
  %2071 = vmatprep.subr.bf16.mxu0 %v2027
  %2072 = vmatpush1.bf16.msra.mxu0 %v2026
  %2073 = vmatprep.subr.bf16.mxu0 %v2030
  %2074 = vmatpush1.bf16.msra.mxu0 %v2029
  %2075 = vmatprep.subr.bf16.mxu0 %v2033
  %2076 = vmatpush1.bf16.msra.mxu0 %v2032
  %2077 = vmatprep.subr.bf16.mxu0 %v2036
  %2078 = vmatpush1.bf16.msra.mxu0 %v2035
  %2079 = vmatprep.subr.bf16.mxu0 %v2039
  %2080 = vmatpush1.bf16.msra.mxu0 %v2038
  %2081 = vmatprep.subr.bf16.mxu0 0
  %2082 = vmatpush1.bf16.msra.mxu0 0
  %2083 = vmatprep.subr.bf16.mxu0 0
  %2084 = vmatpush1.bf16.msra.mxu0 0
  %2085 = vmatprep.subr.bf16.mxu0 0
  %2086 = vmatpush1.bf16.msra.mxu0 0
  %2087 = vmatprep.subr.bf16.mxu0 0
  %2088 = vmatpush1.bf16.msra.mxu0 0
  %2089 = vmatprep.subr.bf16.mxu0 0
  %2090 = vmatpush1.bf16.msra.mxu0 0
  %2091 = vmatprep.subr.bf16.mxu0 0
  %2092 = vmatpush1.bf16.msra.mxu0 0
  %2093 = vmatprep.subr.bf16.mxu0 0
  %2094 = vmatpush1.bf16.msra.mxu0 0
  %2095 = vmatprep.subr.bf16.mxu0 0
  %2096 = vmatpush1.bf16.msra.mxu0 0
  %2097 = vmatprep.mubr.bf16.mxu0 0
  %2098 = vmatmul.mubr.bf16.gmra.mrb[0].mxu0 %v1929
  %v2099 = vpop.f32.mrb[0].mxu0
  %v2100 = vadd.f32 %v1901, %v2099
  %v2101 = vpop.f32.mrb[0].mxu0
  %v2102 = vadd.f32 %v1905, %v2101
  %v2103 = vpop.f32.mrb[0].mxu0
  %v2104 = vadd.f32 %v1901, %v2103
  %v2105 = vpop.f32.mrb[0].mxu0
  %v2106 = vadd.f32 %v1905, %v2105
  %2107 = vmatprep.mubr.bf16.mxu0 0
  %2108 = vmatmul.mubr.bf16.gmra.mrb[0].mxu0 %v1930
  %v2109 = vpop.f32.mrb[0].mxu0
  %v2110 = vadd.f32 %v1901, %v2109
  %v2111 = vpop.f32.mrb[0].mxu0
  %v2112 = vadd.f32 %v1905, %v2111
  %v2113 = vpop.f32.mrb[0].mxu0
  %v2114 = vadd.f32 %v1901, %v2113
  %v2115 = vpop.f32.mrb[0].mxu0
  %v2116 = vadd.f32 %v1905, %v2115
  %2117 = vmatprep.mubr.bf16.mxu0 0
  %2118 = vmatmul.mubr.bf16.gmra.mrb[0].mxu0 %v1931
  %v2119 = vpop.f32.mrb[0].mxu0
  %v2120 = vadd.f32 %v1901, %v2119
  %v2121 = vpop.f32.mrb[0].mxu0
  %v2122 = vadd.f32 %v1905, %v2121
  %v2123 = vpop.f32.mrb[0].mxu0
  %v2124 = vadd.f32 %v1901, %v2123
  %v2125 = vpop.f32.mrb[0].mxu0
  %v2126 = vadd.f32 %v1905, %v2125
  %2127 = vmatprep.mubr.bf16.mxu0 0
  %2128 = vmatmul.mubr.bf16.gmra.mrb[0].mxu0 %v1932
  %v2129 = vpop.f32.mrb[0].mxu0
  %v2130 = vadd.f32 %v1901, %v2129
  %v2131 = vpop.f32.mrb[0].mxu0
  %v2132 = vadd.f32 %v1905, %v2131
  %v2133 = vpop.f32.mrb[0].mxu0
  %v2134 = vadd.f32 %v1901, %v2133
  %v2135 = vpop.f32.mrb[0].mxu0
  %v2136 = vadd.f32 %v1905, %v2135
  %2137 = vdwg.mxu0
  %2138 = vmatprep.subr.bf16.mxu0 0
  %2139 = vmatpush1.bf16.msra.mxu0 %v2019
  %2140 = vmatprep.subr.bf16.mxu0 0
  %2141 = vmatpush1.bf16.msra.mxu0 %v2022
  %2142 = vmatprep.subr.bf16.mxu0 0
  %2143 = vmatpush1.bf16.msra.mxu0 %v2025
  %2144 = vmatprep.subr.bf16.mxu0 0
  %2145 = vmatpush1.bf16.msra.mxu0 %v2028
  %2146 = vmatprep.subr.bf16.mxu0 0
  %2147 = vmatpush1.bf16.msra.mxu0 %v2031
  %2148 = vmatprep.subr.bf16.mxu0 0
  %2149 = vmatpush1.bf16.msra.mxu0 %v2034
  %2150 = vmatprep.subr.bf16.mxu0 0
  %2151 = vmatpush1.bf16.msra.mxu0 %v2037
  %2152 = vmatprep.subr.bf16.mxu0 0
  %2153 = vmatpush1.bf16.msra.mxu0 %v2040
  %2154 = vmatprep.subr.bf16.mxu0 0
  %2155 = vmatpush1.bf16.msra.mxu0 0
  %2156 = vmatprep.subr.bf16.mxu0 0
  %2157 = vmatpush1.bf16.msra.mxu0 0
  %2158 = vmatprep.subr.bf16.mxu0 0
  %2159 = vmatpush1.bf16.msra.mxu0 0
  %2160 = vmatprep.subr.bf16.mxu0 0
  %2161 = vmatpush1.bf16.msra.mxu0 0
  %2162 = vmatprep.subr.bf16.mxu0 0
  %2163 = vmatpush1.bf16.msra.mxu0 0
  %2164 = vmatprep.subr.bf16.mxu0 0
  %2165 = vmatpush1.bf16.msra.mxu0 0
  %2166 = vmatprep.subr.bf16.mxu0 0
  %2167 = vmatpush1.bf16.msra.mxu0 0
  %2168 = vmatprep.subr.bf16.mxu0 0
  %2169 = vmatpush1.bf16.msra.mxu0 0
  %2170 = vmatprep.mubr.bf16.mxu0 0
  %2171 = vmatmul.mubr.bf16.gmra.mrb[0].mxu0 %v1929
  %v2172 = vpop.f32.mrb[0].mxu0
  %v2173 = vadd.f32 %v1909, %v2172
  %v2174 = vpop.f32.mrb[0].mxu0
  %v2175 = vpop.f32.mrb[0].mxu0
  %v2176 = vadd.f32 %v1909, %v2175
  %v2177 = vpop.f32.mrb[0].mxu0
  %2178 = vmatprep.mubr.bf16.mxu0 0
  %2179 = vmatmul.mubr.bf16.gmra.mrb[0].mxu0 %v1930
  %v2180 = vpop.f32.mrb[0].mxu0
  %v2181 = vadd.f32 %v1909, %v2180
  %v2182 = vpop.f32.mrb[0].mxu0
  %v2183 = vpop.f32.mrb[0].mxu0
  %v2184 = vadd.f32 %v1909, %v2183
  %v2185 = vpop.f32.mrb[0].mxu0
  %2186 = vmatprep.mubr.bf16.mxu0 0
  %2187 = vmatmul.mubr.bf16.gmra.mrb[0].mxu0 %v1931
  %v2188 = vpop.f32.mrb[0].mxu0
  %v2189 = vadd.f32 %v1909, %v2188
  %v2190 = vpop.f32.mrb[0].mxu0
  %v2191 = vpop.f32.mrb[0].mxu0
  %v2192 = vadd.f32 %v1909, %v2191
  %v2193 = vpop.f32.mrb[0].mxu0
  %2194 = vmatprep.mubr.bf16.mxu0 0
  %2195 = vmatmul.mubr.bf16.gmra.mrb[0].mxu0 %v1932
  %v2196 = vpop.f32.mrb[0].mxu0
  %v2197 = vadd.f32 %v1909, %v2196
  %v2198 = vpop.f32.mrb[0].mxu0
  %v2199 = vpop.f32.mrb[0].mxu0
  %v2200 = vadd.f32 %v1909, %v2199
  %v2201 = vpop.f32.mrb[0].mxu0
  %2202 = vdwg.mxu0
  %v2203 = vld [vmem:[%s8] sm:$0xff]
  %v2204 = vld [vmem:[%s8 + $0x8] sm:$0xf]
  %v2205 = vld [vmem:[%s8 + $0xc] sm:$0xff]
  %v2206 = vld [vmem:[%s8 + $0x14] sm:$0xf]
  %v2207 = vld [vmem:[%s8 + $0x18] sm:$0xff]
  %v2208 = vld [vmem:[%s8 + $0x20] sm:$0xf]
  %v2209 = vld [vmem:[%s8 + $0x24] sm:$0xff]
  %v2210 = vld [vmem:[%s8 + $0x2c] sm:$0xf]
  %v2211 = vld [vmem:[%s8 + $0x30] sm:$0xff]
  %v2212 = vld [vmem:[%s8 + $0x38] sm:$0xf]
  %v2213 = vld [vmem:[%s8 + $0x3c] sm:$0xff]
  %v2214 = vld [vmem:[%s8 + $0x44] sm:$0xf]
  %v2215 = vld [vmem:[%s8 + $0x48] sm:$0xff]
  %v2216 = vld [vmem:[%s8 + $0x50] sm:$0xf]
  %v2217 = vld [vmem:[%s8 + $0x54] sm:$0xff]
  %v2218 = vld [vmem:[%s8 + $0x5c] sm:$0xf]
  %v2219 = vld [vmem:[%s8 + $0x60] sm:$0xff]
  %v2220 = vld [vmem:[%s8 + $0x68] sm:$0xf]
  %v2221 = vld [vmem:[%s8 + $0x6c] sm:$0xff]
  %v2222 = vld [vmem:[%s8 + $0x74] sm:$0xf]
  %v2223 = vld [vmem:[%s8 + $0x78] sm:$0xff]
  %v2224 = vld [vmem:[%s8 + $0x80] sm:$0xf]
  %v2225 = vld [vmem:[%s8 + $0x84] sm:$0xff]
  %v2226 = vld [vmem:[%s8 + $0x8c] sm:$0xf]
  %v2227 = vld [vmem:[%s8 + $0x90] sm:$0xff]
  %v2228 = vld [vmem:[%s8 + $0x98] sm:$0xf]
  %v2229 = vld [vmem:[%s8 + $0x9c] sm:$0xff]
  %v2230 = vld [vmem:[%s8 + $0xa4] sm:$0xf]
  %v2231 = vld [vmem:[%s8 + $0xa8] sm:$0xff]
  %v2232 = vld [vmem:[%s8 + $0xb0] sm:$0xf]
  %v2233 = vld [vmem:[%s8 + $0xb4] sm:$0xff]
  %v2234 = vld [vmem:[%s8 + $0xbc] sm:$0xf]
  %v2235 = vld [vmem:[%s11] sm:$0xff]
  %v2236 = vld [vmem:[%s11 + $0x8] sm:$0xf]
  %v2237 = vld [vmem:[%s11 + $0xc] sm:$0xff]
  %v2238 = vld [vmem:[%s11 + $0x14] sm:$0xf]
  %v2239 = vld [vmem:[%s11 + $0x18] sm:$0xff]
  %v2240 = vld [vmem:[%s11 + $0x20] sm:$0xf]
  %v2241 = vld [vmem:[%s11 + $0x24] sm:$0xff]
  %v2242 = vld [vmem:[%s11 + $0x2c] sm:$0xf]
  %v2243 = vld [vmem:[%s11 + $0x30] sm:$0xff]
  %v2244 = vld [vmem:[%s11 + $0x38] sm:$0xf]
  %v2245 = vld [vmem:[%s11 + $0x3c] sm:$0xff]
  %v2246 = vld [vmem:[%s11 + $0x44] sm:$0xf]
  %v2247 = vld [vmem:[%s11 + $0x48] sm:$0xff]
  %v2248 = vld [vmem:[%s11 + $0x50] sm:$0xf]
  %v2249 = vld [vmem:[%s11 + $0x54] sm:$0xff]
  %v2250 = vld [vmem:[%s11 + $0x5c] sm:$0xf]
  %v2251 = vld [vmem:[%s11 + $0x60] sm:$0xff]
  %v2252 = vld [vmem:[%s11 + $0x68] sm:$0xf]
  %v2253 = vld [vmem:[%s11 + $0x6c] sm:$0xff]
  %v2254 = vld [vmem:[%s11 + $0x74] sm:$0xf]
  %v2255 = vld [vmem:[%s11 + $0x78] sm:$0xff]
  %v2256 = vld [vmem:[%s11 + $0x80] sm:$0xf]
  %v2257 = vld [vmem:[%s11 + $0x84] sm:$0xff]
  %v2258 = vld [vmem:[%s11 + $0x8c] sm:$0xf]
  %v2259 = vld [vmem:[%s11 + $0x90] sm:$0xff]
  %v2260 = vld [vmem:[%s11 + $0x98] sm:$0xf]
  %v2261 = vld [vmem:[%s11 + $0x9c] sm:$0xff]
  %v2262 = vld [vmem:[%s11 + $0xa4] sm:$0xf]
  %v2263 = vld [vmem:[%s11 + $0xa8] sm:$0xff]
  %v2264 = vld [vmem:[%s11 + $0xb0] sm:$0xf]
  %v2265 = vld [vmem:[%s11 + $0xb4] sm:$0xff]
  %v2266 = vld [vmem:[%s11 + $0xbc] sm:$0xf]
  %v2267 = vpack.c.bf16 %v1508, %v1508
  %v2300 = vunpack.c.l.b16 %v2203
  %v2301 = vunpack.c.h.b16 %v2203
  %v2302 = vunpack.c.l.b16 %v2204
  %v2303 = vunpack.c.l.b16 %v2205
  %v2304 = vunpack.c.h.b16 %v2205
  %v2305 = vunpack.c.l.b16 %v2206
  %v2306 = vunpack.c.l.b16 %v2207
  %v2307 = vunpack.c.h.b16 %v2207
  %v2308 = vunpack.c.l.b16 %v2208
  %v2309 = vunpack.c.l.b16 %v2209
  %v2310 = vunpack.c.h.b16 %v2209
  %v2311 = vunpack.c.l.b16 %v2210
  %v2312 = vunpack.c.l.b16 %v2211
  %v2313 = vunpack.c.h.b16 %v2211
  %v2314 = vunpack.c.l.b16 %v2212
  %v2315 = vunpack.c.l.b16 %v2213
  %v2316 = vunpack.c.h.b16 %v2213
  %v2317 = vunpack.c.l.b16 %v2214
  %v2318 = vunpack.c.l.b16 %v2215
  %v2319 = vunpack.c.h.b16 %v2215
  %v2320 = vunpack.c.l.b16 %v2216
  %v2321 = vunpack.c.l.b16 %v2217
  %v2322 = vunpack.c.h.b16 %v2217
  %v2323 = vunpack.c.l.b16 %v2218
  %v2324 = vunpack.c.l.b16 %v2219
  %v2325 = vunpack.c.h.b16 %v2219
  %v2326 = vunpack.c.l.b16 %v2220
  %v2327 = vunpack.c.l.b16 %v2221
  %v2328 = vunpack.c.h.b16 %v2221
  %v2329 = vunpack.c.l.b16 %v2222
  %v2330 = vunpack.c.l.b16 %v2223
  %v2331 = vunpack.c.h.b16 %v2223
  %v2332 = vunpack.c.l.b16 %v2224
  %v2333 = vunpack.c.l.b16 %v2225
  %v2334 = vunpack.c.h.b16 %v2225
  %v2335 = vunpack.c.l.b16 %v2226
  %v2336 = vunpack.c.l.b16 %v2227
  %v2337 = vunpack.c.h.b16 %v2227
  %v2338 = vunpack.c.l.b16 %v2228
  %v2339 = vunpack.c.l.b16 %v2229
  %v2340 = vunpack.c.h.b16 %v2229
  %v2341 = vunpack.c.l.b16 %v2230
  %v2342 = vunpack.c.l.b16 %v2231
  %v2343 = vunpack.c.h.b16 %v2231
  %v2344 = vunpack.c.l.b16 %v2232
  %v2345 = vunpack.c.l.b16 %v2233
  %v2346 = vunpack.c.h.b16 %v2233
  %v2347 = vunpack.c.l.b16 %v2234
  %v2348 = vpack.c.b16 %v2303, %v2300
  %v2349 = vpack.c.b16 %v2304, %v2301
  %v2350 = vpack.c.b16 %v2305, %v2302
  %v2351 = vpack.c.b16 %v2309, %v2306
  %v2352 = vpack.c.b16 %v2310, %v2307
  %v2353 = vpack.c.b16 %v2311, %v2308
  %v2354 = vpack.c.b16 %v2315, %v2312
  %v2355 = vpack.c.b16 %v2316, %v2313
  %v2356 = vpack.c.b16 %v2317, %v2314
  %v2357 = vpack.c.b16 %v2321, %v2318
  %v2358 = vpack.c.b16 %v2322, %v2319
  %v2359 = vpack.c.b16 %v2323, %v2320
  %v2360 = vpack.c.b16 %v2327, %v2324
  %v2361 = vpack.c.b16 %v2328, %v2325
  %v2362 = vpack.c.b16 %v2329, %v2326
  %v2363 = vpack.c.b16 %v2333, %v2330
  %v2364 = vpack.c.b16 %v2334, %v2331
  %v2365 = vpack.c.b16 %v2335, %v2332
  %v2366 = vpack.c.b16 %v2339, %v2336
  %v2367 = vpack.c.b16 %v2340, %v2337
  %v2368 = vpack.c.b16 %v2341, %v2338
  %v2369 = vpack.c.b16 %v2345, %v2342
  %v2370 = vpack.c.b16 %v2346, %v2343
  %v2371 = vpack.c.b16 %v2347, %v2344
  %2396 = vmatprep.subr.bf16.mxu0 %v2349
  %2397 = vmatpush1.bf16.msra.mxu0 %v2348
  %2398 = vmatprep.subr.bf16.mxu0 %v2352
  %2399 = vmatpush1.bf16.msra.mxu0 %v2351
  %2400 = vmatprep.subr.bf16.mxu0 %v2355
  %2401 = vmatpush1.bf16.msra.mxu0 %v2354
  %2402 = vmatprep.subr.bf16.mxu0 %v2358
  %2403 = vmatpush1.bf16.msra.mxu0 %v2357
  %2404 = vmatprep.subr.bf16.mxu0 %v2361
  %2405 = vmatpush1.bf16.msra.mxu0 %v2360
  %2406 = vmatprep.subr.bf16.mxu0 %v2364
  %2407 = vmatpush1.bf16.msra.mxu0 %v2363
  %2408 = vmatprep.subr.bf16.mxu0 %v2367
  %2409 = vmatpush1.bf16.msra.mxu0 %v2366
  %2410 = vmatprep.subr.bf16.mxu0 %v2370
  %2411 = vmatpush1.bf16.msra.mxu0 %v2369
  %2412 = vmatprep.subr.bf16.mxu0 0
  %2413 = vmatpush1.bf16.msra.mxu0 0
  %2414 = vmatprep.subr.bf16.mxu0 0
  %2415 = vmatpush1.bf16.msra.mxu0 0
  %2416 = vmatprep.subr.bf16.mxu0 0
  %2417 = vmatpush1.bf16.msra.mxu0 0
  %2418 = vmatprep.subr.bf16.mxu0 0
  %2419 = vmatpush1.bf16.msra.mxu0 0
  %2420 = vmatprep.subr.bf16.mxu0 0
  %2421 = vmatpush1.bf16.msra.mxu0 0
  %2422 = vmatprep.subr.bf16.mxu0 0
  %2423 = vmatpush1.bf16.msra.mxu0 0
  %2424 = vmatprep.subr.bf16.mxu0 0
  %2425 = vmatpush1.bf16.msra.mxu0 0
  %2426 = vmatprep.subr.bf16.mxu0 0
  %2427 = vmatpush1.bf16.msra.mxu0 0
  %2428 = vmatprep.mubr.bf16.mxu0 0
  %2429 = vmatmul.mubr.bf16.gmra.mrb[0].mxu0 %v2267
  %v2430 = vpop.f32.mrb[0].mxu0
  %v2431 = vadd.f32 0.0, %v2430
  %v2432 = vpop.f32.mrb[0].mxu0
  %v2433 = vadd.f32 0.0, %v2432
  %v2434 = vpop.f32.mrb[0].mxu0
  %v2435 = vpop.f32.mrb[0].mxu0
  %2436 = vdwg.mxu0
  %2437 = vmatprep.subr.bf16.mxu0 0
  %2438 = vmatpush1.bf16.msra.mxu0 %v2350
  %2439 = vmatprep.subr.bf16.mxu0 0
  %2440 = vmatpush1.bf16.msra.mxu0 %v2353
  %2441 = vmatprep.subr.bf16.mxu0 0
  %2442 = vmatpush1.bf16.msra.mxu0 %v2356
  %2443 = vmatprep.subr.bf16.mxu0 0
  %2444 = vmatpush1.bf16.msra.mxu0 %v2359
  %2445 = vmatprep.subr.bf16.mxu0 0
  %2446 = vmatpush1.bf16.msra.mxu0 %v2362
  %2447 = vmatprep.subr.bf16.mxu0 0
  %2448 = vmatpush1.bf16.msra.mxu0 %v2365
  %2449 = vmatprep.subr.bf16.mxu0 0
  %2450 = vmatpush1.bf16.msra.mxu0 %v2368
  %2451 = vmatprep.subr.bf16.mxu0 0
  %2452 = vmatpush1.bf16.msra.mxu0 %v2371
  %2453 = vmatprep.subr.bf16.mxu0 0
  %2454 = vmatpush1.bf16.msra.mxu0 0
  %2455 = vmatprep.subr.bf16.mxu0 0
  %2456 = vmatpush1.bf16.msra.mxu0 0
  %2457 = vmatprep.subr.bf16.mxu0 0
  %2458 = vmatpush1.bf16.msra.mxu0 0
  %2459 = vmatprep.subr.bf16.mxu0 0
  %2460 = vmatpush1.bf16.msra.mxu0 0
  %2461 = vmatprep.subr.bf16.mxu0 0
  %2462 = vmatpush1.bf16.msra.mxu0 0
  %2463 = vmatprep.subr.bf16.mxu0 0
  %2464 = vmatpush1.bf16.msra.mxu0 0
  %2465 = vmatprep.subr.bf16.mxu0 0
  %2466 = vmatpush1.bf16.msra.mxu0 0
  %2467 = vmatprep.subr.bf16.mxu0 0
  %2468 = vmatpush1.bf16.msra.mxu0 0
  %2469 = vmatprep.mubr.bf16.mxu0 0
  %2470 = vmatmul.mubr.bf16.gmra.mrb[0].mxu0 %v2267
  %v2471 = vpop.f32.mrb[0].mxu0
  %v2472 = vadd.f32 0.0, %v2471
  %v2473 = vpop.f32.mrb[0].mxu0
  %v2474 = vpop.f32.mrb[0].mxu0
  %v2475 = vpop.f32.mrb[0].mxu0
  %2476 = vdwg.mxu0
  %v2509 = vunpack.c.l.b16 %v2235
  %v2510 = vunpack.c.h.b16 %v2235
  %v2511 = vunpack.c.l.b16 %v2236
  %v2512 = vunpack.c.l.b16 %v2237
  %v2513 = vunpack.c.h.b16 %v2237
  %v2514 = vunpack.c.l.b16 %v2238
  %v2515 = vunpack.c.l.b16 %v2239
  %v2516 = vunpack.c.h.b16 %v2239
  %v2517 = vunpack.c.l.b16 %v2240
  %v2518 = vunpack.c.l.b16 %v2241
  %v2519 = vunpack.c.h.b16 %v2241
  %v2520 = vunpack.c.l.b16 %v2242
  %v2521 = vunpack.c.l.b16 %v2243
  %v2522 = vunpack.c.h.b16 %v2243
  %v2523 = vunpack.c.l.b16 %v2244
  %v2524 = vunpack.c.l.b16 %v2245
  %v2525 = vunpack.c.h.b16 %v2245
  %v2526 = vunpack.c.l.b16 %v2246
  %v2527 = vunpack.c.l.b16 %v2247
  %v2528 = vunpack.c.h.b16 %v2247
  %v2529 = vunpack.c.l.b16 %v2248
  %v2530 = vunpack.c.l.b16 %v2249
  %v2531 = vunpack.c.h.b16 %v2249
  %v2532 = vunpack.c.l.b16 %v2250
  %v2533 = vunpack.c.l.b16 %v2251
  %v2534 = vunpack.c.h.b16 %v2251
  %v2535 = vunpack.c.l.b16 %v2252
  %v2536 = vunpack.c.l.b16 %v2253
  %v2537 = vunpack.c.h.b16 %v2253
  %v2538 = vunpack.c.l.b16 %v2254
  %v2539 = vunpack.c.l.b16 %v2255
  %v2540 = vunpack.c.h.b16 %v2255
  %v2541 = vunpack.c.l.b16 %v2256
  %v2542 = vunpack.c.l.b16 %v2257
  %v2543 = vunpack.c.h.b16 %v2257
  %v2544 = vunpack.c.l.b16 %v2258
  %v2545 = vunpack.c.l.b16 %v2259
  %v2546 = vunpack.c.h.b16 %v2259
  %v2547 = vunpack.c.l.b16 %v2260
  %v2548 = vunpack.c.l.b16 %v2261
  %v2549 = vunpack.c.h.b16 %v2261
  %v2550 = vunpack.c.l.b16 %v2262
  %v2551 = vunpack.c.l.b16 %v2263
  %v2552 = vunpack.c.h.b16 %v2263
  %v2553 = vunpack.c.l.b16 %v2264
  %v2554 = vunpack.c.l.b16 %v2265
  %v2555 = vunpack.c.h.b16 %v2265
  %v2556 = vunpack.c.l.b16 %v2266
  %v2557 = vpack.c.b16 %v2512, %v2509
  %v2558 = vpack.c.b16 %v2513, %v2510
  %v2559 = vpack.c.b16 %v2514, %v2511
  %v2560 = vpack.c.b16 %v2518, %v2515
  %v2561 = vpack.c.b16 %v2519, %v2516
  %v2562 = vpack.c.b16 %v2520, %v2517
  %v2563 = vpack.c.b16 %v2524, %v2521
  %v2564 = vpack.c.b16 %v2525, %v2522
  %v2565 = vpack.c.b16 %v2526, %v2523
  %v2566 = vpack.c.b16 %v2530, %v2527
  %v2567 = vpack.c.b16 %v2531, %v2528
  %v2568 = vpack.c.b16 %v2532, %v2529
  %v2569 = vpack.c.b16 %v2536, %v2533
  %v2570 = vpack.c.b16 %v2537, %v2534
  %v2571 = vpack.c.b16 %v2538, %v2535
  %v2572 = vpack.c.b16 %v2542, %v2539
  %v2573 = vpack.c.b16 %v2543, %v2540
  %v2574 = vpack.c.b16 %v2544, %v2541
  %v2575 = vpack.c.b16 %v2548, %v2545
  %v2576 = vpack.c.b16 %v2549, %v2546
  %v2577 = vpack.c.b16 %v2550, %v2547
  %v2578 = vpack.c.b16 %v2554, %v2551
  %v2579 = vpack.c.b16 %v2555, %v2552
  %v2580 = vpack.c.b16 %v2556, %v2553
  %2605 = vmatprep.subr.bf16.mxu0 %v2558
  %2606 = vmatpush1.bf16.msra.mxu0 %v2557
  %2607 = vmatprep.subr.bf16.mxu0 %v2561
  %2608 = vmatpush1.bf16.msra.mxu0 %v2560
  %2609 = vmatprep.subr.bf16.mxu0 %v2564
  %2610 = vmatpush1.bf16.msra.mxu0 %v2563
  %2611 = vmatprep.subr.bf16.mxu0 %v2567
  %2612 = vmatpush1.bf16.msra.mxu0 %v2566
  %2613 = vmatprep.subr.bf16.mxu0 %v2570
  %2614 = vmatpush1.bf16.msra.mxu0 %v2569
  %2615 = vmatprep.subr.bf16.mxu0 %v2573
  %2616 = vmatpush1.bf16.msra.mxu0 %v2572
  %2617 = vmatprep.subr.bf16.mxu0 %v2576
  %2618 = vmatpush1.bf16.msra.mxu0 %v2575
  %2619 = vmatprep.subr.bf16.mxu0 %v2579
  %2620 = vmatpush1.bf16.msra.mxu0 %v2578
  %2621 = vmatprep.subr.bf16.mxu0 0
  %2622 = vmatpush1.bf16.msra.mxu0 0
  %2623 = vmatprep.subr.bf16.mxu0 0
  %2624 = vmatpush1.bf16.msra.mxu0 0
  %2625 = vmatprep.subr.bf16.mxu0 0
  %2626 = vmatpush1.bf16.msra.mxu0 0
  %2627 = vmatprep.subr.bf16.mxu0 0
  %2628 = vmatpush1.bf16.msra.mxu0 0
  %2629 = vmatprep.subr.bf16.mxu0 0
  %2630 = vmatpush1.bf16.msra.mxu0 0
  %2631 = vmatprep.subr.bf16.mxu0 0
  %2632 = vmatpush1.bf16.msra.mxu0 0
  %2633 = vmatprep.subr.bf16.mxu0 0
  %2634 = vmatpush1.bf16.msra.mxu0 0
  %2635 = vmatprep.subr.bf16.mxu0 0
  %2636 = vmatpush1.bf16.msra.mxu0 0
  %2637 = vmatprep.mubr.bf16.mxu0 0
  %2638 = vmatmul.mubr.bf16.gmra.mrb[0].mxu0 %v2267
  %v2639 = vpop.f32.mrb[0].mxu0
  %v2640 = vadd.f32 0.0, %v2639
  %v2641 = vpop.f32.mrb[0].mxu0
  %v2642 = vadd.f32 0.0, %v2641
  %v2643 = vpop.f32.mrb[0].mxu0
  %v2644 = vpop.f32.mrb[0].mxu0
  %2645 = vdwg.mxu0
  %2646 = vmatprep.subr.bf16.mxu0 0
  %2647 = vmatpush1.bf16.msra.mxu0 %v2559
  %2648 = vmatprep.subr.bf16.mxu0 0
  %2649 = vmatpush1.bf16.msra.mxu0 %v2562
  %2650 = vmatprep.subr.bf16.mxu0 0
  %2651 = vmatpush1.bf16.msra.mxu0 %v2565
  %2652 = vmatprep.subr.bf16.mxu0 0
  %2653 = vmatpush1.bf16.msra.mxu0 %v2568
  %2654 = vmatprep.subr.bf16.mxu0 0
  %2655 = vmatpush1.bf16.msra.mxu0 %v2571
  %2656 = vmatprep.subr.bf16.mxu0 0
  %2657 = vmatpush1.bf16.msra.mxu0 %v2574
  %2658 = vmatprep.subr.bf16.mxu0 0
  %2659 = vmatpush1.bf16.msra.mxu0 %v2577
  %2660 = vmatprep.subr.bf16.mxu0 0
  %2661 = vmatpush1.bf16.msra.mxu0 %v2580
  %2662 = vmatprep.subr.bf16.mxu0 0
  %2663 = vmatpush1.bf16.msra.mxu0 0
  %2664 = vmatprep.subr.bf16.mxu0 0
  %2665 = vmatpush1.bf16.msra.mxu0 0
  %2666 = vmatprep.subr.bf16.mxu0 0
  %2667 = vmatpush1.bf16.msra.mxu0 0
  %2668 = vmatprep.subr.bf16.mxu0 0
  %2669 = vmatpush1.bf16.msra.mxu0 0
  %2670 = vmatprep.subr.bf16.mxu0 0
  %2671 = vmatpush1.bf16.msra.mxu0 0
  %2672 = vmatprep.subr.bf16.mxu0 0
  %2673 = vmatpush1.bf16.msra.mxu0 0
  %2674 = vmatprep.subr.bf16.mxu0 0
  %2675 = vmatpush1.bf16.msra.mxu0 0
  %2676 = vmatprep.subr.bf16.mxu0 0
  %2677 = vmatpush1.bf16.msra.mxu0 0
  %2678 = vmatprep.mubr.bf16.mxu0 0
  %2679 = vmatmul.mubr.bf16.gmra.mrb[0].mxu0 %v2267
  %v2680 = vpop.f32.mrb[0].mxu0
  %v2681 = vadd.f32 0.0, %v2680
  %v2682 = vpop.f32.mrb[0].mxu0
  %v2683 = vpop.f32.mrb[0].mxu0
  %v2684 = vpop.f32.mrb[0].mxu0
  %2685 = vdwg.mxu0
  %v2686 = vadd.f32 %v1753, %v2431
  %v2687 = vxor.u32 %v2686, 2147483648
  %v2688 = vmul.f32 %v2687, 1.442695
  %v2689 = vpow.pop %v2688
  %v2690 = vadd.f32 %v2689, 1.0
  %v2691 = vrcp.pop %v2690
  %v2692 = vmul.f32 1.0, %v2691
  %v2693 = vadd.f32 %v1755, %v2433
  %v2694 = vxor.u32 %v2693, 2147483648
  %v2695 = vmul.f32 %v2694, 1.442695
  %v2696 = vpow.pop %v2695
  %v2697 = vadd.f32 %v2696, 1.0
  %v2698 = vrcp.pop %v2697
  %v2699 = vmul.f32 1.0, %v2698
  %v2700 = vmul.f32 %v2692, %v2472
  %v2701 = vadd.f32 %v1826, %v2700
  %v2702 = vtanh.pop %v2701
  %v2703 = vsub.f32 1.0, %v2699
  %v2704 = vmul.f32 %v2703, %v2702
  %v2705 = vmul.f32 %v2699, %v1508
  %v2706 = vadd.f32 %v2704, %v2705
  %v2707 = vadd.f32 %v2100, %v2640
  %v2708 = vxor.u32 %v2707, 2147483648
  %v2709 = vmul.f32 %v2708, 1.442695
  %v2710 = vpow.pop %v2709
  %v2711 = vadd.f32 %v2710, 1.0
  %v2712 = vrcp.pop %v2711
  %v2713 = vmul.f32 1.0, %v2712
  %v2714 = vadd.f32 %v2102, %v2642
  %v2715 = vxor.u32 %v2714, 2147483648
  %v2716 = vmul.f32 %v2715, 1.442695
  %v2717 = vpow.pop %v2716
  %v2718 = vadd.f32 %v2717, 1.0
  %v2719 = vrcp.pop %v2718
  %v2720 = vmul.f32 1.0, %v2719
  %v2721 = vmul.f32 %v2713, %v2681
  %v2722 = vadd.f32 %v2173, %v2721
  %v2723 = vtanh.pop %v2722
  %v2724 = vsub.f32 1.0, %v2720
  %v2725 = vmul.f32 %v2724, %v2723
  %v2726 = vmul.f32 %v2720, %v1508
  %v2727 = vadd.f32 %v2725, %v2726
  %2728 = vst [vmem:[#allocation2] sm:$0xff] %v2706
  %2729 = vst [vmem:[#allocation3] sm:$0xff] %v2727
  %v2730 = vpack.c.bf16 %v2706, %v2706
  %2731 = vmatprep.subr.bf16.mxu0 %v2349
  %2732 = vmatpush1.bf16.msra.mxu0 %v2348
  %2733 = vmatprep.subr.bf16.mxu0 %v2352
  %2734 = vmatpush1.bf16.msra.mxu0 %v2351
  %2735 = vmatprep.subr.bf16.mxu0 %v2355
  %2736 = vmatpush1.bf16.msra.mxu0 %v2354
  %2737 = vmatprep.subr.bf16.mxu0 %v2358
  %2738 = vmatpush1.bf16.msra.mxu0 %v2357
  %2739 = vmatprep.subr.bf16.mxu0 %v2361
  %2740 = vmatpush1.bf16.msra.mxu0 %v2360
  %2741 = vmatprep.subr.bf16.mxu0 %v2364
  %2742 = vmatpush1.bf16.msra.mxu0 %v2363
  %2743 = vmatprep.subr.bf16.mxu0 %v2367
  %2744 = vmatpush1.bf16.msra.mxu0 %v2366
  %2745 = vmatprep.subr.bf16.mxu0 %v2370
  %2746 = vmatpush1.bf16.msra.mxu0 %v2369
  %2747 = vmatprep.subr.bf16.mxu0 0
  %2748 = vmatpush1.bf16.msra.mxu0 0
  %2749 = vmatprep.subr.bf16.mxu0 0
  %2750 = vmatpush1.bf16.msra.mxu0 0
  %2751 = vmatprep.subr.bf16.mxu0 0
  %2752 = vmatpush1.bf16.msra.mxu0 0
  %2753 = vmatprep.subr.bf16.mxu0 0
  %2754 = vmatpush1.bf16.msra.mxu0 0
  %2755 = vmatprep.subr.bf16.mxu0 0
  %2756 = vmatpush1.bf16.msra.mxu0 0
  %2757 = vmatprep.subr.bf16.mxu0 0
  %2758 = vmatpush1.bf16.msra.mxu0 0
  %2759 = vmatprep.subr.bf16.mxu0 0
  %2760 = vmatpush1.bf16.msra.mxu0 0
  %2761 = vmatprep.subr.bf16.mxu0 0
  %2762 = vmatpush1.bf16.msra.mxu0 0
  %2763 = vmatprep.mubr.bf16.mxu0 0
  %2764 = vmatmul.mubr.bf16.gmra.mrb[0].mxu0 %v2730
  %v2765 = vpop.f32.mrb[0].mxu0
  %v2766 = vadd.f32 0.0, %v2765
  %v2767 = vpop.f32.mrb[0].mxu0
  %v2768 = vadd.f32 0.0, %v2767
  %v2769 = vpop.f32.mrb[0].mxu0
  %v2770 = vpop.f32.mrb[0].mxu0
  %2771 = vdwg.mxu0
  %2772 = vmatprep.subr.bf16.mxu0 0
  %2773 = vmatpush1.bf16.msra.mxu0 %v2350
  %2774 = vmatprep.subr.bf16.mxu0 0
  %2775 = vmatpush1.bf16.msra.mxu0 %v2353
  %2776 = vmatprep.subr.bf16.mxu0 0
  %2777 = vmatpush1.bf16.msra.mxu0 %v2356
  %2778 = vmatprep.subr.bf16.mxu0 0
  %2779 = vmatpush1.bf16.msra.mxu0 %v2359
  %2780 = vmatprep.subr.bf16.mxu0 0
  %2781 = vmatpush1.bf16.msra.mxu0 %v2362
  %2782 = vmatprep.subr.bf16.mxu0 0
  %2783 = vmatpush1.bf16.msra.mxu0 %v2365
  %2784 = vmatprep.subr.bf16.mxu0 0
  %2785 = vmatpush1.bf16.msra.mxu0 %v2368
  %2786 = vmatprep.subr.bf16.mxu0 0
  %2787 = vmatpush1.bf16.msra.mxu0 %v2371
  %2788 = vmatprep.subr.bf16.mxu0 0
  %2789 = vmatpush1.bf16.msra.mxu0 0
  %2790 = vmatprep.subr.bf16.mxu0 0
  %2791 = vmatpush1.bf16.msra.mxu0 0
  %2792 = vmatprep.subr.bf16.mxu0 0
  %2793 = vmatpush1.bf16.msra.mxu0 0
  %2794 = vmatprep.subr.bf16.mxu0 0
  %2795 = vmatpush1.bf16.msra.mxu0 0
  %2796 = vmatprep.subr.bf16.mxu0 0
  %2797 = vmatpush1.bf16.msra.mxu0 0
  %2798 = vmatprep.subr.bf16.mxu0 0
  %2799 = vmatpush1.bf16.msra.mxu0 0
  %2800 = vmatprep.subr.bf16.mxu0 0
  %2801 = vmatpush1.bf16.msra.mxu0 0
  %2802 = vmatprep.subr.bf16.mxu0 0
  %2803 = vmatpush1.bf16.msra.mxu0 0
  %2804 = vmatprep.mubr.bf16.mxu0 0
  %2805 = vmatmul.mubr.bf16.gmra.mrb[0].mxu0 %v2730
  %v2806 = vpop.f32.mrb[0].mxu0
  %v2807 = vadd.f32 0.0, %v2806
  %v2808 = vpop.f32.mrb[0].mxu0
  %v2809 = vpop.f32.mrb[0].mxu0
  %v2810 = vpop.f32.mrb[0].mxu0
  %2811 = vdwg.mxu0
  %v2812 = vpack.c.bf16 %v2727, %v2727
  %2813 = vmatprep.subr.bf16.mxu0 %v2558
  %2814 = vmatpush1.bf16.msra.mxu0 %v2557
  %2815 = vmatprep.subr.bf16.mxu0 %v2561
  %2816 = vmatpush1.bf16.msra.mxu0 %v2560
  %2817 = vmatprep.subr.bf16.mxu0 %v2564
  %2818 = vmatpush1.bf16.msra.mxu0 %v2563
  %2819 = vmatprep.subr.bf16.mxu0 %v2567
  %2820 = vmatpush1.bf16.msra.mxu0 %v2566
  %2821 = vmatprep.subr.bf16.mxu0 %v2570
  %2822 = vmatpush1.bf16.msra.mxu0 %v2569
  %2823 = vmatprep.subr.bf16.mxu0 %v2573
  %2824 = vmatpush1.bf16.msra.mxu0 %v2572
  %2825 = vmatprep.subr.bf16.mxu0 %v2576
  %2826 = vmatpush1.bf16.msra.mxu0 %v2575
  %2827 = vmatprep.subr.bf16.mxu0 %v2579
  %2828 = vmatpush1.bf16.msra.mxu0 %v2578
  %2829 = vmatprep.subr.bf16.mxu0 0
  %2830 = vmatpush1.bf16.msra.mxu0 0
  %2831 = vmatprep.subr.bf16.mxu0 0
  %2832 = vmatpush1.bf16.msra.mxu0 0
  %2833 = vmatprep.subr.bf16.mxu0 0
  %2834 = vmatpush1.bf16.msra.mxu0 0
  %2835 = vmatprep.subr.bf16.mxu0 0
  %2836 = vmatpush1.bf16.msra.mxu0 0
  %2837 = vmatprep.subr.bf16.mxu0 0
  %2838 = vmatpush1.bf16.msra.mxu0 0
  %2839 = vmatprep.subr.bf16.mxu0 0
  %2840 = vmatpush1.bf16.msra.mxu0 0
  %2841 = vmatprep.subr.bf16.mxu0 0
  %2842 = vmatpush1.bf16.msra.mxu0 0
  %2843 = vmatprep.subr.bf16.mxu0 0
  %2844 = vmatpush1.bf16.msra.mxu0 0
  %2845 = vmatprep.mubr.bf16.mxu0 0
  %2846 = vmatmul.mubr.bf16.gmra.mrb[0].mxu0 %v2812
  %v2847 = vpop.f32.mrb[0].mxu0
  %v2848 = vadd.f32 0.0, %v2847
  %v2849 = vpop.f32.mrb[0].mxu0
  %v2850 = vadd.f32 0.0, %v2849
  %v2851 = vpop.f32.mrb[0].mxu0
  %v2852 = vpop.f32.mrb[0].mxu0
  %2853 = vdwg.mxu0
  %2854 = vmatprep.subr.bf16.mxu0 0
  %2855 = vmatpush1.bf16.msra.mxu0 %v2559
  %2856 = vmatprep.subr.bf16.mxu0 0
  %2857 = vmatpush1.bf16.msra.mxu0 %v2562
  %2858 = vmatprep.subr.bf16.mxu0 0
  %2859 = vmatpush1.bf16.msra.mxu0 %v2565
  %2860 = vmatprep.subr.bf16.mxu0 0
  %2861 = vmatpush1.bf16.msra.mxu0 %v2568
  %2862 = vmatprep.subr.bf16.mxu0 0
  %2863 = vmatpush1.bf16.msra.mxu0 %v2571
  %2864 = vmatprep.subr.bf16.mxu0 0
  %2865 = vmatpush1.bf16.msra.mxu0 %v2574
  %2866 = vmatprep.subr.bf16.mxu0 0
  %2867 = vmatpush1.bf16.msra.mxu0 %v2577
  %2868 = vmatprep.subr.bf16.mxu0 0
  %2869 = vmatpush1.bf16.msra.mxu0 %v2580
  %2870 = vmatprep.subr.bf16.mxu0 0
  %2871 = vmatpush1.bf16.msra.mxu0 0
  %2872 = vmatprep.subr.bf16.mxu0 0
  %2873 = vmatpush1.bf16.msra.mxu0 0
  %2874 = vmatprep.subr.bf16.mxu0 0
  %2875 = vmatpush1.bf16.msra.mxu0 0
  %2876 = vmatprep.subr.bf16.mxu0 0
  %2877 = vmatpush1.bf16.msra.mxu0 0
  %2878 = vmatprep.subr.bf16.mxu0 0
  %2879 = vmatpush1.bf16.msra.mxu0 0
  %2880 = vmatprep.subr.bf16.mxu0 0
  %2881 = vmatpush1.bf16.msra.mxu0 0
  %2882 = vmatprep.subr.bf16.mxu0 0
  %2883 = vmatpush1.bf16.msra.mxu0 0
  %2884 = vmatprep.subr.bf16.mxu0 0
  %2885 = vmatpush1.bf16.msra.mxu0 0
  %2886 = vmatprep.mubr.bf16.mxu0 0
  %2887 = vmatmul.mubr.bf16.gmra.mrb[0].mxu0 %v2812
  %v2888 = vpop.f32.mrb[0].mxu0
  %v2889 = vadd.f32 0.0, %v2888
  %v2890 = vpop.f32.mrb[0].mxu0
  %v2891 = vpop.f32.mrb[0].mxu0
  %v2892 = vpop.f32.mrb[0].mxu0
  %2893 = vdwg.mxu0
  %v2894 = vadd.f32 %v1757, %v2766
  %v2895 = vxor.u32 %v2894, 2147483648
  %v2896 = vmul.f32 %v2895, 1.442695
  %v2897 = vpow.pop %v2896
  %v2898 = vadd.f32 %v2897, 1.0
  %v2899 = vrcp.pop %v2898
  %v2900 = vmul.f32 1.0, %v2899
  %v2901 = vadd.f32 %v1759, %v2768
  %v2902 = vxor.u32 %v2901, 2147483648
  %v2903 = vmul.f32 %v2902, 1.442695
  %v2904 = vpow.pop %v2903
  %v2905 = vadd.f32 %v2904, 1.0
  %v2906 = vrcp.pop %v2905
  %v2907 = vmul.f32 1.0, %v2906
  %v2908 = vmul.f32 %v2900, %v2807
  %v2909 = vadd.f32 %v1829, %v2908
  %v2910 = vtanh.pop %v2909
  %v2911 = vsub.f32 1.0, %v2907
  %v2912 = vmul.f32 %v2911, %v2910
  %v2913 = vmul.f32 %v2907, %v2706
  %v2914 = vadd.f32 %v2912, %v2913
  %v2915 = vadd.f32 %v2104, %v2848
  %v2916 = vxor.u32 %v2915, 2147483648
  %v2917 = vmul.f32 %v2916, 1.442695
  %v2918 = vpow.pop %v2917
  %v2919 = vadd.f32 %v2918, 1.0
  %v2920 = vrcp.pop %v2919
  %v2921 = vmul.f32 1.0, %v2920
  %v2922 = vadd.f32 %v2106, %v2850
  %v2923 = vxor.u32 %v2922, 2147483648
  %v2924 = vmul.f32 %v2923, 1.442695
  %v2925 = vpow.pop %v2924
  %v2926 = vadd.f32 %v2925, 1.0
  %v2927 = vrcp.pop %v2926
  %v2928 = vmul.f32 1.0, %v2927
  %v2929 = vmul.f32 %v2921, %v2889
  %v2930 = vadd.f32 %v2176, %v2929
  %v2931 = vtanh.pop %v2930
  %v2932 = vsub.f32 1.0, %v2928
  %v2933 = vmul.f32 %v2932, %v2931
  %v2934 = vmul.f32 %v2928, %v2727
  %v2935 = vadd.f32 %v2933, %v2934
  %2936 = vst [vmem:[#allocation2 + $0x8] sm:$0xff] %v2914
  %2937 = vst [vmem:[#allocation3 + $0x8] sm:$0xff] %v2935
  %v2938 = vpack.c.bf16 %v2914, %v2914
  %2939 = vmatprep.subr.bf16.mxu0 %v2349
  %2940 = vmatpush1.bf16.msra.mxu0 %v2348
  %2941 = vmatprep.subr.bf16.mxu0 %v2352
  %2942 = vmatpush1.bf16.msra.mxu0 %v2351
  %2943 = vmatprep.subr.bf16.mxu0 %v2355
  %2944 = vmatpush1.bf16.msra.mxu0 %v2354
  %2945 = vmatprep.subr.bf16.mxu0 %v2358
  %2946 = vmatpush1.bf16.msra.mxu0 %v2357
  %2947 = vmatprep.subr.bf16.mxu0 %v2361
  %2948 = vmatpush1.bf16.msra.mxu0 %v2360
  %2949 = vmatprep.subr.bf16.mxu0 %v2364
  %2950 = vmatpush1.bf16.msra.mxu0 %v2363
  %2951 = vmatprep.subr.bf16.mxu0 %v2367
  %2952 = vmatpush1.bf16.msra.mxu0 %v2366
  %2953 = vmatprep.subr.bf16.mxu0 %v2370
  %2954 = vmatpush1.bf16.msra.mxu0 %v2369
  %2955 = vmatprep.subr.bf16.mxu0 0
  %2956 = vmatpush1.bf16.msra.mxu0 0
  %2957 = vmatprep.subr.bf16.mxu0 0
  %2958 = vmatpush1.bf16.msra.mxu0 0
  %2959 = vmatprep.subr.bf16.mxu0 0
  %2960 = vmatpush1.bf16.msra.mxu0 0
  %2961 = vmatprep.subr.bf16.mxu0 0
  %2962 = vmatpush1.bf16.msra.mxu0 0
  %2963 = vmatprep.subr.bf16.mxu0 0
  %2964 = vmatpush1.bf16.msra.mxu0 0
  %2965 = vmatprep.subr.bf16.mxu0 0
  %2966 = vmatpush1.bf16.msra.mxu0 0
  %2967 = vmatprep.subr.bf16.mxu0 0
  %2968 = vmatpush1.bf16.msra.mxu0 0
  %2969 = vmatprep.subr.bf16.mxu0 0
  %2970 = vmatpush1.bf16.msra.mxu0 0
  %2971 = vmatprep.mubr.bf16.mxu0 0
  %2972 = vmatmul.mubr.bf16.gmra.mrb[0].mxu0 %v2938
  %v2973 = vpop.f32.mrb[0].mxu0
  %v2974 = vadd.f32 0.0, %v2973
  %v2975 = vpop.f32.mrb[0].mxu0
  %v2976 = vadd.f32 0.0, %v2975
  %v2977 = vpop.f32.mrb[0].mxu0
  %v2978 = vpop.f32.mrb[0].mxu0
  %2979 = vdwg.mxu0
  %2980 = vmatprep.subr.bf16.mxu0 0
  %2981 = vmatpush1.bf16.msra.mxu0 %v2350
  %2982 = vmatprep.subr.bf16.mxu0 0
  %2983 = vmatpush1.bf16.msra.mxu0 %v2353
  %2984 = vmatprep.subr.bf16.mxu0 0
  %2985 = vmatpush1.bf16.msra.mxu0 %v2356
  %2986 = vmatprep.subr.bf16.mxu0 0
  %2987 = vmatpush1.bf16.msra.mxu0 %v2359
  %2988 = vmatprep.subr.bf16.mxu0 0
  %2989 = vmatpush1.bf16.msra.mxu0 %v2362
  %2990 = vmatprep.subr.bf16.mxu0 0
  %2991 = vmatpush1.bf16.msra.mxu0 %v2365
  %2992 = vmatprep.subr.bf16.mxu0 0
  %2993 = vmatpush1.bf16.msra.mxu0 %v2368
  %2994 = vmatprep.subr.bf16.mxu0 0
  %2995 = vmatpush1.bf16.msra.mxu0 %v2371
  %2996 = vmatprep.subr.bf16.mxu0 0
  %2997 = vmatpush1.bf16.msra.mxu0 0
  %2998 = vmatprep.subr.bf16.mxu0 0
  %2999 = vmatpush1.bf16.msra.mxu0 0
  %3000 = vmatprep.subr.bf16.mxu0 0
  %3001 = vmatpush1.bf16.msra.mxu0 0
  %3002 = vmatprep.subr.bf16.mxu0 0
  %3003 = vmatpush1.bf16.msra.mxu0 0
  %3004 = vmatprep.subr.bf16.mxu0 0
  %3005 = vmatpush1.bf16.msra.mxu0 0
  %3006 = vmatprep.subr.bf16.mxu0 0
  %3007 = vmatpush1.bf16.msra.mxu0 0
  %3008 = vmatprep.subr.bf16.mxu0 0
  %3009 = vmatpush1.bf16.msra.mxu0 0
  %3010 = vmatprep.subr.bf16.mxu0 0
  %3011 = vmatpush1.bf16.msra.mxu0 0
  %3012 = vmatprep.mubr.bf16.mxu0 0
  %3013 = vmatmul.mubr.bf16.gmra.mrb[0].mxu0 %v2938
  %v3014 = vpop.f32.mrb[0].mxu0
  %v3015 = vadd.f32 0.0, %v3014
  %v3016 = vpop.f32.mrb[0].mxu0
  %v3017 = vpop.f32.mrb[0].mxu0
  %v3018 = vpop.f32.mrb[0].mxu0
  %3019 = vdwg.mxu0
  %v3020 = vpack.c.bf16 %v2935, %v2935
  %3021 = vmatprep.subr.bf16.mxu0 %v2558
  %3022 = vmatpush1.bf16.msra.mxu0 %v2557
  %3023 = vmatprep.subr.bf16.mxu0 %v2561
  %3024 = vmatpush1.bf16.msra.mxu0 %v2560
  %3025 = vmatprep.subr.bf16.mxu0 %v2564
  %3026 = vmatpush1.bf16.msra.mxu0 %v2563
  %3027 = vmatprep.subr.bf16.mxu0 %v2567
  %3028 = vmatpush1.bf16.msra.mxu0 %v2566
  %3029 = vmatprep.subr.bf16.mxu0 %v2570
  %3030 = vmatpush1.bf16.msra.mxu0 %v2569
  %3031 = vmatprep.subr.bf16.mxu0 %v2573
  %3032 = vmatpush1.bf16.msra.mxu0 %v2572
  %3033 = vmatprep.subr.bf16.mxu0 %v2576
  %3034 = vmatpush1.bf16.msra.mxu0 %v2575
  %3035 = vmatprep.subr.bf16.mxu0 %v2579
  %3036 = vmatpush1.bf16.msra.mxu0 %v2578
  %3037 = vmatprep.subr.bf16.mxu0 0
  %3038 = vmatpush1.bf16.msra.mxu0 0
  %3039 = vmatprep.subr.bf16.mxu0 0
  %3040 = vmatpush1.bf16.msra.mxu0 0
  %3041 = vmatprep.subr.bf16.mxu0 0
  %3042 = vmatpush1.bf16.msra.mxu0 0
  %3043 = vmatprep.subr.bf16.mxu0 0
  %3044 = vmatpush1.bf16.msra.mxu0 0
  %3045 = vmatprep.subr.bf16.mxu0 0
  %3046 = vmatpush1.bf16.msra.mxu0 0
  %3047 = vmatprep.subr.bf16.mxu0 0
  %3048 = vmatpush1.bf16.msra.mxu0 0
  %3049 = vmatprep.subr.bf16.mxu0 0
  %3050 = vmatpush1.bf16.msra.mxu0 0
  %3051 = vmatprep.subr.bf16.mxu0 0
  %3052 = vmatpush1.bf16.msra.mxu0 0
  %3053 = vmatprep.mubr.bf16.mxu0 0
  %3054 = vmatmul.mubr.bf16.gmra.mrb[0].mxu0 %v3020
  %v3055 = vpop.f32.mrb[0].mxu0
  %v3056 = vadd.f32 0.0, %v3055
  %v3057 = vpop.f32.mrb[0].mxu0
  %v3058 = vadd.f32 0.0, %v3057
  %v3059 = vpop.f32.mrb[0].mxu0
  %v3060 = vpop.f32.mrb[0].mxu0
  %3061 = vdwg.mxu0
  %3062 = vmatprep.subr.bf16.mxu0 0
  %3063 = vmatpush1.bf16.msra.mxu0 %v2559
  %3064 = vmatprep.subr.bf16.mxu0 0
  %3065 = vmatpush1.bf16.msra.mxu0 %v2562
  %3066 = vmatprep.subr.bf16.mxu0 0
  %3067 = vmatpush1.bf16.msra.mxu0 %v2565
  %3068 = vmatprep.subr.bf16.mxu0 0
  %3069 = vmatpush1.bf16.msra.mxu0 %v2568
  %3070 = vmatprep.subr.bf16.mxu0 0
  %3071 = vmatpush1.bf16.msra.mxu0 %v2571
  %3072 = vmatprep.subr.bf16.mxu0 0
  %3073 = vmatpush1.bf16.msra.mxu0 %v2574
  %3074 = vmatprep.subr.bf16.mxu0 0
  %3075 = vmatpush1.bf16.msra.mxu0 %v2577
  %3076 = vmatprep.subr.bf16.mxu0 0
  %3077 = vmatpush1.bf16.msra.mxu0 %v2580
  %3078 = vmatprep.subr.bf16.mxu0 0
  %3079 = vmatpush1.bf16.msra.mxu0 0
  %3080 = vmatprep.subr.bf16.mxu0 0
  %3081 = vmatpush1.bf16.msra.mxu0 0
  %3082 = vmatprep.subr.bf16.mxu0 0
  %3083 = vmatpush1.bf16.msra.mxu0 0
  %3084 = vmatprep.subr.bf16.mxu0 0
  %3085 = vmatpush1.bf16.msra.mxu0 0
  %3086 = vmatprep.subr.bf16.mxu0 0
  %3087 = vmatpush1.bf16.msra.mxu0 0
  %3088 = vmatprep.subr.bf16.mxu0 0
  %3089 = vmatpush1.bf16.msra.mxu0 0
  %3090 = vmatprep.subr.bf16.mxu0 0
  %3091 = vmatpush1.bf16.msra.mxu0 0
  %3092 = vmatprep.subr.bf16.mxu0 0
  %3093 = vmatpush1.bf16.msra.mxu0 0
  %3094 = vmatprep.mubr.bf16.mxu0 0
  %3095 = vmatmul.mubr.bf16.gmra.mrb[0].mxu0 %v3020
  %v3096 = vpop.f32.mrb[0].mxu0
  %v3097 = vadd.f32 0.0, %v3096
  %v3098 = vpop.f32.mrb[0].mxu0
  %v3099 = vpop.f32.mrb[0].mxu0
  %v3100 = vpop.f32.mrb[0].mxu0
  %3101 = vdwg.mxu0
  %v3102 = vadd.f32 %v1763, %v2974
  %v3103 = vxor.u32 %v3102, 2147483648
  %v3104 = vmul.f32 %v3103, 1.442695
  %v3105 = vpow.pop %v3104
  %v3106 = vadd.f32 %v3105, 1.0
  %v3107 = vrcp.pop %v3106
  %v3108 = vmul.f32 1.0, %v3107
  %v3109 = vadd.f32 %v1765, %v2976
  %v3110 = vxor.u32 %v3109, 2147483648
  %v3111 = vmul.f32 %v3110, 1.442695
  %v3112 = vpow.pop %v3111
  %v3113 = vadd.f32 %v3112, 1.0
  %v3114 = vrcp.pop %v3113
  %v3115 = vmul.f32 1.0, %v3114
  %v3116 = vmul.f32 %v3108, %v3015
  %v3117 = vadd.f32 %v1834, %v3116
  %v3118 = vtanh.pop %v3117
  %v3119 = vsub.f32 1.0, %v3115
  %v3120 = vmul.f32 %v3119, %v3118
  %v3121 = vmul.f32 %v3115, %v2914
  %v3122 = vadd.f32 %v3120, %v3121
  %v3123 = vadd.f32 %v2110, %v3056
  %v3124 = vxor.u32 %v3123, 2147483648
  %v3125 = vmul.f32 %v3124, 1.442695
  %v3126 = vpow.pop %v3125
  %v3127 = vadd.f32 %v3126, 1.0
  %v3128 = vrcp.pop %v3127
  %v3129 = vmul.f32 1.0, %v3128
  %v3130 = vadd.f32 %v2112, %v3058
  %v3131 = vxor.u32 %v3130, 2147483648
  %v3132 = vmul.f32 %v3131, 1.442695
  %v3133 = vpow.pop %v3132
  %v3134 = vadd.f32 %v3133, 1.0
  %v3135 = vrcp.pop %v3134
  %v3136 = vmul.f32 1.0, %v3135
  %v3137 = vmul.f32 %v3129, %v3097
  %v3138 = vadd.f32 %v2181, %v3137
  %v3139 = vtanh.pop %v3138
  %v3140 = vsub.f32 1.0, %v3136
  %v3141 = vmul.f32 %v3140, %v3139
  %v3142 = vmul.f32 %v3136, %v2935
  %v3143 = vadd.f32 %v3141, %v3142
  %3144 = vst [vmem:[#allocation2 + $0x10] sm:$0xff] %v3122
  %3145 = vst [vmem:[#allocation3 + $0x10] sm:$0xff] %v3143
  %v3146 = vpack.c.bf16 %v3122, %v3122
  %3147 = vmatprep.subr.bf16.mxu0 %v2349
  %3148 = vmatpush1.bf16.msra.mxu0 %v2348
  %3149 = vmatprep.subr.bf16.mxu0 %v2352
  %3150 = vmatpush1.bf16.msra.mxu0 %v2351
  %3151 = vmatprep.subr.bf16.mxu0 %v2355
  %3152 = vmatpush1.bf16.msra.mxu0 %v2354
  %3153 = vmatprep.subr.bf16.mxu0 %v2358
  %3154 = vmatpush1.bf16.msra.mxu0 %v2357
  %3155 = vmatprep.subr.bf16.mxu0 %v2361
  %3156 = vmatpush1.bf16.msra.mxu0 %v2360
  %3157 = vmatprep.subr.bf16.mxu0 %v2364
  %3158 = vmatpush1.bf16.msra.mxu0 %v2363
  %3159 = vmatprep.subr.bf16.mxu0 %v2367
  %3160 = vmatpush1.bf16.msra.mxu0 %v2366
  %3161 = vmatprep.subr.bf16.mxu0 %v2370
  %3162 = vmatpush1.bf16.msra.mxu0 %v2369
  %3163 = vmatprep.subr.bf16.mxu0 0
  %3164 = vmatpush1.bf16.msra.mxu0 0
  %3165 = vmatprep.subr.bf16.mxu0 0
  %3166 = vmatpush1.bf16.msra.mxu0 0
  %3167 = vmatprep.subr.bf16.mxu0 0
  %3168 = vmatpush1.bf16.msra.mxu0 0
  %3169 = vmatprep.subr.bf16.mxu0 0
  %3170 = vmatpush1.bf16.msra.mxu0 0
  %3171 = vmatprep.subr.bf16.mxu0 0
  %3172 = vmatpush1.bf16.msra.mxu0 0
  %3173 = vmatprep.subr.bf16.mxu0 0
  %3174 = vmatpush1.bf16.msra.mxu0 0
  %3175 = vmatprep.subr.bf16.mxu0 0
  %3176 = vmatpush1.bf16.msra.mxu0 0
  %3177 = vmatprep.subr.bf16.mxu0 0
  %3178 = vmatpush1.bf16.msra.mxu0 0
  %3179 = vmatprep.mubr.bf16.mxu0 0
  %3180 = vmatmul.mubr.bf16.gmra.mrb[0].mxu0 %v3146
  %v3181 = vpop.f32.mrb[0].mxu0
  %v3182 = vadd.f32 0.0, %v3181
  %v3183 = vpop.f32.mrb[0].mxu0
  %v3184 = vadd.f32 0.0, %v3183
  %v3185 = vpop.f32.mrb[0].mxu0
  %v3186 = vpop.f32.mrb[0].mxu0
  %3187 = vdwg.mxu0
  %3188 = vmatprep.subr.bf16.mxu0 0
  %3189 = vmatpush1.bf16.msra.mxu0 %v2350
  %3190 = vmatprep.subr.bf16.mxu0 0
  %3191 = vmatpush1.bf16.msra.mxu0 %v2353
  %3192 = vmatprep.subr.bf16.mxu0 0
  %3193 = vmatpush1.bf16.msra.mxu0 %v2356
  %3194 = vmatprep.subr.bf16.mxu0 0
  %3195 = vmatpush1.bf16.msra.mxu0 %v2359
  %3196 = vmatprep.subr.bf16.mxu0 0
  %3197 = vmatpush1.bf16.msra.mxu0 %v2362
  %3198 = vmatprep.subr.bf16.mxu0 0
  %3199 = vmatpush1.bf16.msra.mxu0 %v2365
  %3200 = vmatprep.subr.bf16.mxu0 0
  %3201 = vmatpush1.bf16.msra.mxu0 %v2368
  %3202 = vmatprep.subr.bf16.mxu0 0
  %3203 = vmatpush1.bf16.msra.mxu0 %v2371
  %3204 = vmatprep.subr.bf16.mxu0 0
  %3205 = vmatpush1.bf16.msra.mxu0 0
  %3206 = vmatprep.subr.bf16.mxu0 0
  %3207 = vmatpush1.bf16.msra.mxu0 0
  %3208 = vmatprep.subr.bf16.mxu0 0
  %3209 = vmatpush1.bf16.msra.mxu0 0
  %3210 = vmatprep.subr.bf16.mxu0 0
  %3211 = vmatpush1.bf16.msra.mxu0 0
  %3212 = vmatprep.subr.bf16.mxu0 0
  %3213 = vmatpush1.bf16.msra.mxu0 0
  %3214 = vmatprep.subr.bf16.mxu0 0
  %3215 = vmatpush1.bf16.msra.mxu0 0
  %3216 = vmatprep.subr.bf16.mxu0 0
  %3217 = vmatpush1.bf16.msra.mxu0 0
  %3218 = vmatprep.subr.bf16.mxu0 0
  %3219 = vmatpush1.bf16.msra.mxu0 0
  %3220 = vmatprep.mubr.bf16.mxu0 0
  %3221 = vmatmul.mubr.bf16.gmra.mrb[0].mxu0 %v3146
  %v3222 = vpop.f32.mrb[0].mxu0
  %v3223 = vadd.f32 0.0, %v3222
  %v3224 = vpop.f32.mrb[0].mxu0
  %v3225 = vpop.f32.mrb[0].mxu0
  %v3226 = vpop.f32.mrb[0].mxu0
  %3227 = vdwg.mxu0
  %v3228 = vpack.c.bf16 %v3143, %v3143
  %3229 = vmatprep.subr.bf16.mxu0 %v2558
  %3230 = vmatpush1.bf16.msra.mxu0 %v2557
  %3231 = vmatprep.subr.bf16.mxu0 %v2561
  %3232 = vmatpush1.bf16.msra.mxu0 %v2560
  %3233 = vmatprep.subr.bf16.mxu0 %v2564
  %3234 = vmatpush1.bf16.msra.mxu0 %v2563
  %3235 = vmatprep.subr.bf16.mxu0 %v2567
  %3236 = vmatpush1.bf16.msra.mxu0 %v2566
  %3237 = vmatprep.subr.bf16.mxu0 %v2570
  %3238 = vmatpush1.bf16.msra.mxu0 %v2569
  %3239 = vmatprep.subr.bf16.mxu0 %v2573
  %3240 = vmatpush1.bf16.msra.mxu0 %v2572
  %3241 = vmatprep.subr.bf16.mxu0 %v2576
  %3242 = vmatpush1.bf16.msra.mxu0 %v2575
  %3243 = vmatprep.subr.bf16.mxu0 %v2579
  %3244 = vmatpush1.bf16.msra.mxu0 %v2578
  %3245 = vmatprep.subr.bf16.mxu0 0
  %3246 = vmatpush1.bf16.msra.mxu0 0
  %3247 = vmatprep.subr.bf16.mxu0 0
  %3248 = vmatpush1.bf16.msra.mxu0 0
  %3249 = vmatprep.subr.bf16.mxu0 0
  %3250 = vmatpush1.bf16.msra.mxu0 0
  %3251 = vmatprep.subr.bf16.mxu0 0
  %3252 = vmatpush1.bf16.msra.mxu0 0
  %3253 = vmatprep.subr.bf16.mxu0 0
  %3254 = vmatpush1.bf16.msra.mxu0 0
  %3255 = vmatprep.subr.bf16.mxu0 0
  %3256 = vmatpush1.bf16.msra.mxu0 0
  %3257 = vmatprep.subr.bf16.mxu0 0
  %3258 = vmatpush1.bf16.msra.mxu0 0
  %3259 = vmatprep.subr.bf16.mxu0 0
  %3260 = vmatpush1.bf16.msra.mxu0 0
  %3261 = vmatprep.mubr.bf16.mxu0 0
  %3262 = vmatmul.mubr.bf16.gmra.mrb[0].mxu0 %v3228
  %v3263 = vpop.f32.mrb[0].mxu0
  %v3264 = vadd.f32 0.0, %v3263
  %v3265 = vpop.f32.mrb[0].mxu0
  %v3266 = vadd.f32 0.0, %v3265
  %v3267 = vpop.f32.mrb[0].mxu0
  %v3268 = vpop.f32.mrb[0].mxu0
  %3269 = vdwg.mxu0
  %3270 = vmatprep.subr.bf16.mxu0 0
  %3271 = vmatpush1.bf16.msra.mxu0 %v2559
  %3272 = vmatprep.subr.bf16.mxu0 0
  %3273 = vmatpush1.bf16.msra.mxu0 %v2562
  %3274 = vmatprep.subr.bf16.mxu0 0
  %3275 = vmatpush1.bf16.msra.mxu0 %v2565
  %3276 = vmatprep.subr.bf16.mxu0 0
  %3277 = vmatpush1.bf16.msra.mxu0 %v2568
  %3278 = vmatprep.subr.bf16.mxu0 0
  %3279 = vmatpush1.bf16.msra.mxu0 %v2571
  %3280 = vmatprep.subr.bf16.mxu0 0
  %3281 = vmatpush1.bf16.msra.mxu0 %v2574
  %3282 = vmatprep.subr.bf16.mxu0 0
  %3283 = vmatpush1.bf16.msra.mxu0 %v2577
  %3284 = vmatprep.subr.bf16.mxu0 0
  %3285 = vmatpush1.bf16.msra.mxu0 %v2580
  %3286 = vmatprep.subr.bf16.mxu0 0
  %3287 = vmatpush1.bf16.msra.mxu0 0
  %3288 = vmatprep.subr.bf16.mxu0 0
  %3289 = vmatpush1.bf16.msra.mxu0 0
  %3290 = vmatprep.subr.bf16.mxu0 0
  %3291 = vmatpush1.bf16.msra.mxu0 0
  %3292 = vmatprep.subr.bf16.mxu0 0
  %3293 = vmatpush1.bf16.msra.mxu0 0
  %3294 = vmatprep.subr.bf16.mxu0 0
  %3295 = vmatpush1.bf16.msra.mxu0 0
  %3296 = vmatprep.subr.bf16.mxu0 0
  %3297 = vmatpush1.bf16.msra.mxu0 0
  %3298 = vmatprep.subr.bf16.mxu0 0
  %3299 = vmatpush1.bf16.msra.mxu0 0
  %3300 = vmatprep.subr.bf16.mxu0 0
  %3301 = vmatpush1.bf16.msra.mxu0 0
  %3302 = vmatprep.mubr.bf16.mxu0 0
  %3303 = vmatmul.mubr.bf16.gmra.mrb[0].mxu0 %v3228
  %v3304 = vpop.f32.mrb[0].mxu0
  %v3305 = vadd.f32 0.0, %v3304
  %v3306 = vpop.f32.mrb[0].mxu0
  %v3307 = vpop.f32.mrb[0].mxu0
  %v3308 = vpop.f32.mrb[0].mxu0
  %3309 = vdwg.mxu0
  %v3310 = vadd.f32 %v1767, %v3182
  %v3311 = vxor.u32 %v3310, 2147483648
  %v3312 = vmul.f32 %v3311, 1.442695
  %v3313 = vpow.pop %v3312
  %v3314 = vadd.f32 %v3313, 1.0
  %v3315 = vrcp.pop %v3314
  %v3316 = vmul.f32 1.0, %v3315
  %v3317 = vadd.f32 %v1769, %v3184
  %v3318 = vxor.u32 %v3317, 2147483648
  %v3319 = vmul.f32 %v3318, 1.442695
  %v3320 = vpow.pop %v3319
  %v3321 = vadd.f32 %v3320, 1.0
  %v3322 = vrcp.pop %v3321
  %v3323 = vmul.f32 1.0, %v3322
  %v3324 = vmul.f32 %v3316, %v3223
  %v3325 = vadd.f32 %v1837, %v3324
  %v3326 = vtanh.pop %v3325
  %v3327 = vsub.f32 1.0, %v3323
  %v3328 = vmul.f32 %v3327, %v3326
  %v3329 = vmul.f32 %v3323, %v3122
  %v3330 = vadd.f32 %v3328, %v3329
  %v3331 = vadd.f32 %v2114, %v3264
  %v3332 = vxor.u32 %v3331, 2147483648
  %v3333 = vmul.f32 %v3332, 1.442695
  %v3334 = vpow.pop %v3333
  %v3335 = vadd.f32 %v3334, 1.0
  %v3336 = vrcp.pop %v3335
  %v3337 = vmul.f32 1.0, %v3336
  %v3338 = vadd.f32 %v2116, %v3266
  %v3339 = vxor.u32 %v3338, 2147483648
  %v3340 = vmul.f32 %v3339, 1.442695
  %v3341 = vpow.pop %v3340
  %v3342 = vadd.f32 %v3341, 1.0
  %v3343 = vrcp.pop %v3342
  %v3344 = vmul.f32 1.0, %v3343
  %v3345 = vmul.f32 %v3337, %v3305
  %v3346 = vadd.f32 %v2184, %v3345
  %v3347 = vtanh.pop %v3346
  %v3348 = vsub.f32 1.0, %v3344
  %v3349 = vmul.f32 %v3348, %v3347
  %v3350 = vmul.f32 %v3344, %v3143
  %v3351 = vadd.f32 %v3349, %v3350
  %3352 = vst [vmem:[#allocation2 + $0x18] sm:$0xff] %v3330
  %3353 = vst [vmem:[#allocation3 + $0x18] sm:$0xff] %v3351
  %v3354 = vpack.c.bf16 %v3330, %v3330
  %3355 = vmatprep.subr.bf16.mxu0 %v2349
  %3356 = vmatpush1.bf16.msra.mxu0 %v2348
  %3357 = vmatprep.subr.bf16.mxu0 %v2352
  %3358 = vmatpush1.bf16.msra.mxu0 %v2351
  %3359 = vmatprep.subr.bf16.mxu0 %v2355
  %3360 = vmatpush1.bf16.msra.mxu0 %v2354
  %3361 = vmatprep.subr.bf16.mxu0 %v2358
  %3362 = vmatpush1.bf16.msra.mxu0 %v2357
  %3363 = vmatprep.subr.bf16.mxu0 %v2361
  %3364 = vmatpush1.bf16.msra.mxu0 %v2360
  %3365 = vmatprep.subr.bf16.mxu0 %v2364
  %3366 = vmatpush1.bf16.msra.mxu0 %v2363
  %3367 = vmatprep.subr.bf16.mxu0 %v2367
  %3368 = vmatpush1.bf16.msra.mxu0 %v2366
  %3369 = vmatprep.subr.bf16.mxu0 %v2370
  %3370 = vmatpush1.bf16.msra.mxu0 %v2369
  %3371 = vmatprep.subr.bf16.mxu0 0
  %3372 = vmatpush1.bf16.msra.mxu0 0
  %3373 = vmatprep.subr.bf16.mxu0 0
  %3374 = vmatpush1.bf16.msra.mxu0 0
  %3375 = vmatprep.subr.bf16.mxu0 0
  %3376 = vmatpush1.bf16.msra.mxu0 0
  %3377 = vmatprep.subr.bf16.mxu0 0
  %3378 = vmatpush1.bf16.msra.mxu0 0
  %3379 = vmatprep.subr.bf16.mxu0 0
  %3380 = vmatpush1.bf16.msra.mxu0 0
  %3381 = vmatprep.subr.bf16.mxu0 0
  %3382 = vmatpush1.bf16.msra.mxu0 0
  %3383 = vmatprep.subr.bf16.mxu0 0
  %3384 = vmatpush1.bf16.msra.mxu0 0
  %3385 = vmatprep.subr.bf16.mxu0 0
  %3386 = vmatpush1.bf16.msra.mxu0 0
  %3387 = vmatprep.mubr.bf16.mxu0 0
  %3388 = vmatmul.mubr.bf16.gmra.mrb[0].mxu0 %v3354
  %v3389 = vpop.f32.mrb[0].mxu0
  %v3390 = vadd.f32 0.0, %v3389
  %v3391 = vpop.f32.mrb[0].mxu0
  %v3392 = vadd.f32 0.0, %v3391
  %v3393 = vpop.f32.mrb[0].mxu0
  %v3394 = vpop.f32.mrb[0].mxu0
  %3395 = vdwg.mxu0
  %3396 = vmatprep.subr.bf16.mxu0 0
  %3397 = vmatpush1.bf16.msra.mxu0 %v2350
  %3398 = vmatprep.subr.bf16.mxu0 0
  %3399 = vmatpush1.bf16.msra.mxu0 %v2353
  %3400 = vmatprep.subr.bf16.mxu0 0
  %3401 = vmatpush1.bf16.msra.mxu0 %v2356
  %3402 = vmatprep.subr.bf16.mxu0 0
  %3403 = vmatpush1.bf16.msra.mxu0 %v2359
  %3404 = vmatprep.subr.bf16.mxu0 0
  %3405 = vmatpush1.bf16.msra.mxu0 %v2362
  %3406 = vmatprep.subr.bf16.mxu0 0
  %3407 = vmatpush1.bf16.msra.mxu0 %v2365
  %3408 = vmatprep.subr.bf16.mxu0 0
  %3409 = vmatpush1.bf16.msra.mxu0 %v2368
  %3410 = vmatprep.subr.bf16.mxu0 0
  %3411 = vmatpush1.bf16.msra.mxu0 %v2371
  %3412 = vmatprep.subr.bf16.mxu0 0
  %3413 = vmatpush1.bf16.msra.mxu0 0
  %3414 = vmatprep.subr.bf16.mxu0 0
  %3415 = vmatpush1.bf16.msra.mxu0 0
  %3416 = vmatprep.subr.bf16.mxu0 0
  %3417 = vmatpush1.bf16.msra.mxu0 0
  %3418 = vmatprep.subr.bf16.mxu0 0
  %3419 = vmatpush1.bf16.msra.mxu0 0
  %3420 = vmatprep.subr.bf16.mxu0 0
  %3421 = vmatpush1.bf16.msra.mxu0 0
  %3422 = vmatprep.subr.bf16.mxu0 0
  %3423 = vmatpush1.bf16.msra.mxu0 0
  %3424 = vmatprep.subr.bf16.mxu0 0
  %3425 = vmatpush1.bf16.msra.mxu0 0
  %3426 = vmatprep.subr.bf16.mxu0 0
  %3427 = vmatpush1.bf16.msra.mxu0 0
  %3428 = vmatprep.mubr.bf16.mxu0 0
  %3429 = vmatmul.mubr.bf16.gmra.mrb[0].mxu0 %v3354
  %v3430 = vpop.f32.mrb[0].mxu0
  %v3431 = vadd.f32 0.0, %v3430
  %v3432 = vpop.f32.mrb[0].mxu0
  %v3433 = vpop.f32.mrb[0].mxu0
  %v3434 = vpop.f32.mrb[0].mxu0
  %3435 = vdwg.mxu0
  %v3436 = vpack.c.bf16 %v3351, %v3351
  %3437 = vmatprep.subr.bf16.mxu0 %v2558
  %3438 = vmatpush1.bf16.msra.mxu0 %v2557
  %3439 = vmatprep.subr.bf16.mxu0 %v2561
  %3440 = vmatpush1.bf16.msra.mxu0 %v2560
  %3441 = vmatprep.subr.bf16.mxu0 %v2564
  %3442 = vmatpush1.bf16.msra.mxu0 %v2563
  %3443 = vmatprep.subr.bf16.mxu0 %v2567
  %3444 = vmatpush1.bf16.msra.mxu0 %v2566
  %3445 = vmatprep.subr.bf16.mxu0 %v2570
  %3446 = vmatpush1.bf16.msra.mxu0 %v2569
  %3447 = vmatprep.subr.bf16.mxu0 %v2573
  %3448 = vmatpush1.bf16.msra.mxu0 %v2572
  %3449 = vmatprep.subr.bf16.mxu0 %v2576
  %3450 = vmatpush1.bf16.msra.mxu0 %v2575
  %3451 = vmatprep.subr.bf16.mxu0 %v2579
  %3452 = vmatpush1.bf16.msra.mxu0 %v2578
  %3453 = vmatprep.subr.bf16.mxu0 0
  %3454 = vmatpush1.bf16.msra.mxu0 0
  %3455 = vmatprep.subr.bf16.mxu0 0
  %3456 = vmatpush1.bf16.msra.mxu0 0
  %3457 = vmatprep.subr.bf16.mxu0 0
  %3458 = vmatpush1.bf16.msra.mxu0 0
  %3459 = vmatprep.subr.bf16.mxu0 0
  %3460 = vmatpush1.bf16.msra.mxu0 0
  %3461 = vmatprep.subr.bf16.mxu0 0
  %3462 = vmatpush1.bf16.msra.mxu0 0
  %3463 = vmatprep.subr.bf16.mxu0 0
  %3464 = vmatpush1.bf16.msra.mxu0 0
  %3465 = vmatprep.subr.bf16.mxu0 0
  %3466 = vmatpush1.bf16.msra.mxu0 0
  %3467 = vmatprep.subr.bf16.mxu0 0
  %3468 = vmatpush1.bf16.msra.mxu0 0
  %3469 = vmatprep.mubr.bf16.mxu0 0
  %3470 = vmatmul.mubr.bf16.gmra.mrb[0].mxu0 %v3436
  %v3471 = vpop.f32.mrb[0].mxu0
  %v3472 = vadd.f32 0.0, %v3471
  %v3473 = vpop.f32.mrb[0].mxu0
  %v3474 = vadd.f32 0.0, %v3473
  %v3475 = vpop.f32.mrb[0].mxu0
  %v3476 = vpop.f32.mrb[0].mxu0
  %3477 = vdwg.mxu0
  %3478 = vmatprep.subr.bf16.mxu0 0
  %3479 = vmatpush1.bf16.msra.mxu0 %v2559
  %3480 = vmatprep.subr.bf16.mxu0 0
  %3481 = vmatpush1.bf16.msra.mxu0 %v2562
  %3482 = vmatprep.subr.bf16.mxu0 0
  %3483 = vmatpush1.bf16.msra.mxu0 %v2565
  %3484 = vmatprep.subr.bf16.mxu0 0
  %3485 = vmatpush1.bf16.msra.mxu0 %v2568
  %3486 = vmatprep.subr.bf16.mxu0 0
  %3487 = vmatpush1.bf16.msra.mxu0 %v2571
  %3488 = vmatprep.subr.bf16.mxu0 0
  %3489 = vmatpush1.bf16.msra.mxu0 %v2574
  %3490 = vmatprep.subr.bf16.mxu0 0
  %3491 = vmatpush1.bf16.msra.mxu0 %v2577
  %3492 = vmatprep.subr.bf16.mxu0 0
  %3493 = vmatpush1.bf16.msra.mxu0 %v2580
  %3494 = vmatprep.subr.bf16.mxu0 0
  %3495 = vmatpush1.bf16.msra.mxu0 0
  %3496 = vmatprep.subr.bf16.mxu0 0
  %3497 = vmatpush1.bf16.msra.mxu0 0
  %3498 = vmatprep.subr.bf16.mxu0 0
  %3499 = vmatpush1.bf16.msra.mxu0 0
  %3500 = vmatprep.subr.bf16.mxu0 0
  %3501 = vmatpush1.bf16.msra.mxu0 0
  %3502 = vmatprep.subr.bf16.mxu0 0
  %3503 = vmatpush1.bf16.msra.mxu0 0
  %3504 = vmatprep.subr.bf16.mxu0 0
  %3505 = vmatpush1.bf16.msra.mxu0 0
  %3506 = vmatprep.subr.bf16.mxu0 0
  %3507 = vmatpush1.bf16.msra.mxu0 0
  %3508 = vmatprep.subr.bf16.mxu0 0
  %3509 = vmatpush1.bf16.msra.mxu0 0
  %3510 = vmatprep.mubr.bf16.mxu0 0
  %3511 = vmatmul.mubr.bf16.gmra.mrb[0].mxu0 %v3436
  %v3512 = vpop.f32.mrb[0].mxu0
  %v3513 = vadd.f32 0.0, %v3512
  %v3514 = vpop.f32.mrb[0].mxu0
  %v3515 = vpop.f32.mrb[0].mxu0
  %v3516 = vpop.f32.mrb[0].mxu0
  %3517 = vdwg.mxu0
  %v3518 = vadd.f32 %v1773, %v3390
  %v3519 = vxor.u32 %v3518, 2147483648
  %v3520 = vmul.f32 %v3519, 1.442695
  %v3521 = vpow.pop %v3520
  %v3522 = vadd.f32 %v3521, 1.0
  %v3523 = vrcp.pop %v3522
  %v3524 = vmul.f32 1.0, %v3523
  %v3525 = vadd.f32 %v1775, %v3392
  %v3526 = vxor.u32 %v3525, 2147483648
  %v3527 = vmul.f32 %v3526, 1.442695
  %v3528 = vpow.pop %v3527
  %v3529 = vadd.f32 %v3528, 1.0
  %v3530 = vrcp.pop %v3529
  %v3531 = vmul.f32 1.0, %v3530
  %v3532 = vmul.f32 %v3524, %v3431
  %v3533 = vadd.f32 %v1842, %v3532
  %v3534 = vtanh.pop %v3533
  %v3535 = vsub.f32 1.0, %v3531
  %v3536 = vmul.f32 %v3535, %v3534
  %v3537 = vmul.f32 %v3531, %v3330
  %v3538 = vadd.f32 %v3536, %v3537
  %v3539 = vadd.f32 %v2120, %v3472
  %v3540 = vxor.u32 %v3539, 2147483648
  %v3541 = vmul.f32 %v3540, 1.442695
  %v3542 = vpow.pop %v3541
  %v3543 = vadd.f32 %v3542, 1.0
  %v3544 = vrcp.pop %v3543
  %v3545 = vmul.f32 1.0, %v3544
  %v3546 = vadd.f32 %v2122, %v3474
  %v3547 = vxor.u32 %v3546, 2147483648
  %v3548 = vmul.f32 %v3547, 1.442695
  %v3549 = vpow.pop %v3548
  %v3550 = vadd.f32 %v3549, 1.0
  %v3551 = vrcp.pop %v3550
  %v3552 = vmul.f32 1.0, %v3551
  %v3553 = vmul.f32 %v3545, %v3513
  %v3554 = vadd.f32 %v2189, %v3553
  %v3555 = vtanh.pop %v3554
  %v3556 = vsub.f32 1.0, %v3552
  %v3557 = vmul.f32 %v3556, %v3555
  %v3558 = vmul.f32 %v3552, %v3351
  %v3559 = vadd.f32 %v3557, %v3558
  %3560 = vst [vmem:[#allocation2 + $0x20] sm:$0xff] %v3538
  %3561 = vst [vmem:[#allocation3 + $0x20] sm:$0xff] %v3559
  %v3562 = vpack.c.bf16 %v3538, %v3538
  %3563 = vmatprep.subr.bf16.mxu0 %v2349
  %3564 = vmatpush1.bf16.msra.mxu0 %v2348
  %3565 = vmatprep.subr.bf16.mxu0 %v2352
  %3566 = vmatpush1.bf16.msra.mxu0 %v2351
  %3567 = vmatprep.subr.bf16.mxu0 %v2355
  %3568 = vmatpush1.bf16.msra.mxu0 %v2354
  %3569 = vmatprep.subr.bf16.mxu0 %v2358
  %3570 = vmatpush1.bf16.msra.mxu0 %v2357
  %3571 = vmatprep.subr.bf16.mxu0 %v2361
  %3572 = vmatpush1.bf16.msra.mxu0 %v2360
  %3573 = vmatprep.subr.bf16.mxu0 %v2364
  %3574 = vmatpush1.bf16.msra.mxu0 %v2363
  %3575 = vmatprep.subr.bf16.mxu0 %v2367
  %3576 = vmatpush1.bf16.msra.mxu0 %v2366
  %3577 = vmatprep.subr.bf16.mxu0 %v2370
  %3578 = vmatpush1.bf16.msra.mxu0 %v2369
  %3579 = vmatprep.subr.bf16.mxu0 0
  %3580 = vmatpush1.bf16.msra.mxu0 0
  %3581 = vmatprep.subr.bf16.mxu0 0
  %3582 = vmatpush1.bf16.msra.mxu0 0
  %3583 = vmatprep.subr.bf16.mxu0 0
  %3584 = vmatpush1.bf16.msra.mxu0 0
  %3585 = vmatprep.subr.bf16.mxu0 0
  %3586 = vmatpush1.bf16.msra.mxu0 0
  %3587 = vmatprep.subr.bf16.mxu0 0
  %3588 = vmatpush1.bf16.msra.mxu0 0
  %3589 = vmatprep.subr.bf16.mxu0 0
  %3590 = vmatpush1.bf16.msra.mxu0 0
  %3591 = vmatprep.subr.bf16.mxu0 0
  %3592 = vmatpush1.bf16.msra.mxu0 0
  %3593 = vmatprep.subr.bf16.mxu0 0
  %3594 = vmatpush1.bf16.msra.mxu0 0
  %3595 = vmatprep.mubr.bf16.mxu0 0
  %3596 = vmatmul.mubr.bf16.gmra.mrb[0].mxu0 %v3562
  %v3597 = vpop.f32.mrb[0].mxu0
  %v3598 = vadd.f32 0.0, %v3597
  %v3599 = vpop.f32.mrb[0].mxu0
  %v3600 = vadd.f32 0.0, %v3599
  %v3601 = vpop.f32.mrb[0].mxu0
  %v3602 = vpop.f32.mrb[0].mxu0
  %3603 = vdwg.mxu0
  %3604 = vmatprep.subr.bf16.mxu0 0
  %3605 = vmatpush1.bf16.msra.mxu0 %v2350
  %3606 = vmatprep.subr.bf16.mxu0 0
  %3607 = vmatpush1.bf16.msra.mxu0 %v2353
  %3608 = vmatprep.subr.bf16.mxu0 0
  %3609 = vmatpush1.bf16.msra.mxu0 %v2356
  %3610 = vmatprep.subr.bf16.mxu0 0
  %3611 = vmatpush1.bf16.msra.mxu0 %v2359
  %3612 = vmatprep.subr.bf16.mxu0 0
  %3613 = vmatpush1.bf16.msra.mxu0 %v2362
  %3614 = vmatprep.subr.bf16.mxu0 0
  %3615 = vmatpush1.bf16.msra.mxu0 %v2365
  %3616 = vmatprep.subr.bf16.mxu0 0
  %3617 = vmatpush1.bf16.msra.mxu0 %v2368
  %3618 = vmatprep.subr.bf16.mxu0 0
  %3619 = vmatpush1.bf16.msra.mxu0 %v2371
  %3620 = vmatprep.subr.bf16.mxu0 0
  %3621 = vmatpush1.bf16.msra.mxu0 0
  %3622 = vmatprep.subr.bf16.mxu0 0
  %3623 = vmatpush1.bf16.msra.mxu0 0
  %3624 = vmatprep.subr.bf16.mxu0 0
  %3625 = vmatpush1.bf16.msra.mxu0 0
  %3626 = vmatprep.subr.bf16.mxu0 0
  %3627 = vmatpush1.bf16.msra.mxu0 0
  %3628 = vmatprep.subr.bf16.mxu0 0
  %3629 = vmatpush1.bf16.msra.mxu0 0
  %3630 = vmatprep.subr.bf16.mxu0 0
  %3631 = vmatpush1.bf16.msra.mxu0 0
  %3632 = vmatprep.subr.bf16.mxu0 0
  %3633 = vmatpush1.bf16.msra.mxu0 0
  %3634 = vmatprep.subr.bf16.mxu0 0
  %3635 = vmatpush1.bf16.msra.mxu0 0
  %3636 = vmatprep.mubr.bf16.mxu0 0
  %3637 = vmatmul.mubr.bf16.gmra.mrb[0].mxu0 %v3562
  %v3638 = vpop.f32.mrb[0].mxu0
  %v3639 = vadd.f32 0.0, %v3638
  %v3640 = vpop.f32.mrb[0].mxu0
  %v3641 = vpop.f32.mrb[0].mxu0
  %v3642 = vpop.f32.mrb[0].mxu0
  %3643 = vdwg.mxu0
  %v3644 = vpack.c.bf16 %v3559, %v3559
  %3645 = vmatprep.subr.bf16.mxu0 %v2558
  %3646 = vmatpush1.bf16.msra.mxu0 %v2557
  %3647 = vmatprep.subr.bf16.mxu0 %v2561
  %3648 = vmatpush1.bf16.msra.mxu0 %v2560
  %3649 = vmatprep.subr.bf16.mxu0 %v2564
  %3650 = vmatpush1.bf16.msra.mxu0 %v2563
  %3651 = vmatprep.subr.bf16.mxu0 %v2567
  %3652 = vmatpush1.bf16.msra.mxu0 %v2566
  %3653 = vmatprep.subr.bf16.mxu0 %v2570
  %3654 = vmatpush1.bf16.msra.mxu0 %v2569
  %3655 = vmatprep.subr.bf16.mxu0 %v2573
  %3656 = vmatpush1.bf16.msra.mxu0 %v2572
  %3657 = vmatprep.subr.bf16.mxu0 %v2576
  %3658 = vmatpush1.bf16.msra.mxu0 %v2575
  %3659 = vmatprep.subr.bf16.mxu0 %v2579
  %3660 = vmatpush1.bf16.msra.mxu0 %v2578
  %3661 = vmatprep.subr.bf16.mxu0 0
  %3662 = vmatpush1.bf16.msra.mxu0 0
  %3663 = vmatprep.subr.bf16.mxu0 0
  %3664 = vmatpush1.bf16.msra.mxu0 0
  %3665 = vmatprep.subr.bf16.mxu0 0
  %3666 = vmatpush1.bf16.msra.mxu0 0
  %3667 = vmatprep.subr.bf16.mxu0 0
  %3668 = vmatpush1.bf16.msra.mxu0 0
  %3669 = vmatprep.subr.bf16.mxu0 0
  %3670 = vmatpush1.bf16.msra.mxu0 0
  %3671 = vmatprep.subr.bf16.mxu0 0
  %3672 = vmatpush1.bf16.msra.mxu0 0
  %3673 = vmatprep.subr.bf16.mxu0 0
  %3674 = vmatpush1.bf16.msra.mxu0 0
  %3675 = vmatprep.subr.bf16.mxu0 0
  %3676 = vmatpush1.bf16.msra.mxu0 0
  %3677 = vmatprep.mubr.bf16.mxu0 0
  %3678 = vmatmul.mubr.bf16.gmra.mrb[0].mxu0 %v3644
  %v3679 = vpop.f32.mrb[0].mxu0
  %v3680 = vadd.f32 0.0, %v3679
  %v3681 = vpop.f32.mrb[0].mxu0
  %v3682 = vadd.f32 0.0, %v3681
  %v3683 = vpop.f32.mrb[0].mxu0
  %v3684 = vpop.f32.mrb[0].mxu0
  %3685 = vdwg.mxu0
  %3686 = vmatprep.subr.bf16.mxu0 0
  %3687 = vmatpush1.bf16.msra.mxu0 %v2559
  %3688 = vmatprep.subr.bf16.mxu0 0
  %3689 = vmatpush1.bf16.msra.mxu0 %v2562
  %3690 = vmatprep.subr.bf16.mxu0 0
  %3691 = vmatpush1.bf16.msra.mxu0 %v2565
  %3692 = vmatprep.subr.bf16.mxu0 0
  %3693 = vmatpush1.bf16.msra.mxu0 %v2568
  %3694 = vmatprep.subr.bf16.mxu0 0
  %3695 = vmatpush1.bf16.msra.mxu0 %v2571
  %3696 = vmatprep.subr.bf16.mxu0 0
  %3697 = vmatpush1.bf16.msra.mxu0 %v2574
  %3698 = vmatprep.subr.bf16.mxu0 0
  %3699 = vmatpush1.bf16.msra.mxu0 %v2577
  %3700 = vmatprep.subr.bf16.mxu0 0
  %3701 = vmatpush1.bf16.msra.mxu0 %v2580
  %3702 = vmatprep.subr.bf16.mxu0 0
  %3703 = vmatpush1.bf16.msra.mxu0 0
  %3704 = vmatprep.subr.bf16.mxu0 0
  %3705 = vmatpush1.bf16.msra.mxu0 0
  %3706 = vmatprep.subr.bf16.mxu0 0
  %3707 = vmatpush1.bf16.msra.mxu0 0
  %3708 = vmatprep.subr.bf16.mxu0 0
  %3709 = vmatpush1.bf16.msra.mxu0 0
  %3710 = vmatprep.subr.bf16.mxu0 0
  %3711 = vmatpush1.bf16.msra.mxu0 0
  %3712 = vmatprep.subr.bf16.mxu0 0
  %3713 = vmatpush1.bf16.msra.mxu0 0
  %3714 = vmatprep.subr.bf16.mxu0 0
  %3715 = vmatpush1.bf16.msra.mxu0 0
  %3716 = vmatprep.subr.bf16.mxu0 0
  %3717 = vmatpush1.bf16.msra.mxu0 0
  %3718 = vmatprep.mubr.bf16.mxu0 0
  %3719 = vmatmul.mubr.bf16.gmra.mrb[0].mxu0 %v3644
  %v3720 = vpop.f32.mrb[0].mxu0
  %v3721 = vadd.f32 0.0, %v3720
  %v3722 = vpop.f32.mrb[0].mxu0
  %v3723 = vpop.f32.mrb[0].mxu0
  %v3724 = vpop.f32.mrb[0].mxu0
  %3725 = vdwg.mxu0
  %v3726 = vadd.f32 %v1777, %v3598
  %v3727 = vxor.u32 %v3726, 2147483648
  %v3728 = vmul.f32 %v3727, 1.442695
  %v3729 = vpow.pop %v3728
  %v3730 = vadd.f32 %v3729, 1.0
  %v3731 = vrcp.pop %v3730
  %v3732 = vmul.f32 1.0, %v3731
  %v3733 = vadd.f32 %v1779, %v3600
  %v3734 = vxor.u32 %v3733, 2147483648
  %v3735 = vmul.f32 %v3734, 1.442695
  %v3736 = vpow.pop %v3735
  %v3737 = vadd.f32 %v3736, 1.0
  %v3738 = vrcp.pop %v3737
  %v3739 = vmul.f32 1.0, %v3738
  %v3740 = vmul.f32 %v3732, %v3639
  %v3741 = vadd.f32 %v1845, %v3740
  %v3742 = vtanh.pop %v3741
  %v3743 = vsub.f32 1.0, %v3739
  %v3744 = vmul.f32 %v3743, %v3742
  %v3745 = vmul.f32 %v3739, %v3538
  %v3746 = vadd.f32 %v3744, %v3745
  %v3747 = vadd.f32 %v2124, %v3680
  %v3748 = vxor.u32 %v3747, 2147483648
  %v3749 = vmul.f32 %v3748, 1.442695
  %v3750 = vpow.pop %v3749
  %v3751 = vadd.f32 %v3750, 1.0
  %v3752 = vrcp.pop %v3751
  %v3753 = vmul.f32 1.0, %v3752
  %v3754 = vadd.f32 %v2126, %v3682
  %v3755 = vxor.u32 %v3754, 2147483648
  %v3756 = vmul.f32 %v3755, 1.442695
  %v3757 = vpow.pop %v3756
  %v3758 = vadd.f32 %v3757, 1.0
  %v3759 = vrcp.pop %v3758
  %v3760 = vmul.f32 1.0, %v3759
  %v3761 = vmul.f32 %v3753, %v3721
  %v3762 = vadd.f32 %v2192, %v3761
  %v3763 = vtanh.pop %v3762
  %v3764 = vsub.f32 1.0, %v3760
  %v3765 = vmul.f32 %v3764, %v3763
  %v3766 = vmul.f32 %v3760, %v3559
  %v3767 = vadd.f32 %v3765, %v3766
  %3768 = vst [vmem:[#allocation2 + $0x28] sm:$0xff] %v3746
  %3769 = vst [vmem:[#allocation3 + $0x28] sm:$0xff] %v3767
  %v3770 = vpack.c.bf16 %v3746, %v3746
  %3771 = vmatprep.subr.bf16.mxu0 %v2349
  %3772 = vmatpush1.bf16.msra.mxu0 %v2348
  %3773 = vmatprep.subr.bf16.mxu0 %v2352
  %3774 = vmatpush1.bf16.msra.mxu0 %v2351
  %3775 = vmatprep.subr.bf16.mxu0 %v2355
  %3776 = vmatpush1.bf16.msra.mxu0 %v2354
  %3777 = vmatprep.subr.bf16.mxu0 %v2358
  %3778 = vmatpush1.bf16.msra.mxu0 %v2357
  %3779 = vmatprep.subr.bf16.mxu0 %v2361
  %3780 = vmatpush1.bf16.msra.mxu0 %v2360
  %3781 = vmatprep.subr.bf16.mxu0 %v2364
  %3782 = vmatpush1.bf16.msra.mxu0 %v2363
  %3783 = vmatprep.subr.bf16.mxu0 %v2367
  %3784 = vmatpush1.bf16.msra.mxu0 %v2366
  %3785 = vmatprep.subr.bf16.mxu0 %v2370
  %3786 = vmatpush1.bf16.msra.mxu0 %v2369
  %3787 = vmatprep.subr.bf16.mxu0 0
  %3788 = vmatpush1.bf16.msra.mxu0 0
  %3789 = vmatprep.subr.bf16.mxu0 0
  %3790 = vmatpush1.bf16.msra.mxu0 0
  %3791 = vmatprep.subr.bf16.mxu0 0
  %3792 = vmatpush1.bf16.msra.mxu0 0
  %3793 = vmatprep.subr.bf16.mxu0 0
  %3794 = vmatpush1.bf16.msra.mxu0 0
  %3795 = vmatprep.subr.bf16.mxu0 0
  %3796 = vmatpush1.bf16.msra.mxu0 0
  %3797 = vmatprep.subr.bf16.mxu0 0
  %3798 = vmatpush1.bf16.msra.mxu0 0
  %3799 = vmatprep.subr.bf16.mxu0 0
  %3800 = vmatpush1.bf16.msra.mxu0 0
  %3801 = vmatprep.subr.bf16.mxu0 0
  %3802 = vmatpush1.bf16.msra.mxu0 0
  %3803 = vmatprep.mubr.bf16.mxu0 0
  %3804 = vmatmul.mubr.bf16.gmra.mrb[0].mxu0 %v3770
  %v3805 = vpop.f32.mrb[0].mxu0
  %v3806 = vadd.f32 0.0, %v3805
  %v3807 = vpop.f32.mrb[0].mxu0
  %v3808 = vadd.f32 0.0, %v3807
  %v3809 = vpop.f32.mrb[0].mxu0
  %v3810 = vpop.f32.mrb[0].mxu0
  %3811 = vdwg.mxu0
  %3812 = vmatprep.subr.bf16.mxu0 0
  %3813 = vmatpush1.bf16.msra.mxu0 %v2350
  %3814 = vmatprep.subr.bf16.mxu0 0
  %3815 = vmatpush1.bf16.msra.mxu0 %v2353
  %3816 = vmatprep.subr.bf16.mxu0 0
  %3817 = vmatpush1.bf16.msra.mxu0 %v2356
  %3818 = vmatprep.subr.bf16.mxu0 0
  %3819 = vmatpush1.bf16.msra.mxu0 %v2359
  %3820 = vmatprep.subr.bf16.mxu0 0
  %3821 = vmatpush1.bf16.msra.mxu0 %v2362
  %3822 = vmatprep.subr.bf16.mxu0 0
  %3823 = vmatpush1.bf16.msra.mxu0 %v2365
  %3824 = vmatprep.subr.bf16.mxu0 0
  %3825 = vmatpush1.bf16.msra.mxu0 %v2368
  %3826 = vmatprep.subr.bf16.mxu0 0
  %3827 = vmatpush1.bf16.msra.mxu0 %v2371
  %3828 = vmatprep.subr.bf16.mxu0 0
  %3829 = vmatpush1.bf16.msra.mxu0 0
  %3830 = vmatprep.subr.bf16.mxu0 0
  %3831 = vmatpush1.bf16.msra.mxu0 0
  %3832 = vmatprep.subr.bf16.mxu0 0
  %3833 = vmatpush1.bf16.msra.mxu0 0
  %3834 = vmatprep.subr.bf16.mxu0 0
  %3835 = vmatpush1.bf16.msra.mxu0 0
  %3836 = vmatprep.subr.bf16.mxu0 0
  %3837 = vmatpush1.bf16.msra.mxu0 0
  %3838 = vmatprep.subr.bf16.mxu0 0
  %3839 = vmatpush1.bf16.msra.mxu0 0
  %3840 = vmatprep.subr.bf16.mxu0 0
  %3841 = vmatpush1.bf16.msra.mxu0 0
  %3842 = vmatprep.subr.bf16.mxu0 0
  %3843 = vmatpush1.bf16.msra.mxu0 0
  %3844 = vmatprep.mubr.bf16.mxu0 0
  %3845 = vmatmul.mubr.bf16.gmra.mrb[0].mxu0 %v3770
  %v3846 = vpop.f32.mrb[0].mxu0
  %v3847 = vadd.f32 0.0, %v3846
  %v3848 = vpop.f32.mrb[0].mxu0
  %v3849 = vpop.f32.mrb[0].mxu0
  %v3850 = vpop.f32.mrb[0].mxu0
  %3851 = vdwg.mxu0
  %v3852 = vpack.c.bf16 %v3767, %v3767
  %3853 = vmatprep.subr.bf16.mxu0 %v2558
  %3854 = vmatpush1.bf16.msra.mxu0 %v2557
  %3855 = vmatprep.subr.bf16.mxu0 %v2561
  %3856 = vmatpush1.bf16.msra.mxu0 %v2560
  %3857 = vmatprep.subr.bf16.mxu0 %v2564
  %3858 = vmatpush1.bf16.msra.mxu0 %v2563
  %3859 = vmatprep.subr.bf16.mxu0 %v2567
  %3860 = vmatpush1.bf16.msra.mxu0 %v2566
  %3861 = vmatprep.subr.bf16.mxu0 %v2570
  %3862 = vmatpush1.bf16.msra.mxu0 %v2569
  %3863 = vmatprep.subr.bf16.mxu0 %v2573
  %3864 = vmatpush1.bf16.msra.mxu0 %v2572
  %3865 = vmatprep.subr.bf16.mxu0 %v2576
  %3866 = vmatpush1.bf16.msra.mxu0 %v2575
  %3867 = vmatprep.subr.bf16.mxu0 %v2579
  %3868 = vmatpush1.bf16.msra.mxu0 %v2578
  %3869 = vmatprep.subr.bf16.mxu0 0
  %3870 = vmatpush1.bf16.msra.mxu0 0
  %3871 = vmatprep.subr.bf16.mxu0 0
  %3872 = vmatpush1.bf16.msra.mxu0 0
  %3873 = vmatprep.subr.bf16.mxu0 0
  %3874 = vmatpush1.bf16.msra.mxu0 0
  %3875 = vmatprep.subr.bf16.mxu0 0
  %3876 = vmatpush1.bf16.msra.mxu0 0
  %3877 = vmatprep.subr.bf16.mxu0 0
  %3878 = vmatpush1.bf16.msra.mxu0 0
  %3879 = vmatprep.subr.bf16.mxu0 0
  %3880 = vmatpush1.bf16.msra.mxu0 0
  %3881 = vmatprep.subr.bf16.mxu0 0
  %3882 = vmatpush1.bf16.msra.mxu0 0
  %3883 = vmatprep.subr.bf16.mxu0 0
  %3884 = vmatpush1.bf16.msra.mxu0 0
  %3885 = vmatprep.mubr.bf16.mxu0 0
  %3886 = vmatmul.mubr.bf16.gmra.mrb[0].mxu0 %v3852
  %v3887 = vpop.f32.mrb[0].mxu0
  %v3888 = vadd.f32 0.0, %v3887
  %v3889 = vpop.f32.mrb[0].mxu0
  %v3890 = vadd.f32 0.0, %v3889
  %v3891 = vpop.f32.mrb[0].mxu0
  %v3892 = vpop.f32.mrb[0].mxu0
  %3893 = vdwg.mxu0
  %3894 = vmatprep.subr.bf16.mxu0 0
  %3895 = vmatpush1.bf16.msra.mxu0 %v2559
  %3896 = vmatprep.subr.bf16.mxu0 0
  %3897 = vmatpush1.bf16.msra.mxu0 %v2562
  %3898 = vmatprep.subr.bf16.mxu0 0
  %3899 = vmatpush1.bf16.msra.mxu0 %v2565
  %3900 = vmatprep.subr.bf16.mxu0 0
  %3901 = vmatpush1.bf16.msra.mxu0 %v2568
  %3902 = vmatprep.subr.bf16.mxu0 0
  %3903 = vmatpush1.bf16.msra.mxu0 %v2571
  %3904 = vmatprep.subr.bf16.mxu0 0
  %3905 = vmatpush1.bf16.msra.mxu0 %v2574
  %3906 = vmatprep.subr.bf16.mxu0 0
  %3907 = vmatpush1.bf16.msra.mxu0 %v2577
  %3908 = vmatprep.subr.bf16.mxu0 0
  %3909 = vmatpush1.bf16.msra.mxu0 %v2580
  %3910 = vmatprep.subr.bf16.mxu0 0
  %3911 = vmatpush1.bf16.msra.mxu0 0
  %3912 = vmatprep.subr.bf16.mxu0 0
  %3913 = vmatpush1.bf16.msra.mxu0 0
  %3914 = vmatprep.subr.bf16.mxu0 0
  %3915 = vmatpush1.bf16.msra.mxu0 0
  %3916 = vmatprep.subr.bf16.mxu0 0
  %3917 = vmatpush1.bf16.msra.mxu0 0
  %3918 = vmatprep.subr.bf16.mxu0 0
  %3919 = vmatpush1.bf16.msra.mxu0 0
  %3920 = vmatprep.subr.bf16.mxu0 0
  %3921 = vmatpush1.bf16.msra.mxu0 0
  %3922 = vmatprep.subr.bf16.mxu0 0
  %3923 = vmatpush1.bf16.msra.mxu0 0
  %3924 = vmatprep.subr.bf16.mxu0 0
  %3925 = vmatpush1.bf16.msra.mxu0 0
  %3926 = vmatprep.mubr.bf16.mxu0 0
  %3927 = vmatmul.mubr.bf16.gmra.mrb[0].mxu0 %v3852
  %v3928 = vpop.f32.mrb[0].mxu0
  %v3929 = vadd.f32 0.0, %v3928
  %v3930 = vpop.f32.mrb[0].mxu0
  %v3931 = vpop.f32.mrb[0].mxu0
  %v3932 = vpop.f32.mrb[0].mxu0
  %3933 = vdwg.mxu0
  %v3934 = vadd.f32 %v1783, %v3806
  %v3935 = vxor.u32 %v3934, 2147483648
  %v3936 = vmul.f32 %v3935, 1.442695
  %v3937 = vpow.pop %v3936
  %v3938 = vadd.f32 %v3937, 1.0
  %v3939 = vrcp.pop %v3938
  %v3940 = vmul.f32 1.0, %v3939
  %v3941 = vadd.f32 %v1785, %v3808
  %v3942 = vxor.u32 %v3941, 2147483648
  %v3943 = vmul.f32 %v3942, 1.442695
  %v3944 = vpow.pop %v3943
  %v3945 = vadd.f32 %v3944, 1.0
  %v3946 = vrcp.pop %v3945
  %v3947 = vmul.f32 1.0, %v3946
  %v3948 = vmul.f32 %v3940, %v3847
  %v3949 = vadd.f32 %v1850, %v3948
  %v3950 = vtanh.pop %v3949
  %v3951 = vsub.f32 1.0, %v3947
  %v3952 = vmul.f32 %v3951, %v3950
  %v3953 = vmul.f32 %v3947, %v3746
  %v3954 = vadd.f32 %v3952, %v3953
  %v3955 = vadd.f32 %v2130, %v3888
  %v3956 = vxor.u32 %v3955, 2147483648
  %v3957 = vmul.f32 %v3956, 1.442695
  %v3958 = vpow.pop %v3957
  %v3959 = vadd.f32 %v3958, 1.0
  %v3960 = vrcp.pop %v3959
  %v3961 = vmul.f32 1.0, %v3960
  %v3962 = vadd.f32 %v2132, %v3890
  %v3963 = vxor.u32 %v3962, 2147483648
  %v3964 = vmul.f32 %v3963, 1.442695
  %v3965 = vpow.pop %v3964
  %v3966 = vadd.f32 %v3965, 1.0
  %v3967 = vrcp.pop %v3966
  %v3968 = vmul.f32 1.0, %v3967
  %v3969 = vmul.f32 %v3961, %v3929
  %v3970 = vadd.f32 %v2197, %v3969
  %v3971 = vtanh.pop %v3970
  %v3972 = vsub.f32 1.0, %v3968
  %v3973 = vmul.f32 %v3972, %v3971
  %v3974 = vmul.f32 %v3968, %v3767
  %v3975 = vadd.f32 %v3973, %v3974
  %3976 = vst [vmem:[#allocation2 + $0x30] sm:$0xff] %v3954
  %3977 = vst [vmem:[#allocation3 + $0x30] sm:$0xff] %v3975
  %v3978 = vpack.c.bf16 %v3954, %v3954
  %3979 = vmatprep.subr.bf16.mxu0 %v2349
  %3980 = vmatpush1.bf16.msra.mxu0 %v2348
  %3981 = vmatprep.subr.bf16.mxu0 %v2352
  %3982 = vmatpush1.bf16.msra.mxu0 %v2351
  %3983 = vmatprep.subr.bf16.mxu0 %v2355
  %3984 = vmatpush1.bf16.msra.mxu0 %v2354
  %3985 = vmatprep.subr.bf16.mxu0 %v2358
  %3986 = vmatpush1.bf16.msra.mxu0 %v2357
  %3987 = vmatprep.subr.bf16.mxu0 %v2361
  %3988 = vmatpush1.bf16.msra.mxu0 %v2360
  %3989 = vmatprep.subr.bf16.mxu0 %v2364
  %3990 = vmatpush1.bf16.msra.mxu0 %v2363
  %3991 = vmatprep.subr.bf16.mxu0 %v2367
  %3992 = vmatpush1.bf16.msra.mxu0 %v2366
  %3993 = vmatprep.subr.bf16.mxu0 %v2370
  %3994 = vmatpush1.bf16.msra.mxu0 %v2369
  %3995 = vmatprep.subr.bf16.mxu0 0
  %3996 = vmatpush1.bf16.msra.mxu0 0
  %3997 = vmatprep.subr.bf16.mxu0 0
  %3998 = vmatpush1.bf16.msra.mxu0 0
  %3999 = vmatprep.subr.bf16.mxu0 0
  %4000 = vmatpush1.bf16.msra.mxu0 0
  %4001 = vmatprep.subr.bf16.mxu0 0
  %4002 = vmatpush1.bf16.msra.mxu0 0
  %4003 = vmatprep.subr.bf16.mxu0 0
  %4004 = vmatpush1.bf16.msra.mxu0 0
  %4005 = vmatprep.subr.bf16.mxu0 0
  %4006 = vmatpush1.bf16.msra.mxu0 0
  %4007 = vmatprep.subr.bf16.mxu0 0
  %4008 = vmatpush1.bf16.msra.mxu0 0
  %4009 = vmatprep.subr.bf16.mxu0 0
  %4010 = vmatpush1.bf16.msra.mxu0 0
  %4011 = vmatprep.mubr.bf16.mxu0 0
  %4012 = vmatmul.mubr.bf16.gmra.mrb[0].mxu0 %v3978
  %v4013 = vpop.f32.mrb[0].mxu0
  %v4014 = vadd.f32 0.0, %v4013
  %v4015 = vpop.f32.mrb[0].mxu0
  %v4016 = vadd.f32 0.0, %v4015
  %v4017 = vpop.f32.mrb[0].mxu0
  %v4018 = vpop.f32.mrb[0].mxu0
  %4019 = vdwg.mxu0
  %4020 = vmatprep.subr.bf16.mxu0 0
  %4021 = vmatpush1.bf16.msra.mxu0 %v2350
  %4022 = vmatprep.subr.bf16.mxu0 0
  %4023 = vmatpush1.bf16.msra.mxu0 %v2353
  %4024 = vmatprep.subr.bf16.mxu0 0
  %4025 = vmatpush1.bf16.msra.mxu0 %v2356
  %4026 = vmatprep.subr.bf16.mxu0 0
  %4027 = vmatpush1.bf16.msra.mxu0 %v2359
  %4028 = vmatprep.subr.bf16.mxu0 0
  %4029 = vmatpush1.bf16.msra.mxu0 %v2362
  %4030 = vmatprep.subr.bf16.mxu0 0
  %4031 = vmatpush1.bf16.msra.mxu0 %v2365
  %4032 = vmatprep.subr.bf16.mxu0 0
  %4033 = vmatpush1.bf16.msra.mxu0 %v2368
  %4034 = vmatprep.subr.bf16.mxu0 0
  %4035 = vmatpush1.bf16.msra.mxu0 %v2371
  %4036 = vmatprep.subr.bf16.mxu0 0
  %4037 = vmatpush1.bf16.msra.mxu0 0
  %4038 = vmatprep.subr.bf16.mxu0 0
  %4039 = vmatpush1.bf16.msra.mxu0 0
  %4040 = vmatprep.subr.bf16.mxu0 0
  %4041 = vmatpush1.bf16.msra.mxu0 0
  %4042 = vmatprep.subr.bf16.mxu0 0
  %4043 = vmatpush1.bf16.msra.mxu0 0
  %4044 = vmatprep.subr.bf16.mxu0 0
  %4045 = vmatpush1.bf16.msra.mxu0 0
  %4046 = vmatprep.subr.bf16.mxu0 0
  %4047 = vmatpush1.bf16.msra.mxu0 0
  %4048 = vmatprep.subr.bf16.mxu0 0
  %4049 = vmatpush1.bf16.msra.mxu0 0
  %4050 = vmatprep.subr.bf16.mxu0 0
  %4051 = vmatpush1.bf16.msra.mxu0 0
  %4052 = vmatprep.mubr.bf16.mxu0 0
  %4053 = vmatmul.mubr.bf16.gmra.mrb[0].mxu0 %v3978
  %v4054 = vpop.f32.mrb[0].mxu0
  %v4055 = vadd.f32 0.0, %v4054
  %v4056 = vpop.f32.mrb[0].mxu0
  %v4057 = vpop.f32.mrb[0].mxu0
  %v4058 = vpop.f32.mrb[0].mxu0
  %4059 = vdwg.mxu0
  %v4060 = vpack.c.bf16 %v3975, %v3975
  %4061 = vmatprep.subr.bf16.mxu0 %v2558
  %4062 = vmatpush1.bf16.msra.mxu0 %v2557
  %4063 = vmatprep.subr.bf16.mxu0 %v2561
  %4064 = vmatpush1.bf16.msra.mxu0 %v2560
  %4065 = vmatprep.subr.bf16.mxu0 %v2564
  %4066 = vmatpush1.bf16.msra.mxu0 %v2563
  %4067 = vmatprep.subr.bf16.mxu0 %v2567
  %4068 = vmatpush1.bf16.msra.mxu0 %v2566
  %4069 = vmatprep.subr.bf16.mxu0 %v2570
  %4070 = vmatpush1.bf16.msra.mxu0 %v2569
  %4071 = vmatprep.subr.bf16.mxu0 %v2573
  %4072 = vmatpush1.bf16.msra.mxu0 %v2572
  %4073 = vmatprep.subr.bf16.mxu0 %v2576
  %4074 = vmatpush1.bf16.msra.mxu0 %v2575
  %4075 = vmatprep.subr.bf16.mxu0 %v2579
  %4076 = vmatpush1.bf16.msra.mxu0 %v2578
  %4077 = vmatprep.subr.bf16.mxu0 0
  %4078 = vmatpush1.bf16.msra.mxu0 0
  %4079 = vmatprep.subr.bf16.mxu0 0
  %4080 = vmatpush1.bf16.msra.mxu0 0
  %4081 = vmatprep.subr.bf16.mxu0 0
  %4082 = vmatpush1.bf16.msra.mxu0 0
  %4083 = vmatprep.subr.bf16.mxu0 0
  %4084 = vmatpush1.bf16.msra.mxu0 0
  %4085 = vmatprep.subr.bf16.mxu0 0
  %4086 = vmatpush1.bf16.msra.mxu0 0
  %4087 = vmatprep.subr.bf16.mxu0 0
  %4088 = vmatpush1.bf16.msra.mxu0 0
  %4089 = vmatprep.subr.bf16.mxu0 0
  %4090 = vmatpush1.bf16.msra.mxu0 0
  %4091 = vmatprep.subr.bf16.mxu0 0
  %4092 = vmatpush1.bf16.msra.mxu0 0
  %4093 = vmatprep.mubr.bf16.mxu0 0
  %4094 = vmatmul.mubr.bf16.gmra.mrb[0].mxu0 %v4060
  %v4095 = vpop.f32.mrb[0].mxu0
  %v4096 = vadd.f32 0.0, %v4095
  %v4097 = vpop.f32.mrb[0].mxu0
  %v4098 = vadd.f32 0.0, %v4097
  %v4099 = vpop.f32.mrb[0].mxu0
  %v4100 = vpop.f32.mrb[0].mxu0
  %4101 = vdwg.mxu0
  %4102 = vmatprep.subr.bf16.mxu0 0
  %4103 = vmatpush1.bf16.msra.mxu0 %v2559
  %4104 = vmatprep.subr.bf16.mxu0 0
  %4105 = vmatpush1.bf16.msra.mxu0 %v2562
  %4106 = vmatprep.subr.bf16.mxu0 0
  %4107 = vmatpush1.bf16.msra.mxu0 %v2565
  %4108 = vmatprep.subr.bf16.mxu0 0
  %4109 = vmatpush1.bf16.msra.mxu0 %v2568
  %4110 = vmatprep.subr.bf16.mxu0 0
  %4111 = vmatpush1.bf16.msra.mxu0 %v2571
  %4112 = vmatprep.subr.bf16.mxu0 0
  %4113 = vmatpush1.bf16.msra.mxu0 %v2574
  %4114 = vmatprep.subr.bf16.mxu0 0
  %4115 = vmatpush1.bf16.msra.mxu0 %v2577
  %4116 = vmatprep.subr.bf16.mxu0 0
  %4117 = vmatpush1.bf16.msra.mxu0 %v2580
  %4118 = vmatprep.subr.bf16.mxu0 0
  %4119 = vmatpush1.bf16.msra.mxu0 0
  %4120 = vmatprep.subr.bf16.mxu0 0
  %4121 = vmatpush1.bf16.msra.mxu0 0
  %4122 = vmatprep.subr.bf16.mxu0 0
  %4123 = vmatpush1.bf16.msra.mxu0 0
  %4124 = vmatprep.subr.bf16.mxu0 0
  %4125 = vmatpush1.bf16.msra.mxu0 0
  %4126 = vmatprep.subr.bf16.mxu0 0
  %4127 = vmatpush1.bf16.msra.mxu0 0
  %4128 = vmatprep.subr.bf16.mxu0 0
  %4129 = vmatpush1.bf16.msra.mxu0 0
  %4130 = vmatprep.subr.bf16.mxu0 0
  %4131 = vmatpush1.bf16.msra.mxu0 0
  %4132 = vmatprep.subr.bf16.mxu0 0
  %4133 = vmatpush1.bf16.msra.mxu0 0
  %4134 = vmatprep.mubr.bf16.mxu0 0
  %4135 = vmatmul.mubr.bf16.gmra.mrb[0].mxu0 %v4060
  %v4136 = vpop.f32.mrb[0].mxu0
  %v4137 = vadd.f32 0.0, %v4136
  %v4138 = vpop.f32.mrb[0].mxu0
  %v4139 = vpop.f32.mrb[0].mxu0
  %v4140 = vpop.f32.mrb[0].mxu0
  %4141 = vdwg.mxu0
  %v4142 = vadd.f32 %v1787, %v4014
  %v4143 = vxor.u32 %v4142, 2147483648
  %v4144 = vmul.f32 %v4143, 1.442695
  %v4145 = vpow.pop %v4144
  %v4146 = vadd.f32 %v4145, 1.0
  %v4147 = vrcp.pop %v4146
  %v4148 = vmul.f32 1.0, %v4147
  %v4149 = vadd.f32 %v1789, %v4016
  %v4150 = vxor.u32 %v4149, 2147483648
  %v4151 = vmul.f32 %v4150, 1.442695
  %v4152 = vpow.pop %v4151
  %v4153 = vadd.f32 %v4152, 1.0
  %v4154 = vrcp.pop %v4153
  %v4155 = vmul.f32 1.0, %v4154
  %v4156 = vmul.f32 %v4148, %v4055
  %v4157 = vadd.f32 %v1853, %v4156
  %v4158 = vtanh.pop %v4157
  %v4159 = vsub.f32 1.0, %v4155
  %v4160 = vmul.f32 %v4159, %v4158
  %v4161 = vmul.f32 %v4155, %v3954
  %v4162 = vadd.f32 %v4160, %v4161
  %v4163 = vadd.f32 %v2134, %v4096
  %v4164 = vxor.u32 %v4163, 2147483648
  %v4165 = vmul.f32 %v4164, 1.442695
  %v4166 = vpow.pop %v4165
  %v4167 = vadd.f32 %v4166, 1.0
  %v4168 = vrcp.pop %v4167
  %v4169 = vmul.f32 1.0, %v4168
  %v4170 = vadd.f32 %v2136, %v4098
  %v4171 = vxor.u32 %v4170, 2147483648
  %v4172 = vmul.f32 %v4171, 1.442695
  %v4173 = vpow.pop %v4172
  %v4174 = vadd.f32 %v4173, 1.0
  %v4175 = vrcp.pop %v4174
  %v4176 = vmul.f32 1.0, %v4175
  %v4177 = vmul.f32 %v4169, %v4137
  %v4178 = vadd.f32 %v2200, %v4177
  %v4179 = vtanh.pop %v4178
  %v4180 = vsub.f32 1.0, %v4176
  %v4181 = vmul.f32 %v4180, %v4179
  %v4182 = vmul.f32 %v4176, %v3975
  %v4183 = vadd.f32 %v4181, %v4182
  %4184 = vst [vmem:[#allocation2 + $0x38] sm:$0xff] %v4162
  %4185 = vst [vmem:[#allocation3 + $0x38] sm:$0xff] %v4183
  %v4186 = vld [vmem:[#allocation2] sm:$0xff]
  %v4187 = vld [vmem:[#allocation2 + $0x8] sm:$0xff]
  %v4188 = vld [vmem:[#allocation2 + $0x10] sm:$0xff]
  %v4189 = vld [vmem:[#allocation2 + $0x18] sm:$0xff]
  %v4190 = vld [vmem:[#allocation2 + $0x20] sm:$0xff]
  %v4191 = vld [vmem:[#allocation2 + $0x28] sm:$0xff]
  %v4192 = vld [vmem:[#allocation2 + $0x30] sm:$0xff]
  %v4193 = vld [vmem:[#allocation2 + $0x38] sm:$0xff]
  %v4194 = vpack.c.bf16 %v4187, %v4186
  %v4195 = vpack.c.bf16 %v4189, %v4188
  %v4196 = vpack.c.bf16 %v4191, %v4190
  %v4197 = vpack.c.bf16 %v4193, %v4192
  %v4198 = vld [vmem:[%s13] sm:$0xff]
  %v4199 = vld [vmem:[%s13 + $0x8] sm:$0xff]
  %v4200 = vld [vmem:[%s13 + $0x10] sm:$0xff]
  %v4201 = vld [vmem:[%s13 + $0x18] sm:$0xff]
  %v4202 = vld [vmem:[%s13 + $0x20] sm:$0xff]
  %v4203 = vld [vmem:[%s13 + $0x28] sm:$0xff]
  %v4204 = vld [vmem:[%s13 + $0x30] sm:$0xff]
  %v4205 = vld [vmem:[%s13 + $0x38] sm:$0xff]
  %v4206 = vld [vmem:[%s13 + $0x40] sm:$0xff]
  %v4207 = vld [vmem:[%s13 + $0x48] sm:$0xff]
  %v4208 = vld [vmem:[%s13 + $0x50] sm:$0xff]
  %v4209 = vld [vmem:[%s13 + $0x58] sm:$0xff]
  %v4210 = vld [vmem:[%s13 + $0x60] sm:$0xff]
  %v4211 = vld [vmem:[%s13 + $0x68] sm:$0xff]
  %v4212 = vld [vmem:[%s13 + $0x70] sm:$0xff]
  %v4213 = vld [vmem:[%s13 + $0x78] sm:$0xff]
  %v4214 = vld [vmem:[%s14] sm:$0x3]
  %v4216 = vlaneseq
  %v4217 = vshrl.u32 %v4216, 7
  %v4218 = vsub.s32 0, %v4217
  %v4219 = vrot.slane %v4214, %v4218
  %v4220 = vlaneseq
  %v4221 = vshrl.u32 %v4220, 7
  %v4222 = vsub.s32 1, %v4221
  %v4223 = vrot.slane %v4214, %v4222
  %v4242 = vunpack.c.l.b16 %v4198
  %v4243 = vunpack.c.h.b16 %v4198
  %v4244 = vunpack.c.l.b16 %v4199
  %v4245 = vunpack.c.h.b16 %v4199
  %v4246 = vunpack.c.l.b16 %v4200
  %v4247 = vunpack.c.h.b16 %v4200
  %v4248 = vunpack.c.l.b16 %v4201
  %v4249 = vunpack.c.h.b16 %v4201
  %v4250 = vunpack.c.l.b16 %v4202
  %v4251 = vunpack.c.h.b16 %v4202
  %v4252 = vunpack.c.l.b16 %v4203
  %v4253 = vunpack.c.h.b16 %v4203
  %v4254 = vunpack.c.l.b16 %v4204
  %v4255 = vunpack.c.h.b16 %v4204
  %v4256 = vunpack.c.l.b16 %v4205
  %v4257 = vunpack.c.h.b16 %v4205
  %v4258 = vunpack.c.l.b16 %v4206
  %v4259 = vunpack.c.h.b16 %v4206
  %v4260 = vunpack.c.l.b16 %v4207
  %v4261 = vunpack.c.h.b16 %v4207
  %v4262 = vunpack.c.l.b16 %v4208
  %v4263 = vunpack.c.h.b16 %v4208
  %v4264 = vunpack.c.l.b16 %v4209
  %v4265 = vunpack.c.h.b16 %v4209
  %v4266 = vunpack.c.l.b16 %v4210
  %v4267 = vunpack.c.h.b16 %v4210
  %v4268 = vunpack.c.l.b16 %v4211
  %v4269 = vunpack.c.h.b16 %v4211
  %v4270 = vunpack.c.l.b16 %v4212
  %v4271 = vunpack.c.h.b16 %v4212
  %v4272 = vunpack.c.l.b16 %v4213
  %v4273 = vunpack.c.h.b16 %v4213
  %v4274 = vpack.c.b16 %v4244, %v4242
  %v4275 = vpack.c.b16 %v4245, %v4243
  %v4276 = vpack.c.b16 %v4248, %v4246
  %v4277 = vpack.c.b16 %v4249, %v4247
  %v4278 = vpack.c.b16 %v4252, %v4250
  %v4279 = vpack.c.b16 %v4253, %v4251
  %v4280 = vpack.c.b16 %v4256, %v4254
  %v4281 = vpack.c.b16 %v4257, %v4255
  %v4282 = vpack.c.b16 %v4260, %v4258
  %v4283 = vpack.c.b16 %v4261, %v4259
  %v4284 = vpack.c.b16 %v4264, %v4262
  %v4285 = vpack.c.b16 %v4265, %v4263
  %v4286 = vpack.c.b16 %v4268, %v4266
  %v4287 = vpack.c.b16 %v4269, %v4267
  %v4288 = vpack.c.b16 %v4272, %v4270
  %v4289 = vpack.c.b16 %v4273, %v4271
  %4306 = vmatprep.subr.bf16.mxu0 %v4275
  %4307 = vmatpush1.bf16.msra.mxu0 %v4274
  %4308 = vmatprep.subr.bf16.mxu0 %v4277
  %4309 = vmatpush1.bf16.msra.mxu0 %v4276
  %4310 = vmatprep.subr.bf16.mxu0 %v4279
  %4311 = vmatpush1.bf16.msra.mxu0 %v4278
  %4312 = vmatprep.subr.bf16.mxu0 %v4281
  %4313 = vmatpush1.bf16.msra.mxu0 %v4280
  %4314 = vmatprep.subr.bf16.mxu0 %v4283
  %4315 = vmatpush1.bf16.msra.mxu0 %v4282
  %4316 = vmatprep.subr.bf16.mxu0 %v4285
  %4317 = vmatpush1.bf16.msra.mxu0 %v4284
  %4318 = vmatprep.subr.bf16.mxu0 %v4287
  %4319 = vmatpush1.bf16.msra.mxu0 %v4286
  %4320 = vmatprep.subr.bf16.mxu0 %v4289
  %4321 = vmatpush1.bf16.msra.mxu0 %v4288
  %4322 = vmatprep.subr.bf16.mxu0 0
  %4323 = vmatpush1.bf16.msra.mxu0 0
  %4324 = vmatprep.subr.bf16.mxu0 0
  %4325 = vmatpush1.bf16.msra.mxu0 0
  %4326 = vmatprep.subr.bf16.mxu0 0
  %4327 = vmatpush1.bf16.msra.mxu0 0
  %4328 = vmatprep.subr.bf16.mxu0 0
  %4329 = vmatpush1.bf16.msra.mxu0 0
  %4330 = vmatprep.subr.bf16.mxu0 0
  %4331 = vmatpush1.bf16.msra.mxu0 0
  %4332 = vmatprep.subr.bf16.mxu0 0
  %4333 = vmatpush1.bf16.msra.mxu0 0
  %4334 = vmatprep.subr.bf16.mxu0 0
  %4335 = vmatpush1.bf16.msra.mxu0 0
  %4336 = vmatprep.subr.bf16.mxu0 0
  %4337 = vmatpush1.bf16.msra.mxu0 0
  %4338 = vmatprep.mubr.bf16.mxu0 0
  %4339 = vmatmul.mubr.bf16.gmra.mrb[0].mxu0 %v4194
  %v4340 = vpop.f32.mrb[0].mxu0
  %v4341 = vadd.f32 %v4219, %v4340
  %v4342 = vpop.f32.mrb[0].mxu0
  %v4343 = vadd.f32 %v4223, %v4342
  %v4344 = vpop.f32.mrb[0].mxu0
  %v4345 = vadd.f32 %v4219, %v4344
  %v4346 = vpop.f32.mrb[0].mxu0
  %v4347 = vadd.f32 %v4223, %v4346
  %4348 = vmatprep.mubr.bf16.mxu0 0
  %4349 = vmatmul.mubr.bf16.gmra.mrb[0].mxu0 %v4195
  %v4350 = vpop.f32.mrb[0].mxu0
  %v4351 = vadd.f32 %v4219, %v4350
  %v4352 = vpop.f32.mrb[0].mxu0
  %v4353 = vadd.f32 %v4223, %v4352
  %v4354 = vpop.f32.mrb[0].mxu0
  %v4355 = vadd.f32 %v4219, %v4354
  %v4356 = vpop.f32.mrb[0].mxu0
  %v4357 = vadd.f32 %v4223, %v4356
  %4358 = vmatprep.mubr.bf16.mxu0 0
  %4359 = vmatmul.mubr.bf16.gmra.mrb[0].mxu0 %v4196
  %v4360 = vpop.f32.mrb[0].mxu0
  %v4361 = vadd.f32 %v4219, %v4360
  %v4362 = vpop.f32.mrb[0].mxu0
  %v4363 = vadd.f32 %v4223, %v4362
  %v4364 = vpop.f32.mrb[0].mxu0
  %v4365 = vadd.f32 %v4219, %v4364
  %v4366 = vpop.f32.mrb[0].mxu0
  %v4367 = vadd.f32 %v4223, %v4366
  %4368 = vmatprep.mubr.bf16.mxu0 0
  %4369 = vmatmul.mubr.bf16.gmra.mrb[0].mxu0 %v4197
  %v4370 = vpop.f32.mrb[0].mxu0
  %v4371 = vadd.f32 %v4219, %v4370
  %v4372 = vpop.f32.mrb[0].mxu0
  %v4373 = vadd.f32 %v4223, %v4372
  %v4374 = vpop.f32.mrb[0].mxu0
  %v4375 = vadd.f32 %v4219, %v4374
  %v4376 = vpop.f32.mrb[0].mxu0
  %v4377 = vadd.f32 %v4223, %v4376
  %4378 = vdwg.mxu0
  %4379 = vst [vmem:[%s17] sm:$0xff] %v4341
  %4380 = vst [vmem:[%s17 + $0x8] sm:$0xff] %v4343
  %4381 = vst [vmem:[%s17 + $0x10] sm:$0xff] %v4345
  %4382 = vst [vmem:[%s17 + $0x18] sm:$0xff] %v4347
  %4383 = vst [vmem:[%s17 + $0x20] sm:$0xff] %v4351
  %4384 = vst [vmem:[%s17 + $0x28] sm:$0xff] %v4353
  %4385 = vst [vmem:[%s17 + $0x30] sm:$0xff] %v4355
  %4386 = vst [vmem:[%s17 + $0x38] sm:$0xff] %v4357
  %4387 = vst [vmem:[%s17 + $0x40] sm:$0xff] %v4361
  %4388 = vst [vmem:[%s17 + $0x48] sm:$0xff] %v4363
  %4389 = vst [vmem:[%s17 + $0x50] sm:$0xff] %v4365
  %4390 = vst [vmem:[%s17 + $0x58] sm:$0xff] %v4367
  %4391 = vst [vmem:[%s17 + $0x60] sm:$0xff] %v4371
  %4392 = vst [vmem:[%s17 + $0x68] sm:$0xff] %v4373
  %4393 = vst [vmem:[%s17 + $0x70] sm:$0xff] %v4375
  %4394 = vst [vmem:[%s17 + $0x78] sm:$0xff] %v4377
  %v4395 = vld [vmem:[#allocation3] sm:$0xff]
  %v4396 = vld [vmem:[#allocation3 + $0x8] sm:$0xff]
  %v4397 = vld [vmem:[#allocation3 + $0x10] sm:$0xff]
  %v4398 = vld [vmem:[#allocation3 + $0x18] sm:$0xff]
  %v4399 = vld [vmem:[#allocation3 + $0x20] sm:$0xff]
  %v4400 = vld [vmem:[#allocation3 + $0x28] sm:$0xff]
  %v4401 = vld [vmem:[#allocation3 + $0x30] sm:$0xff]
  %v4402 = vld [vmem:[#allocation3 + $0x38] sm:$0xff]
  %v4403 = vpack.c.bf16 %v4396, %v4395
  %v4404 = vpack.c.bf16 %v4398, %v4397
  %v4405 = vpack.c.bf16 %v4400, %v4399
  %v4406 = vpack.c.bf16 %v4402, %v4401
  %v4407 = vld [vmem:[%s15] sm:$0xff]
  %v4408 = vld [vmem:[%s15 + $0x8] sm:$0xff]
  %v4409 = vld [vmem:[%s15 + $0x10] sm:$0xff]
  %v4410 = vld [vmem:[%s15 + $0x18] sm:$0xff]
  %v4411 = vld [vmem:[%s15 + $0x20] sm:$0xff]
  %v4412 = vld [vmem:[%s15 + $0x28] sm:$0xff]
  %v4413 = vld [vmem:[%s15 + $0x30] sm:$0xff]
  %v4414 = vld [vmem:[%s15 + $0x38] sm:$0xff]
  %v4415 = vld [vmem:[%s15 + $0x40] sm:$0xff]
  %v4416 = vld [vmem:[%s15 + $0x48] sm:$0xff]
  %v4417 = vld [vmem:[%s15 + $0x50] sm:$0xff]
  %v4418 = vld [vmem:[%s15 + $0x58] sm:$0xff]
  %v4419 = vld [vmem:[%s15 + $0x60] sm:$0xff]
  %v4420 = vld [vmem:[%s15 + $0x68] sm:$0xff]
  %v4421 = vld [vmem:[%s15 + $0x70] sm:$0xff]
  %v4422 = vld [vmem:[%s15 + $0x78] sm:$0xff]
  %v4423 = vld [vmem:[%s16] sm:$0x3]
  %v4425 = vlaneseq
  %v4426 = vshrl.u32 %v4425, 7
  %v4427 = vsub.s32 0, %v4426
  %v4428 = vrot.slane %v4423, %v4427
  %v4429 = vlaneseq
  %v4430 = vshrl.u32 %v4429, 7
  %v4431 = vsub.s32 1, %v4430
  %v4432 = vrot.slane %v4423, %v4431
  %v4451 = vunpack.c.l.b16 %v4407
  %v4452 = vunpack.c.h.b16 %v4407
  %v4453 = vunpack.c.l.b16 %v4408
  %v4454 = vunpack.c.h.b16 %v4408
  %v4455 = vunpack.c.l.b16 %v4409
  %v4456 = vunpack.c.h.b16 %v4409
  %v4457 = vunpack.c.l.b16 %v4410
  %v4458 = vunpack.c.h.b16 %v4410
  %v4459 = vunpack.c.l.b16 %v4411
  %v4460 = vunpack.c.h.b16 %v4411
  %v4461 = vunpack.c.l.b16 %v4412
  %v4462 = vunpack.c.h.b16 %v4412
  %v4463 = vunpack.c.l.b16 %v4413
  %v4464 = vunpack.c.h.b16 %v4413
  %v4465 = vunpack.c.l.b16 %v4414
  %v4466 = vunpack.c.h.b16 %v4414
  %v4467 = vunpack.c.l.b16 %v4415
  %v4468 = vunpack.c.h.b16 %v4415
  %v4469 = vunpack.c.l.b16 %v4416
  %v4470 = vunpack.c.h.b16 %v4416
  %v4471 = vunpack.c.l.b16 %v4417
  %v4472 = vunpack.c.h.b16 %v4417
  %v4473 = vunpack.c.l.b16 %v4418
  %v4474 = vunpack.c.h.b16 %v4418
  %v4475 = vunpack.c.l.b16 %v4419
  %v4476 = vunpack.c.h.b16 %v4419
  %v4477 = vunpack.c.l.b16 %v4420
  %v4478 = vunpack.c.h.b16 %v4420
  %v4479 = vunpack.c.l.b16 %v4421
  %v4480 = vunpack.c.h.b16 %v4421
  %v4481 = vunpack.c.l.b16 %v4422
  %v4482 = vunpack.c.h.b16 %v4422
  %v4483 = vpack.c.b16 %v4453, %v4451
  %v4484 = vpack.c.b16 %v4454, %v4452
  %v4485 = vpack.c.b16 %v4457, %v4455
  %v4486 = vpack.c.b16 %v4458, %v4456
  %v4487 = vpack.c.b16 %v4461, %v4459
  %v4488 = vpack.c.b16 %v4462, %v4460
  %v4489 = vpack.c.b16 %v4465, %v4463
  %v4490 = vpack.c.b16 %v4466, %v4464
  %v4491 = vpack.c.b16 %v4469, %v4467
  %v4492 = vpack.c.b16 %v4470, %v4468
  %v4493 = vpack.c.b16 %v4473, %v4471
  %v4494 = vpack.c.b16 %v4474, %v4472
  %v4495 = vpack.c.b16 %v4477, %v4475
  %v4496 = vpack.c.b16 %v4478, %v4476
  %v4497 = vpack.c.b16 %v4481, %v4479
  %v4498 = vpack.c.b16 %v4482, %v4480
  %4515 = vmatprep.subr.bf16.mxu0 %v4484
  %4516 = vmatpush1.bf16.msra.mxu0 %v4483
  %4517 = vmatprep.subr.bf16.mxu0 %v4486
  %4518 = vmatpush1.bf16.msra.mxu0 %v4485
  %4519 = vmatprep.subr.bf16.mxu0 %v4488
  %4520 = vmatpush1.bf16.msra.mxu0 %v4487
  %4521 = vmatprep.subr.bf16.mxu0 %v4490
  %4522 = vmatpush1.bf16.msra.mxu0 %v4489
  %4523 = vmatprep.subr.bf16.mxu0 %v4492
  %4524 = vmatpush1.bf16.msra.mxu0 %v4491
  %4525 = vmatprep.subr.bf16.mxu0 %v4494
  %4526 = vmatpush1.bf16.msra.mxu0 %v4493
  %4527 = vmatprep.subr.bf16.mxu0 %v4496
  %4528 = vmatpush1.bf16.msra.mxu0 %v4495
  %4529 = vmatprep.subr.bf16.mxu0 %v4498
  %4530 = vmatpush1.bf16.msra.mxu0 %v4497
  %4531 = vmatprep.subr.bf16.mxu0 0
  %4532 = vmatpush1.bf16.msra.mxu0 0
  %4533 = vmatprep.subr.bf16.mxu0 0
  %4534 = vmatpush1.bf16.msra.mxu0 0
  %4535 = vmatprep.subr.bf16.mxu0 0
  %4536 = vmatpush1.bf16.msra.mxu0 0
  %4537 = vmatprep.subr.bf16.mxu0 0
  %4538 = vmatpush1.bf16.msra.mxu0 0
  %4539 = vmatprep.subr.bf16.mxu0 0
  %4540 = vmatpush1.bf16.msra.mxu0 0
  %4541 = vmatprep.subr.bf16.mxu0 0
  %4542 = vmatpush1.bf16.msra.mxu0 0
  %4543 = vmatprep.subr.bf16.mxu0 0
  %4544 = vmatpush1.bf16.msra.mxu0 0
  %4545 = vmatprep.subr.bf16.mxu0 0
  %4546 = vmatpush1.bf16.msra.mxu0 0
  %4547 = vmatprep.mubr.bf16.mxu0 0
  %4548 = vmatmul.mubr.bf16.gmra.mrb[0].mxu0 %v4403
  %v4549 = vpop.f32.mrb[0].mxu0
  %v4550 = vadd.f32 %v4428, %v4549
  %v4551 = vpop.f32.mrb[0].mxu0
  %v4552 = vadd.f32 %v4432, %v4551
  %v4553 = vpop.f32.mrb[0].mxu0
  %v4554 = vadd.f32 %v4428, %v4553
  %v4555 = vpop.f32.mrb[0].mxu0
  %v4556 = vadd.f32 %v4432, %v4555
  %4557 = vmatprep.mubr.bf16.mxu0 0
  %4558 = vmatmul.mubr.bf16.gmra.mrb[0].mxu0 %v4404
  %v4559 = vpop.f32.mrb[0].mxu0
  %v4560 = vadd.f32 %v4428, %v4559
  %v4561 = vpop.f32.mrb[0].mxu0
  %v4562 = vadd.f32 %v4432, %v4561
  %v4563 = vpop.f32.mrb[0].mxu0
  %v4564 = vadd.f32 %v4428, %v4563
  %v4565 = vpop.f32.mrb[0].mxu0
  %v4566 = vadd.f32 %v4432, %v4565
  %4567 = vmatprep.mubr.bf16.mxu0 0
  %4568 = vmatmul.mubr.bf16.gmra.mrb[0].mxu0 %v4405
  %v4569 = vpop.f32.mrb[0].mxu0
  %v4570 = vadd.f32 %v4428, %v4569
  %v4571 = vpop.f32.mrb[0].mxu0
  %v4572 = vadd.f32 %v4432, %v4571
  %v4573 = vpop.f32.mrb[0].mxu0
  %v4574 = vadd.f32 %v4428, %v4573
  %v4575 = vpop.f32.mrb[0].mxu0
  %v4576 = vadd.f32 %v4432, %v4575
  %4577 = vmatprep.mubr.bf16.mxu0 0
  %4578 = vmatmul.mubr.bf16.gmra.mrb[0].mxu0 %v4406
  %v4579 = vpop.f32.mrb[0].mxu0
  %v4580 = vadd.f32 %v4428, %v4579
  %v4581 = vpop.f32.mrb[0].mxu0
  %v4582 = vadd.f32 %v4432, %v4581
  %v4583 = vpop.f32.mrb[0].mxu0
  %v4584 = vadd.f32 %v4428, %v4583
  %v4585 = vpop.f32.mrb[0].mxu0
  %v4586 = vadd.f32 %v4432, %v4585
  %4587 = vdwg.mxu0
  %4588 = vst [vmem:[%s18] sm:$0xff] %v4550
  %4589 = vst [vmem:[%s18 + $0x8] sm:$0xff] %v4552
  %4590 = vst [vmem:[%s18 + $0x10] sm:$0xff] %v4554
  %4591 = vst [vmem:[%s18 + $0x18] sm:$0xff] %v4556
  %4592 = vst [vmem:[%s18 + $0x20] sm:$0xff] %v4560
  %4593 = vst [vmem:[%s18 + $0x28] sm:$0xff] %v4562
  %4594 = vst [vmem:[%s18 + $0x30] sm:$0xff] %v4564
  %4595 = vst [vmem:[%s18 + $0x38] sm:$0xff] %v4566
  %4596 = vst [vmem:[%s18 + $0x40] sm:$0xff] %v4570
  %4597 = vst [vmem:[%s18 + $0x48] sm:$0xff] %v4572
  %4598 = vst [vmem:[%s18 + $0x50] sm:$0xff] %v4574
  %4599 = vst [vmem:[%s18 + $0x58] sm:$0xff] %v4576
  %4600 = vst [vmem:[%s18 + $0x60] sm:$0xff] %v4580
  %4601 = vst [vmem:[%s18 + $0x68] sm:$0xff] %v4582
  %4602 = vst [vmem:[%s18 + $0x70] sm:$0xff] %v4584
  %4603 = vst [vmem:[%s18 + $0x78] sm:$0xff] %v4586
  // Predicated region
  $region70: #{uniskip_forward.1} parent=0 // pred_check
    _
  $region71: #{uniskip_forward.1} parent=0 // pred_check_branch
    %4605 = sbr.rel (0) target = $region73
  $region72: #{uniskip_forward.1} parent=0 // pred_region
    _
  $region73: #{uniskip_forward.1} parent=0 // pred_fallthru
    _
  // Predicated region
  $region74: #{uniskip_forward.1} parent=0 // pred_check
    _
  $region75: #{uniskip_forward.1} parent=0 // pred_check_branch
    %4607 = sbr.rel (0) target = $region77
  $region76: #{uniskip_forward.1} parent=0 // pred_region
    _
  $region77: #{uniskip_forward.1} parent=0 // pred_fallthru
    _
  // Predicated region
  $region78: #{uniskip_forward.1} parent=0 // pred_check
    _
  $region79: #{uniskip_forward.1} parent=0 // pred_check_branch
    %4609 = sbr.rel (0) target = $region81
  $region80: #{uniskip_forward.1} parent=0 // pred_region
    _
  $region81: #{uniskip_forward.1} parent=0 // pred_fallthru
    _
  // Predicated region
  $region82: #{uniskip_forward.1} parent=0 // pred_check
    _
  $region83: #{uniskip_forward.1} parent=0 // pred_check_branch
    %4611 = sbr.rel (0) target = $region85
  $region84: #{uniskip_forward.1} parent=0 // pred_region
    _
  $region85: #{uniskip_forward.1} parent=0 // pred_fallthru
    _

</llo_original>
